<compile_context>
chip_gen: v6e
topology: v6e:2x2x1
jax: 0.10.0
libtpu: 0.0.40
codegen_flags: <defaults>
</compile_context>

<pallas_src>
import functools

import jax
import jax.numpy as jnp
from jax.experimental import pallas as pl
from jax.experimental.pallas import tpu as pltpu


def _round_up(x, m):
    return ((x + m - 1) // m) * m


def _attention_pooling_kernel(tok_ref, mask_ref, w_ref, out_ref,
                              m_sc, l_sc, acc_sc, *, S_real, S_pad):
    # tok_ref:  (TB, TS, H)  token embeddings, native dtype
    # mask_ref: (TB, TS)     mask as float32 (0 => masked out)
    # w_ref:    (1, H)       attention weight vector, native dtype
    # out_ref:  (TB, H)      pooled output, float32 (lane-dense)
    # scratch:  m_sc/l_sc (TB, 1) f32, acc_sc (TB, H) f32
    s = pl.program_id(1)
    last_s = pl.num_programs(1) - 1

    @pl.when(s == 0)
    def _init():
        m_sc[...] = jnp.full_like(m_sc, -jnp.inf)
        l_sc[...] = jnp.zeros_like(l_sc)
        acc_sc[...] = jnp.zeros_like(acc_sc)

    tok = tok_ref[...]                                # (TB, TS, H), native dtype
    TB, TS, H = tok.shape
    w = w_ref[...]                                    # (1, H), native dtype
    prec = jax.lax.Precision.HIGHEST if tok.dtype == jnp.float32 else None

    # ---- attention scores: MXU contraction over H, f32 accumulation -------
    scores = jax.lax.dot_general(
        tok.reshape(TB * TS, H), w,
        dimension_numbers=(((1,), (1,)), ((), ())),
        preferred_element_type=jnp.float32,
        precision=prec).reshape(TB, TS)               # lane-dense (TB, TS)

    # masked_fill(mask == 0, -1e9), in float32 (matches the PyTorch module)
    scores = jnp.where(mask_ref[...] == 0.0,
                       jnp.float32(-1000000000.0), scores)

    # ---- online softmax over the (possibly tiled) sequence axis -----------
    m_prev = m_sc[...]                                # (TB, 1)
    m_new = jnp.maximum(m_prev, jnp.max(scores, axis=-1, keepdims=True))
    alpha = jnp.exp(m_prev - m_new)                   # rescale of old partials
    p = jnp.exp(scores - m_new)                       # (TB, TS), f32
    if S_pad != S_real:
        # Zero out sequence-padding columns (present only when S was padded
        # up to a multiple of the sequence tile).
        col = jax.lax.broadcasted_iota(jnp.int32, p.shape, 1) + s * TS
        p = jnp.where(col < S_real, p, 0.0)
    l_sc[...] = alpha * l_sc[...] + jnp.sum(p, axis=-1, keepdims=True)

    # ---- pooled partial: batched MXU contraction, f32 accumulation --------
    part = jnp.einsum("bqs,bsh->bqh",
                      p.astype(tok.dtype).reshape(TB, 1, TS), tok,
                      preferred_element_type=jnp.float32,
                      precision=prec)[:, 0, :]        # (TB, H), f32
    acc_sc[...] = alpha * acc_sc[...] + part
    m_sc[...] = m_new

    @pl.when(s == last_s)
    def _finalize():
        out_ref[...] = (acc_sc[...] / l_sc[...]).astype(out_ref.dtype)


def attention_pooling(token_embeddings, mask, attention_weights):
    """token_embeddings: (B, S, H); mask: (B, S); attention_weights: (H, 1).

    Returns the pooled output (B, H) in float32 (the PyTorch module runs the
    masking / softmax / pooling math in float32).
    """
    B, S, H = token_embeddings.shape
    dtype = token_embeddings.dtype
    item = jnp.dtype(dtype).itemsize

    # --- per-generation VMEM budget -----------------------------------------
    try:
        vmem_cap = int(getattr(pltpu.get_tpu_info(), "vmem_capacity_bytes",
                               64 * 1024 * 1024))
    except Exception:
        vmem_cap = 64 * 1024 * 1024                    # conservative (v7x size)
    # Token tile <= 1/8 of VMEM -> double-buffered token stream uses <= 1/4.
    budget = max(vmem_cap // 8, 512 * 1024)

    # --- tile selection ------------------------------------------------------
    row_bytes = S * H * item
    if 8 * row_bytes <= budget:
        TS = S                                         # full sequence per step
        tb_fit = budget // row_bytes                   # >= 8 by construction
    else:
        # Tile the sequence axis (lane dim of the mask block -> multiple of 128).
        ts_fit = budget // (8 * H * item)
        TS = max(128, (ts_fit // 128) * 128)
        tb_fit = 8
        # TODO(synk): extremely wide hidden sizes (8*128*H*itemsize > VMEM)
        # would additionally need H-tiling for the score pass.
    S_pad = _round_up(S, TS)

    # Batch tile: multiple of 8 (sublane dim of the mask / output blocks),
    # capped at 128 (keeps the batched pooled contraction small), and capped
    # so the "parallel" batch axis has >= 2 grid steps once B is large enough
    # to split usefully across v7x's two TensorCores.
    TB = max(8, min((tb_fit // 8) * 8, _round_up(pl.cdiv(B, 2), 8), 128))
    B_pad = _round_up(B, TB)

    tok = token_embeddings
    msk = mask.astype(jnp.float32)
    if B_pad != B or S_pad != S:
        tok = jnp.pad(tok, ((0, B_pad - B), (0, S_pad - S), (0, 0)))
        # Padded batch rows get an all-zero mask -> finite garbage sliced off
        # below; padded sequence columns are zeroed inside the kernel.
        msk = jnp.pad(msk, ((0, B_pad - B), (0, S_pad - S)))
    w_row = attention_weights.reshape(1, H).astype(dtype)

    nb = B_pad // TB
    ns = S_pad // TS

    # --- scoped-VMEM limit (double-buffered streams + scratch + staging) ----
    tok_tile = TB * TS * H * item
    mask_tile = TB * TS * 4
    out_tile = TB * H * 4
    w_tile = 8 * _round_up(H, 128) * item
    scratch_b = TB * H * 4 + 2 * TB * 128 * 4
    interm = 6 * TB * TS * 4
    est = (4 * tok_tile                      # 2 pipeline buffers + dot staging
           + 2 * (mask_tile + out_tile + w_tile)
           + scratch_b + interm + (8 << 20))  # headroom for internal scratch
    vmem_limit = max(min(est, vmem_cap - (2 << 20)), 32 << 20)

    kernel = functools.partial(_attention_pooling_kernel,
                               S_real=S, S_pad=S_pad)

    out = pl.pallas_call(
        kernel,
        out_shape=jax.ShapeDtypeStruct((B_pad, H), jnp.float32),
        grid=(nb, ns),
        in_specs=[
            pl.BlockSpec((TB, TS, H), lambda b, s: (b, s, 0)),   # tokens
            pl.BlockSpec((TB, TS), lambda b, s: (b, s)),         # mask
            pl.BlockSpec((1, H), lambda b, s: (0, 0)),           # weights
        ],
        out_specs=pl.BlockSpec((TB, H), lambda b, s: (b, 0)),    # lane-dense out
        scratch_shapes=[
            pltpu.VMEM((TB, 1), jnp.float32),    # running row max
            pltpu.VMEM((TB, 1), jnp.float32),    # running softmax denominator
            pltpu.VMEM((TB, H), jnp.float32),    # running weighted sum
        ],
        compiler_params=pltpu.CompilerParams(
            dimension_semantics=("parallel", "arbitrary"),
            vmem_limit_bytes=int(vmem_limit)),
    )(tok, msk, w_row)

    return out[:B]


def attention_pooling_ref(token_embeddings, mask, attention_weights):
    # Pure-JAX reference mirroring the PyTorch forward (f32-accurate matmuls).
    hp = jax.lax.Precision.HIGHEST
    scores = jnp.matmul(token_embeddings.astype(jnp.float32),
                        attention_weights.astype(jnp.float32),
                        precision=hp)[..., 0]
    scores = jnp.where(mask.astype(jnp.float32) == 0.0, -1000000000.0, scores)
    attn = jax.nn.softmax(scores, axis=-1)
    pooled = jnp.einsum("bs,bsh->bh", attn,
                        token_embeddings.astype(jnp.float32), precision=hp)
    return pooled


if __name__ == "__main__":
    B, S, H = 2, 8, 32

    key = jax.random.PRNGKey(0)
    k_tok, k_mask, k_w = jax.random.split(key, 3)

    token_embeddings = jax.random.normal(k_tok, (B, S, H), dtype=jnp.float32)
    # Random 0/1 mask with at least one valid token per row.
    mask = (jax.random.uniform(k_mask, (B, S)) > 0.3).astype(jnp.float32)
    mask = mask.at[:, 0].set(1.0)
    # Deterministic "parameter" init (torch.randn(hidden_size, 1) analogue).
    attention_weights = jax.random.normal(k_w, (H, 1), dtype=jnp.float32)

    pooled = attention_pooling(token_embeddings, mask, attention_weights)
    pooled = jax.block_until_ready(pooled)

    expected = attention_pooling_ref(token_embeddings, mask, attention_weights)
    assert pooled.shape == (B, H)
    max_err = float(jnp.max(jnp.abs(pooled - expected)))
    assert jnp.allclose(pooled, expected, atol=1e-3, rtol=1e-3), max_err

    print("KERNEL_OK")
</pallas_src>

<mosaic_0001>
module attributes {stable_mosaic.version = 11 : i64} {
  func.func @_attention_pooling_kernel(%arg0: i32, %arg1: i32, %arg2: memref<8x8x32xf32, #tpu.memory_space<vmem>>, %arg3: memref<8x8xf32, #tpu.memory_space<vmem>>, %arg4: memref<1x32xf32, #tpu.memory_space<vmem>>, %arg5: memref<8x32xf32, #tpu.memory_space<vmem>>, %arg6: memref<8x1xf32, #tpu.memory_space<vmem>>, %arg7: memref<8x1xf32, #tpu.memory_space<vmem>>, %arg8: memref<8x32xf32, #tpu.memory_space<vmem>>) attributes {dimension_semantics = [#tpu.dimension_semantics<parallel>, #tpu.dimension_semantics<arbitrary>], iteration_bounds = array<i64: 1, 1>, scalar_prefetch = 0 : i64, scratch_operands = 3 : i64, tpu.core_type = #tpu.core_type<tc>, window_params = [{transform_indices = @transform_0, window_bounds = array<i64: 8, 8, 32>}, {transform_indices = @transform_1, window_bounds = array<i64: 8, 8>}, {pipeline_mode = #tpu.pipeline_mode<synchronous>, transform_indices = @transform_2, window_bounds = array<i64: 1, 32>}, {transform_indices = @transform_3, window_bounds = array<i64: 8, 32>}]} {
    %c0_i32 = arith.constant 0 : i32
    %0 = arith.cmpi eq, %arg1, %c0_i32 : i32
    %1 = arith.extui %0 : i1 to i32
    %c0_i32_0 = arith.constant 0 : i32
    %2 = arith.cmpi ne, %1, %c0_i32_0 : i32
    scf.if %2 {
      %cst_26 = arith.constant 0xFF800000 : f32
      %40 = vector.broadcast %cst_26 : f32 to vector<8x1xf32>
      %c0_27 = arith.constant 0 : index
      %c0_28 = arith.constant 0 : index
      %41 = vector.load %arg6[%c0_27, %c0_28] : memref<8x1xf32, #tpu.memory_space<vmem>>, vector<8x1xf32>
      tpu.vector_store %arg6[%c0_27, %c0_28], %40 {strides = array<i32>} : memref<8x1xf32, #tpu.memory_space<vmem>>, vector<8x1xf32>,
      %cst_29 = arith.constant 0.000000e+00 : f32
      %42 = vector.broadcast %cst_29 : f32 to vector<8x1xf32>
      %c0_30 = arith.constant 0 : index
      %c0_31 = arith.constant 0 : index
      %43 = vector.load %arg7[%c0_30, %c0_31] : memref<8x1xf32, #tpu.memory_space<vmem>>, vector<8x1xf32>
      tpu.vector_store %arg7[%c0_30, %c0_31], %42 {strides = array<i32>} : memref<8x1xf32, #tpu.memory_space<vmem>>, vector<8x1xf32>,
      %cst_32 = arith.constant 0.000000e+00 : f32
      %44 = vector.broadcast %cst_32 : f32 to vector<8x32xf32>
      %c0_33 = arith.constant 0 : index
      %c0_34 = arith.constant 0 : index
      %45 = vector.load %arg8[%c0_33, %c0_34] : memref<8x32xf32, #tpu.memory_space<vmem>>, vector<8x32xf32>
      tpu.vector_store %arg8[%c0_33, %c0_34], %44 {strides = array<i32>} : memref<8x32xf32, #tpu.memory_space<vmem>>, vector<8x32xf32>,
    } else {
    }
    %c0 = arith.constant 0 : index
    %c0_1 = arith.constant 0 : index
    %c0_2 = arith.constant 0 : index
    %3 = vector.load %arg2[%c0, %c0_1, %c0_2] : memref<8x8x32xf32, #tpu.memory_space<vmem>>, vector<8x8x32xf32>
    %c0_3 = arith.constant 0 : index
    %c0_4 = arith.constant 0 : index
    %4 = vector.load %arg4[%c0_3, %c0_4] : memref<1x32xf32, #tpu.memory_space<vmem>>, vector<1x32xf32>
    %5 = vector.shape_cast %3 : vector<8x8x32xf32> to vector<64x32xf32>
    %cst = arith.constant dense<0.000000e+00> : vector<64x1xf32>
    %6 = tpu.matmul %5, %4, %cst {dimension_numbers = #tpu.dot_dimension_numbers<[1], [1], [0], [0], [0, 0, 1, 0], [], []>, precision = #tpu.contract_precision<fp32>} : vector<64x32xf32>, vector<1x32xf32>, vector<64x1xf32> -> vector<64x1xf32>
    %7 = vector.shape_cast %6 : vector<64x1xf32> to vector<8x8xf32>
    %c0_5 = arith.constant 0 : index
    %c0_6 = arith.constant 0 : index
    %8 = vector.load %arg3[%c0_5, %c0_6] : memref<8x8xf32, #tpu.memory_space<vmem>>, vector<8x8xf32>
    %cst_7 = arith.constant 0.000000e+00 : f32
    %9 = vector.broadcast %cst_7 : f32 to vector<8x8xf32>
    %10 = arith.cmpf oeq, %8, %9 : vector<8x8xf32>
    %cst_8 = arith.constant -1.000000e+09 : f32
    %11 = vector.broadcast %cst_8 : f32 to vector<8x8xf32>
    %12 = arith.select %10, %11, %7 : vector<8x8xi1>, vector<8x8xf32>
    %c0_9 = arith.constant 0 : index
    %c0_10 = arith.constant 0 : index
    %13 = vector.load %arg6[%c0_9, %c0_10] : memref<8x1xf32, #tpu.memory_space<vmem>>, vector<8x1xf32>
    %cst_11 = arith.constant dense<0xFF800000> : vector<8xf32>
    %14 = vector.multi_reduction <maximumf>, %12, %cst_11 [1] : vector<8x8xf32> to vector<8xf32>
    %15 = vector.shape_cast %14 : vector<8xf32> to vector<8x1xf32>
    %16 = arith.maximumf %13, %15 : vector<8x1xf32>
    %17 = arith.subf %13, %16 : vector<8x1xf32>
    %18 = math.exp %17 : vector<8x1xf32>
    %19 = vector.broadcast %16 : vector<8x1xf32> to vector<8x8xf32>
    %20 = arith.subf %12, %19 : vector<8x8xf32>
    %21 = math.exp %20 : vector<8x8xf32>
    %c0_12 = arith.constant 0 : index
    %c0_13 = arith.constant 0 : index
    %22 = vector.load %arg7[%c0_12, %c0_13] : memref<8x1xf32, #tpu.memory_space<vmem>>, vector<8x1xf32>
    %23 = arith.mulf %18, %22 : vector<8x1xf32>
    %cst_14 = arith.constant dense<0.000000e+00> : vector<8xf32>
    %24 = vector.multi_reduction <add>, %21, %cst_14 [1] : vector<8x8xf32> to vector<8xf32>
    %25 = vector.shape_cast %24 : vector<8xf32> to vector<8x1xf32>
    %26 = arith.addf %23, %25 : vector<8x1xf32>
    %c0_15 = arith.constant 0 : index
    %c0_16 = arith.constant 0 : index
    %27 = vector.load %arg7[%c0_15, %c0_16] : memref<8x1xf32, #tpu.memory_space<vmem>>, vector<8x1xf32>
    tpu.vector_store %arg7[%c0_15, %c0_16], %26 {strides = array<i32>} : memref<8x1xf32, #tpu.memory_space<vmem>>, vector<8x1xf32>,
    %28 = vector.shape_cast %21 : vector<8x8xf32> to vector<8x1x8xf32>
    "tpu.trace_start"() <{level = 10 : i32, message = "bqs,bsh->bqh"}> : () -> ()
    %cst_17 = arith.constant dense<0.000000e+00> : vector<8x1x32xf32>
    %29 = tpu.matmul %28, %3, %cst_17 {dimension_numbers = #tpu.dot_dimension_numbers<[2], [1], [1], [2], [0, 0, 0, 1, 1, 2], [0], [0]>, precision = #tpu.contract_precision<fp32>} : vector<8x1x8xf32>, vector<8x8x32xf32>, vector<8x1x32xf32> -> vector<8x1x32xf32>
    "tpu.trace_stop"() : () -> ()
    %30 = vector.shape_cast %29 : vector<8x1x32xf32> to vector<8x32xf32>
    %c0_18 = arith.constant 0 : index
    %c0_19 = arith.constant 0 : index
    %31 = vector.load %arg8[%c0_18, %c0_19] : memref<8x32xf32, #tpu.memory_space<vmem>>, vector<8x32xf32>
    %32 = vector.broadcast %18 : vector<8x1xf32> to vector<8x32xf32>
    %33 = arith.mulf %32, %31 : vector<8x32xf32>
    %34 = arith.addf %33, %30 : vector<8x32xf32>
    %c0_20 = arith.constant 0 : index
    %c0_21 = arith.constant 0 : index
    %35 = vector.load %arg8[%c0_20, %c0_21] : memref<8x32xf32, #tpu.memory_space<vmem>>, vector<8x32xf32>
    tpu.vector_store %arg8[%c0_20, %c0_21], %34 {strides = array<i32>} : memref<8x32xf32, #tpu.memory_space<vmem>>, vector<8x32xf32>,
    %c0_22 = arith.constant 0 : index
    %c0_23 = arith.constant 0 : index
    %36 = vector.load %arg6[%c0_22, %c0_23] : memref<8x1xf32, #tpu.memory_space<vmem>>, vector<8x1xf32>
    tpu.vector_store %arg6[%c0_22, %c0_23], %16 {strides = array<i32>} : memref<8x1xf32, #tpu.memory_space<vmem>>, vector<8x1xf32>,
    %c0_i32_24 = arith.constant 0 : i32
    %37 = arith.cmpi eq, %arg1, %c0_i32_24 : i32
    %38 = arith.extui %37 : i1 to i32
    %c0_i32_25 = arith.constant 0 : i32
    %39 = arith.cmpi ne, %38, %c0_i32_25 : i32
    scf.if %39 {
      %c0_26 = arith.constant 0 : index
      %c0_27 = arith.constant 0 : index
      %40 = vector.load %arg8[%c0_26, %c0_27] : memref<8x32xf32, #tpu.memory_space<vmem>>, vector<8x32xf32>
      %c0_28 = arith.constant 0 : index
      %c0_29 = arith.constant 0 : index
      %41 = vector.load %arg7[%c0_28, %c0_29] : memref<8x1xf32, #tpu.memory_space<vmem>>, vector<8x1xf32>
      %42 = vector.broadcast %41 : vector<8x1xf32> to vector<8x32xf32>
      %43 = arith.divf %40, %42 : vector<8x32xf32>
      %c0_30 = arith.constant 0 : index
      %c0_31 = arith.constant 0 : index
      %44 = vector.load %arg5[%c0_30, %c0_31] : memref<8x32xf32, #tpu.memory_space<vmem>>, vector<8x32xf32>
      tpu.vector_store %arg5[%c0_30, %c0_31], %43 {strides = array<i32>} : memref<8x32xf32, #tpu.memory_space<vmem>>, vector<8x32xf32>,
    } else {
    }
    return
  }
  func.func @transform_0(%arg0: i32, %arg1: i32) -> (i32, i32, i32) {
    %c0_i32 = arith.constant 0 : i32
    %c0_i32_0 = arith.constant 0 : i32
    return %arg0, %arg1, %c0_i32 : i32, i32, i32
  }
  func.func @transform_1(%arg0: i32, %arg1: i32) -> (i32, i32) {
    %c0_i32 = arith.constant 0 : i32
    return %arg0, %arg1 : i32, i32
  }
  func.func @transform_2(%arg0: i32, %arg1: i32) -> (i32, i32) {
    %c0_i32 = arith.constant 0 : i32
    %c0_i32_0 = arith.constant 0 : i32
    %c0_i32_1 = arith.constant 0 : i32
    return %c0_i32, %c0_i32_0 : i32, i32
  }
  func.func @transform_3(%arg0: i32, %arg1: i32) -> (i32, i32) {
    %c0_i32 = arith.constant 0 : i32
    %c0_i32_0 = arith.constant 0 : i32
    return %arg0, %c0_i32 : i32, i32
  }
}

</mosaic_0001>

<llo_original>
// kernel: tpu_custom_call.1
$region0: #{tpu_custom_call.1}
  #allocation0 [shape = 'u32[]', space=smem, size = 0x4, offset = 0x4, fixed_abs, tag = 'smem constant byte address 0x4 - core index']
  #allocation1 [shape = 'u32[144,128]{1,0:T(1,128)}', space=vmem, size = 0x12000, scoped, tag = 'internal scratch']
  #allocation2 [shape = 'f32[8,1]{1,0:T(8,128)}', space=vmem, size = 0x1000, scoped, tag = 'scratch operand']
  #allocation3 [shape = 'f32[8,1]{1,0:T(8,128)}', space=vmem, size = 0x1000, scoped, tag = 'scratch operand']
  #allocation4 [shape = 'f32[8,32]{1,0:T(8,128)}', space=vmem, size = 0x1000, scoped, tag = 'scratch operand']
  %s0 = inlined_call_operand.hbm [shape: f32[8,8,32], index: 0, kind: input, shape index: {}]
  %s1 = inlined_call_operand.hbm [shape: f32[8,8], index: 1, kind: input, shape index: {}]
  %s2 = inlined_call_operand.vmem [shape: f32[1,32], index: 2, kind: input, shape index: {}]
  %s3 = inlined_call_operand.hbm [shape: f32[8,32], index: 3, kind: output, shape index: {}]
  %s4 = sld [smem:[#allocation0]]
  $region38: #{tpu_custom_call.1} parent=0
    _
  %s6 = ssub.s32 1, %s4
  %s7 = scalar_select 0, %s6, %s4
  $region1: #{tpu_custom_call.1} parent=0
    #allocation5 [shape = 'u8[32768]{0}', space=vmem, size = 0x8000, scoped, tag = 'input window, operand 0, single buffered']
    #allocation6 [shape = 's32[1]{0}', space=sflag, size = 0x4, scoped, tag = 'scoped memory for tpu_custom_call.1']
    #allocation7 [shape = 's32[1]{0}', space=sflag, size = 0x4, scoped, tag = 'scoped memory for tpu_custom_call.1']
    #allocation8 [shape = 'u8[4096]{0}', space=vmem, size = 0x1000, scoped, tag = 'input window, operand 1, single buffered']
    #allocation9 [shape = 's32[1]{0}', space=sflag, size = 0x4, scoped, tag = 'scoped memory for tpu_custom_call.1']
    #allocation10 [shape = 'u8[4096]{0}', space=vmem, size = 0x1000, scoped, tag = 'output window, operand 0, single buffered']
    %8 = vsyncpa [#allocation6], 0
    %9 = vsyncpa [#allocation9], 0
    %10 = vsyncpa [#allocation7], 0
    // Predicated region
    $region2: #{tpu_custom_call.1} parent=1 // pred_check
      _
    $region3: #{tpu_custom_call.1} parent=1 // pred_check_branch
      %12 = sbr.rel (0) target = $region5
    $region4: #{tpu_custom_call.1} parent=1 // pred_region
      %s14 = ssub.s32 1024, 1024
      %15 = vsyncadd [#allocation6], %s14
      %s16 = sshll.u32 [#allocation5], 4
      %s17 = int_to_ptr.vmem [resolvable:$true] %s16
      %22 = dma.hbm_to_vmem [thread:$0]  %s0, 1024, %s17, [#allocation6], 128, 128, 8
    $region5: #{tpu_custom_call.1} parent=1 // pred_fallthru
      _
    // Predicated region
    $region6: #{tpu_custom_call.1} parent=1 // pred_check
      _
    $region7: #{tpu_custom_call.1} parent=1 // pred_check_branch
      %24 = sbr.rel (0) target = $region9
    $region8: #{tpu_custom_call.1} parent=1 // pred_region
      %s26 = ssub.s32 128, 128
      %27 = vsyncadd [#allocation9], %s26
      %s29 = sshll.u32 [#allocation8], 4
      %s30 = int_to_ptr.vmem [resolvable:$true] %s29
      %32 = dma.hbm_to_vmem [thread:$0]  %s1, 128, %s30, [#allocation9]
    $region9: #{tpu_custom_call.1} parent=1 // pred_fallthru
      _
    // Predicated region
    $region10: #{tpu_custom_call.1} parent=1 // pred_check
      _
    $region11: #{tpu_custom_call.1} parent=1 // pred_check_branch
      %34 = sbr.rel (0) target = $region13
    $region12: #{tpu_custom_call.1} parent=1 // pred_region
      _
    $region13: #{tpu_custom_call.1} parent=1 // pred_fallthru
      _
    // Predicated region
    $region14: #{tpu_custom_call.1} parent=1 // pred_check
      _
    $region15: #{tpu_custom_call.1} parent=1 // pred_check_branch
      %36 = sbr.rel (0) target = $region17
    $region16: #{tpu_custom_call.1} parent=1 // pred_region
      %37 = dma.done [#allocation6], 1024
    $region17: #{tpu_custom_call.1} parent=1 // pred_fallthru
      _
    // Predicated region
    $region18: #{tpu_custom_call.1} parent=1 // pred_check
      _
    $region19: #{tpu_custom_call.1} parent=1 // pred_check_branch
      %39 = sbr.rel (0) target = $region21
    $region20: #{tpu_custom_call.1} parent=1 // pred_region
      %40 = dma.done [#allocation9], 128
    $region21: #{tpu_custom_call.1} parent=1 // pred_fallthru
      _
    %p41 = scmp.eq.s32.totalorder 0, 0
    // Predicated region
    $region22: #{tpu_custom_call.1} parent=1 // pred_check
      %p42 = pneg %p41
    $region23: #{tpu_custom_call.1} parent=1 // pred_check_branch
      %44 = sbr.rel (%p42) target = $region25
    $region24: #{tpu_custom_call.1} parent=1 // pred_region
      %vm45 = vcmask 7168
      %46 = vst.msk [vmem:[#allocation2] sm:$0xff] %vm45, -inf
      %47 = vst.msk [vmem:[#allocation3] sm:$0xff] %vm45, 0.0
      %vm48 = vcmask 261120
      %49 = vst.msk [vmem:[#allocation4] sm:$0xff] %vm48, 0.0
    $region25: #{tpu_custom_call.1} parent=1 // pred_fallthru
      _
    %v50 = vld [vmem:[#allocation5] sm:$0xff]
    %v51 = vld [vmem:[#allocation5 + $0x8] sm:$0xff]
    %v52 = vld [vmem:[#allocation5 + $0x10] sm:$0xff]
    %v53 = vld [vmem:[#allocation5 + $0x18] sm:$0xff]
    %v54 = vld [vmem:[#allocation5 + $0x20] sm:$0xff]
    %v55 = vld [vmem:[#allocation5 + $0x28] sm:$0xff]
    %v56 = vld [vmem:[#allocation5 + $0x30] sm:$0xff]
    %v57 = vld [vmem:[#allocation5 + $0x38] sm:$0xff]
    %v58 = vld [vmem:[%s2] sm:$0x1]
    %v60 = vlaneseq
    %v61 = vshrl.u32 %v60, 7
    %v62 = vsub.s32 0, %v61
    %v63 = vrot.slane %v58, %v62
    %v65 = vmul.f32 %v50, %v63
    %v66 = vmul.f32 %v51, %v63
    %v67 = vmul.f32 %v52, %v63
    %v68 = vmul.f32 %v53, %v63
    %v69 = vmul.f32 %v54, %v63
    %v70 = vmul.f32 %v55, %v63
    %v71 = vmul.f32 %v56, %v63
    %v72 = vmul.f32 %v57, %v63
    %vm73 = vcmask 261120
    %v74 = vsel %vm73, %v65, 0.0
    %75 = vadd.xlane.f32.xlu0 %v74
    %v76 = vpop.xlane.xlu0 %75
    %v77 = vsel %vm73, %v66, 0.0
    %78 = vadd.xlane.f32.xlu0 %v77
    %v79 = vpop.xlane.xlu0 %78
    %v80 = vsel %vm73, %v67, 0.0
    %81 = vadd.xlane.f32.xlu0 %v80
    %v82 = vpop.xlane.xlu0 %81
    %v83 = vsel %vm73, %v68, 0.0
    %84 = vadd.xlane.f32.xlu0 %v83
    %v85 = vpop.xlane.xlu0 %84
    %v86 = vsel %vm73, %v69, 0.0
    %87 = vadd.xlane.f32.xlu0 %v86
    %v88 = vpop.xlane.xlu0 %87
    %v89 = vsel %vm73, %v70, 0.0
    %90 = vadd.xlane.f32.xlu0 %v89
    %v91 = vpop.xlane.xlu0 %90
    %v92 = vsel %vm73, %v71, 0.0
    %93 = vadd.xlane.f32.xlu0 %v92
    %v94 = vpop.xlane.xlu0 %93
    %v95 = vsel %vm73, %v72, 0.0
    %96 = vadd.xlane.f32.xlu0 %v95
    %v97 = vpop.xlane.xlu0 %96
    %v98 = vld [vmem:[#allocation8] sm:$0xff]
    %vm99 = vcmp.eq.f32.partialorder %v98, 0.0
    %v108 = vlaneseq
    %v109 = vand.u32 %v108, 127
    %v110 = vlaneseq
    %v111 = vshrl.u32 %v110, 7
    %v112 = vsub.s32 %v109, %v111
    %v113 = vrot.slane %v76, %v112
    %v114 = vlaneseq
    %v115 = vshrl.u32 %v114, 7
    %v116 = vsub.s32 %v109, %v115
    %v117 = vrot.slane %v79, %v116
    %v118 = vlaneseq
    %v119 = vshrl.u32 %v118, 7
    %v120 = vsub.s32 %v109, %v119
    %v121 = vrot.slane %v82, %v120
    %v122 = vlaneseq
    %v123 = vshrl.u32 %v122, 7
    %v124 = vsub.s32 %v109, %v123
    %v125 = vrot.slane %v85, %v124
    %v126 = vlaneseq
    %v127 = vshrl.u32 %v126, 7
    %v128 = vsub.s32 %v109, %v127
    %v129 = vrot.slane %v88, %v128
    %v130 = vlaneseq
    %v131 = vshrl.u32 %v130, 7
    %v132 = vsub.s32 %v109, %v131
    %v133 = vrot.slane %v91, %v132
    %v134 = vlaneseq
    %v135 = vshrl.u32 %v134, 7
    %v136 = vsub.s32 %v109, %v135
    %v137 = vrot.slane %v94, %v136
    %v138 = vlaneseq
    %v139 = vshrl.u32 %v138, 7
    %v140 = vsub.s32 %v109, %v139
    %v141 = vrot.slane %v97, %v140
    %vm142 = vcmask 1041409
    %v143 = vsel %vm142, %v117, %v113
    %vm144 = vcmask 1042434
    %v145 = vsel %vm144, %v121, %v143
    %vm146 = vcmask 1043459
    %v147 = vsel %vm146, %v125, %v145
    %vm148 = vcmask 1044484
    %v149 = vsel %vm148, %v129, %v147
    %vm150 = vcmask 1045509
    %v151 = vsel %vm150, %v133, %v149
    %vm152 = vcmask 1046534
    %v153 = vsel %vm152, %v137, %v151
    %vm154 = vcmask 1047559
    %v155 = vsel %vm154, %v141, %v153
    %v157 = vsel %vm99, -1e+09, %v155
    %v158 = vld [vmem:[#allocation2] sm:$0xff]
    %vm159 = vcmask 64512
    %v160 = vsel %vm159, %v157, -inf
    %161 = vmax.xlane.f32.xlu0 %v160
    %v162 = vpop.xlane.xlu0 %161
    %v163 = vmax.f32 %v158, %v162
    %v164 = vsub.f32 %v158, %v163
    %v165 = vmul.f32 %v164, 1.442695
    %v166 = vpow.pop %v165
    %168 = vset.pattern.permute.xlu0 0
    %169 = vperm.xlu0 %168, %v163
    %v170 = vpop.permute.xlu0 %169
    %v172 = vsub.f32 %v157, %v170
    %v173 = vmul.f32 %v172, 1.442695
    %v174 = vpow.pop %v173
    %v175 = vld [vmem:[#allocation3] sm:$0xff]
    %v176 = vmul.f32 %v166, %v175
    %v177 = vsel %vm159, %v174, 0.0
    %178 = vadd.xlane.f32.xlu0 %v177
    %v179 = vpop.xlane.xlu0 %178
    %v180 = vadd.f32 %v176, %v179
    %vm181 = vcmask 7168
    %182 = vst.msk [vmem:[#allocation3] sm:$0xff] %vm181, %v180
    %v184 = vcombine.high %v174, %v174
    %v186 = vunpack.c.l.s4 1966171168
    %v187 = vunpack.c.0.s8 %v186
    %v188 = vlaneseq
    %v189 = vshrl.u32 %v188, 7
    %v190 = vsub.s32 %v187, %v189
    %v191 = vrot.slane %v174, %v190
    %v193 = vunpack.c.l.s4 1966171168
    %v194 = vunpack.c.0.s8 %v193
    %v195 = vlaneseq
    %v196 = vshrl.u32 %v195, 7
    %v197 = vsub.s32 %v194, %v196
    %v198 = vrot.slane %v184, %v197
    %v199 = vcombine.high %v191, %v191
    %v200 = vcombine.high %v198, %v198
    %v202 = vunpack.c.l.s4 1966171168
    %v203 = vunpack.c.0.s8 %v202
    %v204 = vlaneseq
    %v205 = vshrl.u32 %v204, 7
    %v206 = vsub.s32 %v203, %v205
    %v207 = vrot.slane %v191, %v206
    %v209 = vunpack.c.l.s4 1966171168
    %v210 = vunpack.c.0.s8 %v209
    %v211 = vlaneseq
    %v212 = vshrl.u32 %v211, 7
    %v213 = vsub.s32 %v210, %v212
    %v214 = vrot.slane %v198, %v213
    %v216 = vunpack.c.l.s4 1966171168
    %v217 = vunpack.c.0.s8 %v216
    %v218 = vlaneseq
    %v219 = vshrl.u32 %v218, 7
    %v220 = vsub.s32 %v217, %v219
    %v221 = vrot.slane %v199, %v220
    %v223 = vunpack.c.l.s4 1966171168
    %v224 = vunpack.c.0.s8 %v223
    %v225 = vlaneseq
    %v226 = vshrl.u32 %v225, 7
    %v227 = vsub.s32 %v224, %v226
    %v228 = vrot.slane %v200, %v227
    %v229 = vcombine.high %v207, %v207
    %v230 = vcombine.high %v214, %v214
    %v231 = vcombine.high %v221, %v221
    %v232 = vcombine.high %v228, %v228
    %v233 = vsel %vm159, %v207, 0
    %235 = vmatprep.subr.mxu0 0.0
    %236 = vmatpush1.msra.mxu0 0.0
    %237 = vmatprep.subr.mxu0 0.0
    %238 = vmatpush1.msra.mxu0 0.0
    %239 = vmatprep.subr.mxu0 0.0
    %240 = vmatpush1.msra.mxu0 0.0
    %241 = vmatprep.subr.mxu0 0.0
    %242 = vmatpush1.msra.mxu0 0.0
    %243 = vmatprep.subr.mxu0 0.0
    %244 = vmatpush1.msra.mxu0 0.0
    %245 = vmatprep.subr.mxu0 0.0
    %246 = vmatpush1.msra.mxu0 0.0
    %247 = vmatprep.subr.mxu0 0.0
    %248 = vmatpush1.msra.mxu0 0.0
    %249 = vmatprep.subr.mxu0 0.0
    %250 = vmatpush1.msra.mxu0 0.0
    %251 = vmatprep.subr.mxu0 0.0
    %252 = vmatpush1.msra.mxu0 0.0
    %253 = vmatprep.subr.mxu0 0.0
    %254 = vmatpush1.msra.mxu0 0.0
    %255 = vmatprep.subr.mxu0 0.0
    %256 = vmatpush1.msra.mxu0 0.0
    %257 = vmatprep.subr.mxu0 0.0
    %258 = vmatpush1.msra.mxu0 0.0
    %259 = vmatprep.subr.mxu0 0.0
    %260 = vmatpush1.msra.mxu0 0.0
    %261 = vmatprep.subr.mxu0 0.0
    %262 = vmatpush1.msra.mxu0 0.0
    %263 = vmatprep.subr.mxu0 0.0
    %264 = vmatpush1.msra.mxu0 0.0
    %265 = vmatprep.subr.mxu0 0.0
    %v266 = vand.u32 %v50, 4294901760
    %267 = vmatpush1.msra.mxu0 %v266
    %268 = vmatprep.subr.mxu0 0.0
    %269 = vmatpush2.msra.mxu0 0.0
    %270 = vmatprep.subr.mxu0 0.0
    %271 = vmatpush2.msra.mxu0 0.0
    %272 = vmatprep.subr.mxu0 0.0
    %273 = vmatpush2.msra.mxu0 0.0
    %274 = vmatprep.subr.mxu0 0.0
    %275 = vmatpush2.msra.mxu0 0.0
    %276 = vmatprep.subr.mxu0 0.0
    %277 = vmatpush2.msra.mxu0 0.0
    %278 = vmatprep.subr.mxu0 0.0
    %279 = vmatpush2.msra.mxu0 0.0
    %280 = vmatprep.subr.mxu0 0.0
    %281 = vmatpush2.msra.mxu0 0.0
    %282 = vmatprep.subr.mxu0 0.0
    %283 = vmatpush2.msra.mxu0 0.0
    %284 = vmatprep.subr.mxu0 0.0
    %285 = vmatpush2.msra.mxu0 0.0
    %286 = vmatprep.subr.mxu0 0.0
    %287 = vmatpush2.msra.mxu0 0.0
    %288 = vmatprep.subr.mxu0 0.0
    %289 = vmatpush2.msra.mxu0 0.0
    %290 = vmatprep.subr.mxu0 0.0
    %291 = vmatpush2.msra.mxu0 0.0
    %292 = vmatprep.subr.mxu0 0.0
    %293 = vmatpush2.msra.mxu0 0.0
    %294 = vmatprep.subr.mxu0 0.0
    %295 = vmatpush2.msra.mxu0 0.0
    %296 = vmatprep.subr.mxu0 0.0
    %297 = vmatpush2.msra.mxu0 0.0
    %298 = vmatprep.subr.mxu0 0.0
    %299 = vmatpush2.msra.mxu0 0.0
    %300 = vmatprep.mubr.f32.mxu0 0.0
    %v301 = vand.u32 %v233, 4294901760
    %v302 = vsub.f32 %v233, %v301
    %v303 = vand.u32 %v302, 4294901760
    %v304 = vsub.f32 %v302, %v303
    %v305 = vand.u32 %v304, 4294901760
    %306 = vmatmul.mubr.f32.gmra.mxu0 %v305
    %v307 = vpop.f32.mrf.mxu0
    %v308 = vadd.f32 0.0, %v307
    %v309 = vpop.f32.mrf.mxu0
    %310 = vdwg.mxu0
    %311 = vmatprep.subr.mxu0 0.0
    %312 = vmatpush1.msra.mxu0 0.0
    %313 = vmatprep.subr.mxu0 0.0
    %314 = vmatpush1.msra.mxu0 0.0
    %315 = vmatprep.subr.mxu0 0.0
    %316 = vmatpush1.msra.mxu0 0.0
    %317 = vmatprep.subr.mxu0 0.0
    %318 = vmatpush1.msra.mxu0 0.0
    %319 = vmatprep.subr.mxu0 0.0
    %320 = vmatpush1.msra.mxu0 0.0
    %321 = vmatprep.subr.mxu0 0.0
    %322 = vmatpush1.msra.mxu0 0.0
    %323 = vmatprep.subr.mxu0 0.0
    %324 = vmatpush1.msra.mxu0 0.0
    %325 = vmatprep.subr.mxu0 0.0
    %326 = vmatpush1.msra.mxu0 0.0
    %327 = vmatprep.subr.mxu0 0.0
    %328 = vmatpush1.msra.mxu0 0.0
    %329 = vmatprep.subr.mxu0 0.0
    %330 = vmatpush1.msra.mxu0 0.0
    %331 = vmatprep.subr.mxu0 0.0
    %332 = vmatpush1.msra.mxu0 0.0
    %333 = vmatprep.subr.mxu0 0.0
    %334 = vmatpush1.msra.mxu0 0.0
    %335 = vmatprep.subr.mxu0 0.0
    %336 = vmatpush1.msra.mxu0 0.0
    %337 = vmatprep.subr.mxu0 0.0
    %338 = vmatpush1.msra.mxu0 0.0
    %339 = vmatprep.subr.mxu0 0.0
    %340 = vmatpush1.msra.mxu0 0.0
    %341 = vmatprep.subr.mxu0 0.0
    %v342 = vand.u32 %v50, 4294901760
    %v343 = vsub.f32 %v50, %v342
    %v344 = vand.u32 %v343, 4294901760
    %v345 = vsub.f32 %v343, %v344
    %v346 = vand.u32 %v345, 4294901760
    %347 = vmatpush1.msra.mxu0 %v346
    %348 = vmatprep.subr.mxu0 0.0
    %349 = vmatpush2.msra.mxu0 0.0
    %350 = vmatprep.subr.mxu0 0.0
    %351 = vmatpush2.msra.mxu0 0.0
    %352 = vmatprep.subr.mxu0 0.0
    %353 = vmatpush2.msra.mxu0 0.0
    %354 = vmatprep.subr.mxu0 0.0
    %355 = vmatpush2.msra.mxu0 0.0
    %356 = vmatprep.subr.mxu0 0.0
    %357 = vmatpush2.msra.mxu0 0.0
    %358 = vmatprep.subr.mxu0 0.0
    %359 = vmatpush2.msra.mxu0 0.0
    %360 = vmatprep.subr.mxu0 0.0
    %361 = vmatpush2.msra.mxu0 0.0
    %362 = vmatprep.subr.mxu0 0.0
    %363 = vmatpush2.msra.mxu0 0.0
    %364 = vmatprep.subr.mxu0 0.0
    %365 = vmatpush2.msra.mxu0 0.0
    %366 = vmatprep.subr.mxu0 0.0
    %367 = vmatpush2.msra.mxu0 0.0
    %368 = vmatprep.subr.mxu0 0.0
    %369 = vmatpush2.msra.mxu0 0.0
    %370 = vmatprep.subr.mxu0 0.0
    %371 = vmatpush2.msra.mxu0 0.0
    %372 = vmatprep.subr.mxu0 0.0
    %373 = vmatpush2.msra.mxu0 0.0
    %374 = vmatprep.subr.mxu0 0.0
    %375 = vmatpush2.msra.mxu0 0.0
    %376 = vmatprep.subr.mxu0 0.0
    %377 = vmatpush2.msra.mxu0 0.0
    %378 = vmatprep.subr.mxu0 0.0
    %379 = vmatpush2.msra.mxu0 0.0
    %380 = vmatprep.mubr.f32.mxu0 0.0
    %v381 = vand.u32 %v233, 4294901760
    %382 = vmatmul.mubr.f32.gmra.mxu0 %v381
    %v383 = vpop.f32.mrf.mxu0
    %v384 = vadd.f32 %v308, %v383
    %v385 = vpop.f32.mrf.mxu0
    %386 = vdwg.mxu0
    %387 = vmatprep.subr.mxu0 0.0
    %388 = vmatpush1.msra.mxu0 0.0
    %389 = vmatprep.subr.mxu0 0.0
    %390 = vmatpush1.msra.mxu0 0.0
    %391 = vmatprep.subr.mxu0 0.0
    %392 = vmatpush1.msra.mxu0 0.0
    %393 = vmatprep.subr.mxu0 0.0
    %394 = vmatpush1.msra.mxu0 0.0
    %395 = vmatprep.subr.mxu0 0.0
    %396 = vmatpush1.msra.mxu0 0.0
    %397 = vmatprep.subr.mxu0 0.0
    %398 = vmatpush1.msra.mxu0 0.0
    %399 = vmatprep.subr.mxu0 0.0
    %400 = vmatpush1.msra.mxu0 0.0
    %401 = vmatprep.subr.mxu0 0.0
    %402 = vmatpush1.msra.mxu0 0.0
    %403 = vmatprep.subr.mxu0 0.0
    %404 = vmatpush1.msra.mxu0 0.0
    %405 = vmatprep.subr.mxu0 0.0
    %406 = vmatpush1.msra.mxu0 0.0
    %407 = vmatprep.subr.mxu0 0.0
    %408 = vmatpush1.msra.mxu0 0.0
    %409 = vmatprep.subr.mxu0 0.0
    %410 = vmatpush1.msra.mxu0 0.0
    %411 = vmatprep.subr.mxu0 0.0
    %412 = vmatpush1.msra.mxu0 0.0
    %413 = vmatprep.subr.mxu0 0.0
    %414 = vmatpush1.msra.mxu0 0.0
    %415 = vmatprep.subr.mxu0 0.0
    %416 = vmatpush1.msra.mxu0 0.0
    %417 = vmatprep.subr.mxu0 0.0
    %v418 = vand.u32 %v50, 4294901760
    %v419 = vsub.f32 %v50, %v418
    %420 = vmatpush1.msra.mxu0 %v419
    %421 = vmatprep.subr.mxu0 0.0
    %422 = vmatpush2.msra.mxu0 0.0
    %423 = vmatprep.subr.mxu0 0.0
    %424 = vmatpush2.msra.mxu0 0.0
    %425 = vmatprep.subr.mxu0 0.0
    %426 = vmatpush2.msra.mxu0 0.0
    %427 = vmatprep.subr.mxu0 0.0
    %428 = vmatpush2.msra.mxu0 0.0
    %429 = vmatprep.subr.mxu0 0.0
    %430 = vmatpush2.msra.mxu0 0.0
    %431 = vmatprep.subr.mxu0 0.0
    %432 = vmatpush2.msra.mxu0 0.0
    %433 = vmatprep.subr.mxu0 0.0
    %434 = vmatpush2.msra.mxu0 0.0
    %435 = vmatprep.subr.mxu0 0.0
    %436 = vmatpush2.msra.mxu0 0.0
    %437 = vmatprep.subr.mxu0 0.0
    %438 = vmatpush2.msra.mxu0 0.0
    %439 = vmatprep.subr.mxu0 0.0
    %440 = vmatpush2.msra.mxu0 0.0
    %441 = vmatprep.subr.mxu0 0.0
    %442 = vmatpush2.msra.mxu0 0.0
    %443 = vmatprep.subr.mxu0 0.0
    %444 = vmatpush2.msra.mxu0 0.0
    %445 = vmatprep.subr.mxu0 0.0
    %446 = vmatpush2.msra.mxu0 0.0
    %447 = vmatprep.subr.mxu0 0.0
    %448 = vmatpush2.msra.mxu0 0.0
    %449 = vmatprep.subr.mxu0 0.0
    %450 = vmatpush2.msra.mxu0 0.0
    %451 = vmatprep.subr.mxu0 0.0
    %452 = vmatpush2.msra.mxu0 0.0
    %453 = vmatprep.mubr.f32.mxu0 0.0
    %v454 = vand.u32 %v233, 4294901760
    %v455 = vsub.f32 %v233, %v454
    %456 = vmatmul.mubr.f32.gmra.mxu0 %v455
    %v457 = vpop.f32.mrf.mxu0
    %v458 = vadd.f32 %v384, %v457
    %v459 = vpop.f32.mrf.mxu0
    %460 = vdwg.mxu0
    %461 = vmatprep.subr.mxu0 0.0
    %462 = vmatpush1.msra.mxu0 0.0
    %463 = vmatprep.subr.mxu0 0.0
    %464 = vmatpush1.msra.mxu0 0.0
    %465 = vmatprep.subr.mxu0 0.0
    %466 = vmatpush1.msra.mxu0 0.0
    %467 = vmatprep.subr.mxu0 0.0
    %468 = vmatpush1.msra.mxu0 0.0
    %469 = vmatprep.subr.mxu0 0.0
    %470 = vmatpush1.msra.mxu0 0.0
    %471 = vmatprep.subr.mxu0 0.0
    %472 = vmatpush1.msra.mxu0 0.0
    %473 = vmatprep.subr.mxu0 0.0
    %474 = vmatpush1.msra.mxu0 0.0
    %475 = vmatprep.subr.mxu0 0.0
    %476 = vmatpush1.msra.mxu0 0.0
    %477 = vmatprep.subr.mxu0 0.0
    %478 = vmatpush1.msra.mxu0 0.0
    %479 = vmatprep.subr.mxu0 0.0
    %480 = vmatpush1.msra.mxu0 0.0
    %481 = vmatprep.subr.mxu0 0.0
    %482 = vmatpush1.msra.mxu0 0.0
    %483 = vmatprep.subr.mxu0 0.0
    %484 = vmatpush1.msra.mxu0 0.0
    %485 = vmatprep.subr.mxu0 0.0
    %486 = vmatpush1.msra.mxu0 0.0
    %487 = vmatprep.subr.mxu0 0.0
    %488 = vmatpush1.msra.mxu0 0.0
    %489 = vmatprep.subr.mxu0 0.0
    %490 = vmatpush1.msra.mxu0 0.0
    %491 = vmatprep.subr.mxu0 0.0
    %v492 = vand.u32 %v50, 4294901760
    %493 = vmatpush1.msra.mxu0 %v492
    %494 = vmatprep.subr.mxu0 0.0
    %495 = vmatpush2.msra.mxu0 0.0
    %496 = vmatprep.subr.mxu0 0.0
    %497 = vmatpush2.msra.mxu0 0.0
    %498 = vmatprep.subr.mxu0 0.0
    %499 = vmatpush2.msra.mxu0 0.0
    %500 = vmatprep.subr.mxu0 0.0
    %501 = vmatpush2.msra.mxu0 0.0
    %502 = vmatprep.subr.mxu0 0.0
    %503 = vmatpush2.msra.mxu0 0.0
    %504 = vmatprep.subr.mxu0 0.0
    %505 = vmatpush2.msra.mxu0 0.0
    %506 = vmatprep.subr.mxu0 0.0
    %507 = vmatpush2.msra.mxu0 0.0
    %508 = vmatprep.subr.mxu0 0.0
    %509 = vmatpush2.msra.mxu0 0.0
    %510 = vmatprep.subr.mxu0 0.0
    %511 = vmatpush2.msra.mxu0 0.0
    %512 = vmatprep.subr.mxu0 0.0
    %513 = vmatpush2.msra.mxu0 0.0
    %514 = vmatprep.subr.mxu0 0.0
    %515 = vmatpush2.msra.mxu0 0.0
    %516 = vmatprep.subr.mxu0 0.0
    %517 = vmatpush2.msra.mxu0 0.0
    %518 = vmatprep.subr.mxu0 0.0
    %519 = vmatpush2.msra.mxu0 0.0
    %520 = vmatprep.subr.mxu0 0.0
    %521 = vmatpush2.msra.mxu0 0.0
    %522 = vmatprep.subr.mxu0 0.0
    %523 = vmatpush2.msra.mxu0 0.0
    %524 = vmatprep.subr.mxu0 0.0
    %525 = vmatpush2.msra.mxu0 0.0
    %526 = vmatprep.mubr.f32.mxu0 0.0
    %v527 = vand.u32 %v233, 4294901760
    %v528 = vsub.f32 %v233, %v527
    %v529 = vand.u32 %v528, 4294901760
    %530 = vmatmul.mubr.f32.gmra.mxu0 %v529
    %v531 = vpop.f32.mrf.mxu0
    %v532 = vadd.f32 %v458, %v531
    %v533 = vpop.f32.mrf.mxu0
    %534 = vdwg.mxu0
    %535 = vmatprep.subr.mxu0 0.0
    %536 = vmatpush1.msra.mxu0 0.0
    %537 = vmatprep.subr.mxu0 0.0
    %538 = vmatpush1.msra.mxu0 0.0
    %539 = vmatprep.subr.mxu0 0.0
    %540 = vmatpush1.msra.mxu0 0.0
    %541 = vmatprep.subr.mxu0 0.0
    %542 = vmatpush1.msra.mxu0 0.0
    %543 = vmatprep.subr.mxu0 0.0
    %544 = vmatpush1.msra.mxu0 0.0
    %545 = vmatprep.subr.mxu0 0.0
    %546 = vmatpush1.msra.mxu0 0.0
    %547 = vmatprep.subr.mxu0 0.0
    %548 = vmatpush1.msra.mxu0 0.0
    %549 = vmatprep.subr.mxu0 0.0
    %550 = vmatpush1.msra.mxu0 0.0
    %551 = vmatprep.subr.mxu0 0.0
    %552 = vmatpush1.msra.mxu0 0.0
    %553 = vmatprep.subr.mxu0 0.0
    %554 = vmatpush1.msra.mxu0 0.0
    %555 = vmatprep.subr.mxu0 0.0
    %556 = vmatpush1.msra.mxu0 0.0
    %557 = vmatprep.subr.mxu0 0.0
    %558 = vmatpush1.msra.mxu0 0.0
    %559 = vmatprep.subr.mxu0 0.0
    %560 = vmatpush1.msra.mxu0 0.0
    %561 = vmatprep.subr.mxu0 0.0
    %562 = vmatpush1.msra.mxu0 0.0
    %563 = vmatprep.subr.mxu0 0.0
    %564 = vmatpush1.msra.mxu0 0.0
    %565 = vmatprep.subr.mxu0 0.0
    %v566 = vand.u32 %v50, 4294901760
    %v567 = vsub.f32 %v50, %v566
    %v568 = vand.u32 %v567, 4294901760
    %569 = vmatpush1.msra.mxu0 %v568
    %570 = vmatprep.subr.mxu0 0.0
    %571 = vmatpush2.msra.mxu0 0.0
    %572 = vmatprep.subr.mxu0 0.0
    %573 = vmatpush2.msra.mxu0 0.0
    %574 = vmatprep.subr.mxu0 0.0
    %575 = vmatpush2.msra.mxu0 0.0
    %576 = vmatprep.subr.mxu0 0.0
    %577 = vmatpush2.msra.mxu0 0.0
    %578 = vmatprep.subr.mxu0 0.0
    %579 = vmatpush2.msra.mxu0 0.0
    %580 = vmatprep.subr.mxu0 0.0
    %581 = vmatpush2.msra.mxu0 0.0
    %582 = vmatprep.subr.mxu0 0.0
    %583 = vmatpush2.msra.mxu0 0.0
    %584 = vmatprep.subr.mxu0 0.0
    %585 = vmatpush2.msra.mxu0 0.0
    %586 = vmatprep.subr.mxu0 0.0
    %587 = vmatpush2.msra.mxu0 0.0
    %588 = vmatprep.subr.mxu0 0.0
    %589 = vmatpush2.msra.mxu0 0.0
    %590 = vmatprep.subr.mxu0 0.0
    %591 = vmatpush2.msra.mxu0 0.0
    %592 = vmatprep.subr.mxu0 0.0
    %593 = vmatpush2.msra.mxu0 0.0
    %594 = vmatprep.subr.mxu0 0.0
    %595 = vmatpush2.msra.mxu0 0.0
    %596 = vmatprep.subr.mxu0 0.0
    %597 = vmatpush2.msra.mxu0 0.0
    %598 = vmatprep.subr.mxu0 0.0
    %599 = vmatpush2.msra.mxu0 0.0
    %600 = vmatprep.subr.mxu0 0.0
    %601 = vmatpush2.msra.mxu0 0.0
    %602 = vmatprep.mubr.f32.mxu0 0.0
    %v603 = vand.u32 %v233, 4294901760
    %604 = vmatmul.mubr.f32.gmra.mxu0 %v603
    %v605 = vpop.f32.mrf.mxu0
    %v606 = vadd.f32 %v532, %v605
    %v607 = vpop.f32.mrf.mxu0
    %608 = vdwg.mxu0
    %609 = vmatprep.subr.mxu0 0.0
    %610 = vmatpush1.msra.mxu0 0.0
    %611 = vmatprep.subr.mxu0 0.0
    %612 = vmatpush1.msra.mxu0 0.0
    %613 = vmatprep.subr.mxu0 0.0
    %614 = vmatpush1.msra.mxu0 0.0
    %615 = vmatprep.subr.mxu0 0.0
    %616 = vmatpush1.msra.mxu0 0.0
    %617 = vmatprep.subr.mxu0 0.0
    %618 = vmatpush1.msra.mxu0 0.0
    %619 = vmatprep.subr.mxu0 0.0
    %620 = vmatpush1.msra.mxu0 0.0
    %621 = vmatprep.subr.mxu0 0.0
    %622 = vmatpush1.msra.mxu0 0.0
    %623 = vmatprep.subr.mxu0 0.0
    %624 = vmatpush1.msra.mxu0 0.0
    %625 = vmatprep.subr.mxu0 0.0
    %626 = vmatpush1.msra.mxu0 0.0
    %627 = vmatprep.subr.mxu0 0.0
    %628 = vmatpush1.msra.mxu0 0.0
    %629 = vmatprep.subr.mxu0 0.0
    %630 = vmatpush1.msra.mxu0 0.0
    %631 = vmatprep.subr.mxu0 0.0
    %632 = vmatpush1.msra.mxu0 0.0
    %633 = vmatprep.subr.mxu0 0.0
    %634 = vmatpush1.msra.mxu0 0.0
    %635 = vmatprep.subr.mxu0 0.0
    %636 = vmatpush1.msra.mxu0 0.0
    %637 = vmatprep.subr.mxu0 0.0
    %638 = vmatpush1.msra.mxu0 0.0
    %639 = vmatprep.subr.mxu0 0.0
    %v640 = vand.u32 %v50, 4294901760
    %641 = vmatpush1.msra.mxu0 %v640
    %642 = vmatprep.subr.mxu0 0.0
    %643 = vmatpush2.msra.mxu0 0.0
    %644 = vmatprep.subr.mxu0 0.0
    %645 = vmatpush2.msra.mxu0 0.0
    %646 = vmatprep.subr.mxu0 0.0
    %647 = vmatpush2.msra.mxu0 0.0
    %648 = vmatprep.subr.mxu0 0.0
    %649 = vmatpush2.msra.mxu0 0.0
    %650 = vmatprep.subr.mxu0 0.0
    %651 = vmatpush2.msra.mxu0 0.0
    %652 = vmatprep.subr.mxu0 0.0
    %653 = vmatpush2.msra.mxu0 0.0
    %654 = vmatprep.subr.mxu0 0.0
    %655 = vmatpush2.msra.mxu0 0.0
    %656 = vmatprep.subr.mxu0 0.0
    %657 = vmatpush2.msra.mxu0 0.0
    %658 = vmatprep.subr.mxu0 0.0
    %659 = vmatpush2.msra.mxu0 0.0
    %660 = vmatprep.subr.mxu0 0.0
    %661 = vmatpush2.msra.mxu0 0.0
    %662 = vmatprep.subr.mxu0 0.0
    %663 = vmatpush2.msra.mxu0 0.0
    %664 = vmatprep.subr.mxu0 0.0
    %665 = vmatpush2.msra.mxu0 0.0
    %666 = vmatprep.subr.mxu0 0.0
    %667 = vmatpush2.msra.mxu0 0.0
    %668 = vmatprep.subr.mxu0 0.0
    %669 = vmatpush2.msra.mxu0 0.0
    %670 = vmatprep.subr.mxu0 0.0
    %671 = vmatpush2.msra.mxu0 0.0
    %672 = vmatprep.subr.mxu0 0.0
    %673 = vmatpush2.msra.mxu0 0.0
    %674 = vmatprep.mubr.f32.mxu0 0.0
    %v675 = vand.u32 %v233, 4294901760
    %676 = vmatmul.mubr.f32.gmra.mxu0 %v675
    %v677 = vpop.f32.mrf.mxu0
    %v678 = vadd.f32 %v606, %v677
    %v679 = vpop.f32.mrf.mxu0
    %680 = vdwg.mxu0
    %v681 = vsel %vm159, %v221, 0
    %683 = vmatprep.subr.mxu0 0.0
    %684 = vmatpush1.msra.mxu0 0.0
    %685 = vmatprep.subr.mxu0 0.0
    %686 = vmatpush1.msra.mxu0 0.0
    %687 = vmatprep.subr.mxu0 0.0
    %688 = vmatpush1.msra.mxu0 0.0
    %689 = vmatprep.subr.mxu0 0.0
    %690 = vmatpush1.msra.mxu0 0.0
    %691 = vmatprep.subr.mxu0 0.0
    %692 = vmatpush1.msra.mxu0 0.0
    %693 = vmatprep.subr.mxu0 0.0
    %694 = vmatpush1.msra.mxu0 0.0
    %695 = vmatprep.subr.mxu0 0.0
    %696 = vmatpush1.msra.mxu0 0.0
    %697 = vmatprep.subr.mxu0 0.0
    %698 = vmatpush1.msra.mxu0 0.0
    %699 = vmatprep.subr.mxu0 0.0
    %700 = vmatpush1.msra.mxu0 0.0
    %701 = vmatprep.subr.mxu0 0.0
    %702 = vmatpush1.msra.mxu0 0.0
    %703 = vmatprep.subr.mxu0 0.0
    %704 = vmatpush1.msra.mxu0 0.0
    %705 = vmatprep.subr.mxu0 0.0
    %706 = vmatpush1.msra.mxu0 0.0
    %707 = vmatprep.subr.mxu0 0.0
    %708 = vmatpush1.msra.mxu0 0.0
    %709 = vmatprep.subr.mxu0 0.0
    %710 = vmatpush1.msra.mxu0 0.0
    %711 = vmatprep.subr.mxu0 0.0
    %712 = vmatpush1.msra.mxu0 0.0
    %713 = vmatprep.subr.mxu0 0.0
    %v714 = vand.u32 %v51, 4294901760
    %715 = vmatpush1.msra.mxu0 %v714
    %716 = vmatprep.subr.mxu0 0.0
    %717 = vmatpush2.msra.mxu0 0.0
    %718 = vmatprep.subr.mxu0 0.0
    %719 = vmatpush2.msra.mxu0 0.0
    %720 = vmatprep.subr.mxu0 0.0
    %721 = vmatpush2.msra.mxu0 0.0
    %722 = vmatprep.subr.mxu0 0.0
    %723 = vmatpush2.msra.mxu0 0.0
    %724 = vmatprep.subr.mxu0 0.0
    %725 = vmatpush2.msra.mxu0 0.0
    %726 = vmatprep.subr.mxu0 0.0
    %727 = vmatpush2.msra.mxu0 0.0
    %728 = vmatprep.subr.mxu0 0.0
    %729 = vmatpush2.msra.mxu0 0.0
    %730 = vmatprep.subr.mxu0 0.0
    %731 = vmatpush2.msra.mxu0 0.0
    %732 = vmatprep.subr.mxu0 0.0
    %733 = vmatpush2.msra.mxu0 0.0
    %734 = vmatprep.subr.mxu0 0.0
    %735 = vmatpush2.msra.mxu0 0.0
    %736 = vmatprep.subr.mxu0 0.0
    %737 = vmatpush2.msra.mxu0 0.0
    %738 = vmatprep.subr.mxu0 0.0
    %739 = vmatpush2.msra.mxu0 0.0
    %740 = vmatprep.subr.mxu0 0.0
    %741 = vmatpush2.msra.mxu0 0.0
    %742 = vmatprep.subr.mxu0 0.0
    %743 = vmatpush2.msra.mxu0 0.0
    %744 = vmatprep.subr.mxu0 0.0
    %745 = vmatpush2.msra.mxu0 0.0
    %746 = vmatprep.subr.mxu0 0.0
    %747 = vmatpush2.msra.mxu0 0.0
    %748 = vmatprep.mubr.f32.mxu0 0.0
    %v749 = vand.u32 %v681, 4294901760
    %v750 = vsub.f32 %v681, %v749
    %v751 = vand.u32 %v750, 4294901760
    %v752 = vsub.f32 %v750, %v751
    %v753 = vand.u32 %v752, 4294901760
    %754 = vmatmul.mubr.f32.gmra.mxu0 %v753
    %v755 = vpop.f32.mrf.mxu0
    %v756 = vadd.f32 0.0, %v755
    %v757 = vpop.f32.mrf.mxu0
    %758 = vdwg.mxu0
    %759 = vmatprep.subr.mxu0 0.0
    %760 = vmatpush1.msra.mxu0 0.0
    %761 = vmatprep.subr.mxu0 0.0
    %762 = vmatpush1.msra.mxu0 0.0
    %763 = vmatprep.subr.mxu0 0.0
    %764 = vmatpush1.msra.mxu0 0.0
    %765 = vmatprep.subr.mxu0 0.0
    %766 = vmatpush1.msra.mxu0 0.0
    %767 = vmatprep.subr.mxu0 0.0
    %768 = vmatpush1.msra.mxu0 0.0
    %769 = vmatprep.subr.mxu0 0.0
    %770 = vmatpush1.msra.mxu0 0.0
    %771 = vmatprep.subr.mxu0 0.0
    %772 = vmatpush1.msra.mxu0 0.0
    %773 = vmatprep.subr.mxu0 0.0
    %774 = vmatpush1.msra.mxu0 0.0
    %775 = vmatprep.subr.mxu0 0.0
    %776 = vmatpush1.msra.mxu0 0.0
    %777 = vmatprep.subr.mxu0 0.0
    %778 = vmatpush1.msra.mxu0 0.0
    %779 = vmatprep.subr.mxu0 0.0
    %780 = vmatpush1.msra.mxu0 0.0
    %781 = vmatprep.subr.mxu0 0.0
    %782 = vmatpush1.msra.mxu0 0.0
    %783 = vmatprep.subr.mxu0 0.0
    %784 = vmatpush1.msra.mxu0 0.0
    %785 = vmatprep.subr.mxu0 0.0
    %786 = vmatpush1.msra.mxu0 0.0
    %787 = vmatprep.subr.mxu0 0.0
    %788 = vmatpush1.msra.mxu0 0.0
    %789 = vmatprep.subr.mxu0 0.0
    %v790 = vand.u32 %v51, 4294901760
    %v791 = vsub.f32 %v51, %v790
    %v792 = vand.u32 %v791, 4294901760
    %v793 = vsub.f32 %v791, %v792
    %v794 = vand.u32 %v793, 4294901760
    %795 = vmatpush1.msra.mxu0 %v794
    %796 = vmatprep.subr.mxu0 0.0
    %797 = vmatpush2.msra.mxu0 0.0
    %798 = vmatprep.subr.mxu0 0.0
    %799 = vmatpush2.msra.mxu0 0.0
    %800 = vmatprep.subr.mxu0 0.0
    %801 = vmatpush2.msra.mxu0 0.0
    %802 = vmatprep.subr.mxu0 0.0
    %803 = vmatpush2.msra.mxu0 0.0
    %804 = vmatprep.subr.mxu0 0.0
    %805 = vmatpush2.msra.mxu0 0.0
    %806 = vmatprep.subr.mxu0 0.0
    %807 = vmatpush2.msra.mxu0 0.0
    %808 = vmatprep.subr.mxu0 0.0
    %809 = vmatpush2.msra.mxu0 0.0
    %810 = vmatprep.subr.mxu0 0.0
    %811 = vmatpush2.msra.mxu0 0.0
    %812 = vmatprep.subr.mxu0 0.0
    %813 = vmatpush2.msra.mxu0 0.0
    %814 = vmatprep.subr.mxu0 0.0
    %815 = vmatpush2.msra.mxu0 0.0
    %816 = vmatprep.subr.mxu0 0.0
    %817 = vmatpush2.msra.mxu0 0.0
    %818 = vmatprep.subr.mxu0 0.0
    %819 = vmatpush2.msra.mxu0 0.0
    %820 = vmatprep.subr.mxu0 0.0
    %821 = vmatpush2.msra.mxu0 0.0
    %822 = vmatprep.subr.mxu0 0.0
    %823 = vmatpush2.msra.mxu0 0.0
    %824 = vmatprep.subr.mxu0 0.0
    %825 = vmatpush2.msra.mxu0 0.0
    %826 = vmatprep.subr.mxu0 0.0
    %827 = vmatpush2.msra.mxu0 0.0
    %828 = vmatprep.mubr.f32.mxu0 0.0
    %v829 = vand.u32 %v681, 4294901760
    %830 = vmatmul.mubr.f32.gmra.mxu0 %v829
    %v831 = vpop.f32.mrf.mxu0
    %v832 = vadd.f32 %v756, %v831
    %v833 = vpop.f32.mrf.mxu0
    %834 = vdwg.mxu0
    %835 = vmatprep.subr.mxu0 0.0
    %836 = vmatpush1.msra.mxu0 0.0
    %837 = vmatprep.subr.mxu0 0.0
    %838 = vmatpush1.msra.mxu0 0.0
    %839 = vmatprep.subr.mxu0 0.0
    %840 = vmatpush1.msra.mxu0 0.0
    %841 = vmatprep.subr.mxu0 0.0
    %842 = vmatpush1.msra.mxu0 0.0
    %843 = vmatprep.subr.mxu0 0.0
    %844 = vmatpush1.msra.mxu0 0.0
    %845 = vmatprep.subr.mxu0 0.0
    %846 = vmatpush1.msra.mxu0 0.0
    %847 = vmatprep.subr.mxu0 0.0
    %848 = vmatpush1.msra.mxu0 0.0
    %849 = vmatprep.subr.mxu0 0.0
    %850 = vmatpush1.msra.mxu0 0.0
    %851 = vmatprep.subr.mxu0 0.0
    %852 = vmatpush1.msra.mxu0 0.0
    %853 = vmatprep.subr.mxu0 0.0
    %854 = vmatpush1.msra.mxu0 0.0
    %855 = vmatprep.subr.mxu0 0.0
    %856 = vmatpush1.msra.mxu0 0.0
    %857 = vmatprep.subr.mxu0 0.0
    %858 = vmatpush1.msra.mxu0 0.0
    %859 = vmatprep.subr.mxu0 0.0
    %860 = vmatpush1.msra.mxu0 0.0
    %861 = vmatprep.subr.mxu0 0.0
    %862 = vmatpush1.msra.mxu0 0.0
    %863 = vmatprep.subr.mxu0 0.0
    %864 = vmatpush1.msra.mxu0 0.0
    %865 = vmatprep.subr.mxu0 0.0
    %v866 = vand.u32 %v51, 4294901760
    %v867 = vsub.f32 %v51, %v866
    %868 = vmatpush1.msra.mxu0 %v867
    %869 = vmatprep.subr.mxu0 0.0
    %870 = vmatpush2.msra.mxu0 0.0
    %871 = vmatprep.subr.mxu0 0.0
    %872 = vmatpush2.msra.mxu0 0.0
    %873 = vmatprep.subr.mxu0 0.0
    %874 = vmatpush2.msra.mxu0 0.0
    %875 = vmatprep.subr.mxu0 0.0
    %876 = vmatpush2.msra.mxu0 0.0
    %877 = vmatprep.subr.mxu0 0.0
    %878 = vmatpush2.msra.mxu0 0.0
    %879 = vmatprep.subr.mxu0 0.0
    %880 = vmatpush2.msra.mxu0 0.0
    %881 = vmatprep.subr.mxu0 0.0
    %882 = vmatpush2.msra.mxu0 0.0
    %883 = vmatprep.subr.mxu0 0.0
    %884 = vmatpush2.msra.mxu0 0.0
    %885 = vmatprep.subr.mxu0 0.0
    %886 = vmatpush2.msra.mxu0 0.0
    %887 = vmatprep.subr.mxu0 0.0
    %888 = vmatpush2.msra.mxu0 0.0
    %889 = vmatprep.subr.mxu0 0.0
    %890 = vmatpush2.msra.mxu0 0.0
    %891 = vmatprep.subr.mxu0 0.0
    %892 = vmatpush2.msra.mxu0 0.0
    %893 = vmatprep.subr.mxu0 0.0
    %894 = vmatpush2.msra.mxu0 0.0
    %895 = vmatprep.subr.mxu0 0.0
    %896 = vmatpush2.msra.mxu0 0.0
    %897 = vmatprep.subr.mxu0 0.0
    %898 = vmatpush2.msra.mxu0 0.0
    %899 = vmatprep.subr.mxu0 0.0
    %900 = vmatpush2.msra.mxu0 0.0
    %901 = vmatprep.mubr.f32.mxu0 0.0
    %v902 = vand.u32 %v681, 4294901760
    %v903 = vsub.f32 %v681, %v902
    %904 = vmatmul.mubr.f32.gmra.mxu0 %v903
    %v905 = vpop.f32.mrf.mxu0
    %v906 = vadd.f32 %v832, %v905
    %v907 = vpop.f32.mrf.mxu0
    %908 = vdwg.mxu0
    %909 = vmatprep.subr.mxu0 0.0
    %910 = vmatpush1.msra.mxu0 0.0
    %911 = vmatprep.subr.mxu0 0.0
    %912 = vmatpush1.msra.mxu0 0.0
    %913 = vmatprep.subr.mxu0 0.0
    %914 = vmatpush1.msra.mxu0 0.0
    %915 = vmatprep.subr.mxu0 0.0
    %916 = vmatpush1.msra.mxu0 0.0
    %917 = vmatprep.subr.mxu0 0.0
    %918 = vmatpush1.msra.mxu0 0.0
    %919 = vmatprep.subr.mxu0 0.0
    %920 = vmatpush1.msra.mxu0 0.0
    %921 = vmatprep.subr.mxu0 0.0
    %922 = vmatpush1.msra.mxu0 0.0
    %923 = vmatprep.subr.mxu0 0.0
    %924 = vmatpush1.msra.mxu0 0.0
    %925 = vmatprep.subr.mxu0 0.0
    %926 = vmatpush1.msra.mxu0 0.0
    %927 = vmatprep.subr.mxu0 0.0
    %928 = vmatpush1.msra.mxu0 0.0
    %929 = vmatprep.subr.mxu0 0.0
    %930 = vmatpush1.msra.mxu0 0.0
    %931 = vmatprep.subr.mxu0 0.0
    %932 = vmatpush1.msra.mxu0 0.0
    %933 = vmatprep.subr.mxu0 0.0
    %934 = vmatpush1.msra.mxu0 0.0
    %935 = vmatprep.subr.mxu0 0.0
    %936 = vmatpush1.msra.mxu0 0.0
    %937 = vmatprep.subr.mxu0 0.0
    %938 = vmatpush1.msra.mxu0 0.0
    %939 = vmatprep.subr.mxu0 0.0
    %v940 = vand.u32 %v51, 4294901760
    %941 = vmatpush1.msra.mxu0 %v940
    %942 = vmatprep.subr.mxu0 0.0
    %943 = vmatpush2.msra.mxu0 0.0
    %944 = vmatprep.subr.mxu0 0.0
    %945 = vmatpush2.msra.mxu0 0.0
    %946 = vmatprep.subr.mxu0 0.0
    %947 = vmatpush2.msra.mxu0 0.0
    %948 = vmatprep.subr.mxu0 0.0
    %949 = vmatpush2.msra.mxu0 0.0
    %950 = vmatprep.subr.mxu0 0.0
    %951 = vmatpush2.msra.mxu0 0.0
    %952 = vmatprep.subr.mxu0 0.0
    %953 = vmatpush2.msra.mxu0 0.0
    %954 = vmatprep.subr.mxu0 0.0
    %955 = vmatpush2.msra.mxu0 0.0
    %956 = vmatprep.subr.mxu0 0.0
    %957 = vmatpush2.msra.mxu0 0.0
    %958 = vmatprep.subr.mxu0 0.0
    %959 = vmatpush2.msra.mxu0 0.0
    %960 = vmatprep.subr.mxu0 0.0
    %961 = vmatpush2.msra.mxu0 0.0
    %962 = vmatprep.subr.mxu0 0.0
    %963 = vmatpush2.msra.mxu0 0.0
    %964 = vmatprep.subr.mxu0 0.0
    %965 = vmatpush2.msra.mxu0 0.0
    %966 = vmatprep.subr.mxu0 0.0
    %967 = vmatpush2.msra.mxu0 0.0
    %968 = vmatprep.subr.mxu0 0.0
    %969 = vmatpush2.msra.mxu0 0.0
    %970 = vmatprep.subr.mxu0 0.0
    %971 = vmatpush2.msra.mxu0 0.0
    %972 = vmatprep.subr.mxu0 0.0
    %973 = vmatpush2.msra.mxu0 0.0
    %974 = vmatprep.mubr.f32.mxu0 0.0
    %v975 = vand.u32 %v681, 4294901760
    %v976 = vsub.f32 %v681, %v975
    %v977 = vand.u32 %v976, 4294901760
    %978 = vmatmul.mubr.f32.gmra.mxu0 %v977
    %v979 = vpop.f32.mrf.mxu0
    %v980 = vadd.f32 %v906, %v979
    %v981 = vpop.f32.mrf.mxu0
    %982 = vdwg.mxu0
    %983 = vmatprep.subr.mxu0 0.0
    %984 = vmatpush1.msra.mxu0 0.0
    %985 = vmatprep.subr.mxu0 0.0
    %986 = vmatpush1.msra.mxu0 0.0
    %987 = vmatprep.subr.mxu0 0.0
    %988 = vmatpush1.msra.mxu0 0.0
    %989 = vmatprep.subr.mxu0 0.0
    %990 = vmatpush1.msra.mxu0 0.0
    %991 = vmatprep.subr.mxu0 0.0
    %992 = vmatpush1.msra.mxu0 0.0
    %993 = vmatprep.subr.mxu0 0.0
    %994 = vmatpush1.msra.mxu0 0.0
    %995 = vmatprep.subr.mxu0 0.0
    %996 = vmatpush1.msra.mxu0 0.0
    %997 = vmatprep.subr.mxu0 0.0
    %998 = vmatpush1.msra.mxu0 0.0
    %999 = vmatprep.subr.mxu0 0.0
    %1000 = vmatpush1.msra.mxu0 0.0
    %1001 = vmatprep.subr.mxu0 0.0
    %1002 = vmatpush1.msra.mxu0 0.0
    %1003 = vmatprep.subr.mxu0 0.0
    %1004 = vmatpush1.msra.mxu0 0.0
    %1005 = vmatprep.subr.mxu0 0.0
    %1006 = vmatpush1.msra.mxu0 0.0
    %1007 = vmatprep.subr.mxu0 0.0
    %1008 = vmatpush1.msra.mxu0 0.0
    %1009 = vmatprep.subr.mxu0 0.0
    %1010 = vmatpush1.msra.mxu0 0.0
    %1011 = vmatprep.subr.mxu0 0.0
    %1012 = vmatpush1.msra.mxu0 0.0
    %1013 = vmatprep.subr.mxu0 0.0
    %v1014 = vand.u32 %v51, 4294901760
    %v1015 = vsub.f32 %v51, %v1014
    %v1016 = vand.u32 %v1015, 4294901760
    %1017 = vmatpush1.msra.mxu0 %v1016
    %1018 = vmatprep.subr.mxu0 0.0
    %1019 = vmatpush2.msra.mxu0 0.0
    %1020 = vmatprep.subr.mxu0 0.0
    %1021 = vmatpush2.msra.mxu0 0.0
    %1022 = vmatprep.subr.mxu0 0.0
    %1023 = vmatpush2.msra.mxu0 0.0
    %1024 = vmatprep.subr.mxu0 0.0
    %1025 = vmatpush2.msra.mxu0 0.0
    %1026 = vmatprep.subr.mxu0 0.0
    %1027 = vmatpush2.msra.mxu0 0.0
    %1028 = vmatprep.subr.mxu0 0.0
    %1029 = vmatpush2.msra.mxu0 0.0
    %1030 = vmatprep.subr.mxu0 0.0
    %1031 = vmatpush2.msra.mxu0 0.0
    %1032 = vmatprep.subr.mxu0 0.0
    %1033 = vmatpush2.msra.mxu0 0.0
    %1034 = vmatprep.subr.mxu0 0.0
    %1035 = vmatpush2.msra.mxu0 0.0
    %1036 = vmatprep.subr.mxu0 0.0
    %1037 = vmatpush2.msra.mxu0 0.0
    %1038 = vmatprep.subr.mxu0 0.0
    %1039 = vmatpush2.msra.mxu0 0.0
    %1040 = vmatprep.subr.mxu0 0.0
    %1041 = vmatpush2.msra.mxu0 0.0
    %1042 = vmatprep.subr.mxu0 0.0
    %1043 = vmatpush2.msra.mxu0 0.0
    %1044 = vmatprep.subr.mxu0 0.0
    %1045 = vmatpush2.msra.mxu0 0.0
    %1046 = vmatprep.subr.mxu0 0.0
    %1047 = vmatpush2.msra.mxu0 0.0
    %1048 = vmatprep.subr.mxu0 0.0
    %1049 = vmatpush2.msra.mxu0 0.0
    %1050 = vmatprep.mubr.f32.mxu0 0.0
    %v1051 = vand.u32 %v681, 4294901760
    %1052 = vmatmul.mubr.f32.gmra.mxu0 %v1051
    %v1053 = vpop.f32.mrf.mxu0
    %v1054 = vadd.f32 %v980, %v1053
    %v1055 = vpop.f32.mrf.mxu0
    %1056 = vdwg.mxu0
    %1057 = vmatprep.subr.mxu0 0.0
    %1058 = vmatpush1.msra.mxu0 0.0
    %1059 = vmatprep.subr.mxu0 0.0
    %1060 = vmatpush1.msra.mxu0 0.0
    %1061 = vmatprep.subr.mxu0 0.0
    %1062 = vmatpush1.msra.mxu0 0.0
    %1063 = vmatprep.subr.mxu0 0.0
    %1064 = vmatpush1.msra.mxu0 0.0
    %1065 = vmatprep.subr.mxu0 0.0
    %1066 = vmatpush1.msra.mxu0 0.0
    %1067 = vmatprep.subr.mxu0 0.0
    %1068 = vmatpush1.msra.mxu0 0.0
    %1069 = vmatprep.subr.mxu0 0.0
    %1070 = vmatpush1.msra.mxu0 0.0
    %1071 = vmatprep.subr.mxu0 0.0
    %1072 = vmatpush1.msra.mxu0 0.0
    %1073 = vmatprep.subr.mxu0 0.0
    %1074 = vmatpush1.msra.mxu0 0.0
    %1075 = vmatprep.subr.mxu0 0.0
    %1076 = vmatpush1.msra.mxu0 0.0
    %1077 = vmatprep.subr.mxu0 0.0
    %1078 = vmatpush1.msra.mxu0 0.0
    %1079 = vmatprep.subr.mxu0 0.0
    %1080 = vmatpush1.msra.mxu0 0.0
    %1081 = vmatprep.subr.mxu0 0.0
    %1082 = vmatpush1.msra.mxu0 0.0
    %1083 = vmatprep.subr.mxu0 0.0
    %1084 = vmatpush1.msra.mxu0 0.0
    %1085 = vmatprep.subr.mxu0 0.0
    %1086 = vmatpush1.msra.mxu0 0.0
    %1087 = vmatprep.subr.mxu0 0.0
    %v1088 = vand.u32 %v51, 4294901760
    %1089 = vmatpush1.msra.mxu0 %v1088
    %1090 = vmatprep.subr.mxu0 0.0
    %1091 = vmatpush2.msra.mxu0 0.0
    %1092 = vmatprep.subr.mxu0 0.0
    %1093 = vmatpush2.msra.mxu0 0.0
    %1094 = vmatprep.subr.mxu0 0.0
    %1095 = vmatpush2.msra.mxu0 0.0
    %1096 = vmatprep.subr.mxu0 0.0
    %1097 = vmatpush2.msra.mxu0 0.0
    %1098 = vmatprep.subr.mxu0 0.0
    %1099 = vmatpush2.msra.mxu0 0.0
    %1100 = vmatprep.subr.mxu0 0.0
    %1101 = vmatpush2.msra.mxu0 0.0
    %1102 = vmatprep.subr.mxu0 0.0
    %1103 = vmatpush2.msra.mxu0 0.0
    %1104 = vmatprep.subr.mxu0 0.0
    %1105 = vmatpush2.msra.mxu0 0.0
    %1106 = vmatprep.subr.mxu0 0.0
    %1107 = vmatpush2.msra.mxu0 0.0
    %1108 = vmatprep.subr.mxu0 0.0
    %1109 = vmatpush2.msra.mxu0 0.0
    %1110 = vmatprep.subr.mxu0 0.0
    %1111 = vmatpush2.msra.mxu0 0.0
    %1112 = vmatprep.subr.mxu0 0.0
    %1113 = vmatpush2.msra.mxu0 0.0
    %1114 = vmatprep.subr.mxu0 0.0
    %1115 = vmatpush2.msra.mxu0 0.0
    %1116 = vmatprep.subr.mxu0 0.0
    %1117 = vmatpush2.msra.mxu0 0.0
    %1118 = vmatprep.subr.mxu0 0.0
    %1119 = vmatpush2.msra.mxu0 0.0
    %1120 = vmatprep.subr.mxu0 0.0
    %1121 = vmatpush2.msra.mxu0 0.0
    %1122 = vmatprep.mubr.f32.mxu0 0.0
    %v1123 = vand.u32 %v681, 4294901760
    %1124 = vmatmul.mubr.f32.gmra.mxu0 %v1123
    %v1125 = vpop.f32.mrf.mxu0
    %v1126 = vadd.f32 %v1054, %v1125
    %v1127 = vpop.f32.mrf.mxu0
    %1128 = vdwg.mxu0
    %v1129 = vsel %vm159, %v229, 0
    %1131 = vmatprep.subr.mxu0 0.0
    %1132 = vmatpush1.msra.mxu0 0.0
    %1133 = vmatprep.subr.mxu0 0.0
    %1134 = vmatpush1.msra.mxu0 0.0
    %1135 = vmatprep.subr.mxu0 0.0
    %1136 = vmatpush1.msra.mxu0 0.0
    %1137 = vmatprep.subr.mxu0 0.0
    %1138 = vmatpush1.msra.mxu0 0.0
    %1139 = vmatprep.subr.mxu0 0.0
    %1140 = vmatpush1.msra.mxu0 0.0
    %1141 = vmatprep.subr.mxu0 0.0
    %1142 = vmatpush1.msra.mxu0 0.0
    %1143 = vmatprep.subr.mxu0 0.0
    %1144 = vmatpush1.msra.mxu0 0.0
    %1145 = vmatprep.subr.mxu0 0.0
    %1146 = vmatpush1.msra.mxu0 0.0
    %1147 = vmatprep.subr.mxu0 0.0
    %1148 = vmatpush1.msra.mxu0 0.0
    %1149 = vmatprep.subr.mxu0 0.0
    %1150 = vmatpush1.msra.mxu0 0.0
    %1151 = vmatprep.subr.mxu0 0.0
    %1152 = vmatpush1.msra.mxu0 0.0
    %1153 = vmatprep.subr.mxu0 0.0
    %1154 = vmatpush1.msra.mxu0 0.0
    %1155 = vmatprep.subr.mxu0 0.0
    %1156 = vmatpush1.msra.mxu0 0.0
    %1157 = vmatprep.subr.mxu0 0.0
    %1158 = vmatpush1.msra.mxu0 0.0
    %1159 = vmatprep.subr.mxu0 0.0
    %1160 = vmatpush1.msra.mxu0 0.0
    %1161 = vmatprep.subr.mxu0 0.0
    %v1162 = vand.u32 %v52, 4294901760
    %1163 = vmatpush1.msra.mxu0 %v1162
    %1164 = vmatprep.subr.mxu0 0.0
    %1165 = vmatpush2.msra.mxu0 0.0
    %1166 = vmatprep.subr.mxu0 0.0
    %1167 = vmatpush2.msra.mxu0 0.0
    %1168 = vmatprep.subr.mxu0 0.0
    %1169 = vmatpush2.msra.mxu0 0.0
    %1170 = vmatprep.subr.mxu0 0.0
    %1171 = vmatpush2.msra.mxu0 0.0
    %1172 = vmatprep.subr.mxu0 0.0
    %1173 = vmatpush2.msra.mxu0 0.0
    %1174 = vmatprep.subr.mxu0 0.0
    %1175 = vmatpush2.msra.mxu0 0.0
    %1176 = vmatprep.subr.mxu0 0.0
    %1177 = vmatpush2.msra.mxu0 0.0
    %1178 = vmatprep.subr.mxu0 0.0
    %1179 = vmatpush2.msra.mxu0 0.0
    %1180 = vmatprep.subr.mxu0 0.0
    %1181 = vmatpush2.msra.mxu0 0.0
    %1182 = vmatprep.subr.mxu0 0.0
    %1183 = vmatpush2.msra.mxu0 0.0
    %1184 = vmatprep.subr.mxu0 0.0
    %1185 = vmatpush2.msra.mxu0 0.0
    %1186 = vmatprep.subr.mxu0 0.0
    %1187 = vmatpush2.msra.mxu0 0.0
    %1188 = vmatprep.subr.mxu0 0.0
    %1189 = vmatpush2.msra.mxu0 0.0
    %1190 = vmatprep.subr.mxu0 0.0
    %1191 = vmatpush2.msra.mxu0 0.0
    %1192 = vmatprep.subr.mxu0 0.0
    %1193 = vmatpush2.msra.mxu0 0.0
    %1194 = vmatprep.subr.mxu0 0.0
    %1195 = vmatpush2.msra.mxu0 0.0
    %1196 = vmatprep.mubr.f32.mxu0 0.0
    %v1197 = vand.u32 %v1129, 4294901760
    %v1198 = vsub.f32 %v1129, %v1197
    %v1199 = vand.u32 %v1198, 4294901760
    %v1200 = vsub.f32 %v1198, %v1199
    %v1201 = vand.u32 %v1200, 4294901760
    %1202 = vmatmul.mubr.f32.gmra.mxu0 %v1201
    %v1203 = vpop.f32.mrf.mxu0
    %v1204 = vadd.f32 0.0, %v1203
    %v1205 = vpop.f32.mrf.mxu0
    %1206 = vdwg.mxu0
    %1207 = vmatprep.subr.mxu0 0.0
    %1208 = vmatpush1.msra.mxu0 0.0
    %1209 = vmatprep.subr.mxu0 0.0
    %1210 = vmatpush1.msra.mxu0 0.0
    %1211 = vmatprep.subr.mxu0 0.0
    %1212 = vmatpush1.msra.mxu0 0.0
    %1213 = vmatprep.subr.mxu0 0.0
    %1214 = vmatpush1.msra.mxu0 0.0
    %1215 = vmatprep.subr.mxu0 0.0
    %1216 = vmatpush1.msra.mxu0 0.0
    %1217 = vmatprep.subr.mxu0 0.0
    %1218 = vmatpush1.msra.mxu0 0.0
    %1219 = vmatprep.subr.mxu0 0.0
    %1220 = vmatpush1.msra.mxu0 0.0
    %1221 = vmatprep.subr.mxu0 0.0
    %1222 = vmatpush1.msra.mxu0 0.0
    %1223 = vmatprep.subr.mxu0 0.0
    %1224 = vmatpush1.msra.mxu0 0.0
    %1225 = vmatprep.subr.mxu0 0.0
    %1226 = vmatpush1.msra.mxu0 0.0
    %1227 = vmatprep.subr.mxu0 0.0
    %1228 = vmatpush1.msra.mxu0 0.0
    %1229 = vmatprep.subr.mxu0 0.0
    %1230 = vmatpush1.msra.mxu0 0.0
    %1231 = vmatprep.subr.mxu0 0.0
    %1232 = vmatpush1.msra.mxu0 0.0
    %1233 = vmatprep.subr.mxu0 0.0
    %1234 = vmatpush1.msra.mxu0 0.0
    %1235 = vmatprep.subr.mxu0 0.0
    %1236 = vmatpush1.msra.mxu0 0.0
    %1237 = vmatprep.subr.mxu0 0.0
    %v1238 = vand.u32 %v52, 4294901760
    %v1239 = vsub.f32 %v52, %v1238
    %v1240 = vand.u32 %v1239, 4294901760
    %v1241 = vsub.f32 %v1239, %v1240
    %v1242 = vand.u32 %v1241, 4294901760
    %1243 = vmatpush1.msra.mxu0 %v1242
    %1244 = vmatprep.subr.mxu0 0.0
    %1245 = vmatpush2.msra.mxu0 0.0
    %1246 = vmatprep.subr.mxu0 0.0
    %1247 = vmatpush2.msra.mxu0 0.0
    %1248 = vmatprep.subr.mxu0 0.0
    %1249 = vmatpush2.msra.mxu0 0.0
    %1250 = vmatprep.subr.mxu0 0.0
    %1251 = vmatpush2.msra.mxu0 0.0
    %1252 = vmatprep.subr.mxu0 0.0
    %1253 = vmatpush2.msra.mxu0 0.0
    %1254 = vmatprep.subr.mxu0 0.0
    %1255 = vmatpush2.msra.mxu0 0.0
    %1256 = vmatprep.subr.mxu0 0.0
    %1257 = vmatpush2.msra.mxu0 0.0
    %1258 = vmatprep.subr.mxu0 0.0
    %1259 = vmatpush2.msra.mxu0 0.0
    %1260 = vmatprep.subr.mxu0 0.0
    %1261 = vmatpush2.msra.mxu0 0.0
    %1262 = vmatprep.subr.mxu0 0.0
    %1263 = vmatpush2.msra.mxu0 0.0
    %1264 = vmatprep.subr.mxu0 0.0
    %1265 = vmatpush2.msra.mxu0 0.0
    %1266 = vmatprep.subr.mxu0 0.0
    %1267 = vmatpush2.msra.mxu0 0.0
    %1268 = vmatprep.subr.mxu0 0.0
    %1269 = vmatpush2.msra.mxu0 0.0
    %1270 = vmatprep.subr.mxu0 0.0
    %1271 = vmatpush2.msra.mxu0 0.0
    %1272 = vmatprep.subr.mxu0 0.0
    %1273 = vmatpush2.msra.mxu0 0.0
    %1274 = vmatprep.subr.mxu0 0.0
    %1275 = vmatpush2.msra.mxu0 0.0
    %1276 = vmatprep.mubr.f32.mxu0 0.0
    %v1277 = vand.u32 %v1129, 4294901760
    %1278 = vmatmul.mubr.f32.gmra.mxu0 %v1277
    %v1279 = vpop.f32.mrf.mxu0
    %v1280 = vadd.f32 %v1204, %v1279
    %v1281 = vpop.f32.mrf.mxu0
    %1282 = vdwg.mxu0
    %1283 = vmatprep.subr.mxu0 0.0
    %1284 = vmatpush1.msra.mxu0 0.0
    %1285 = vmatprep.subr.mxu0 0.0
    %1286 = vmatpush1.msra.mxu0 0.0
    %1287 = vmatprep.subr.mxu0 0.0
    %1288 = vmatpush1.msra.mxu0 0.0
    %1289 = vmatprep.subr.mxu0 0.0
    %1290 = vmatpush1.msra.mxu0 0.0
    %1291 = vmatprep.subr.mxu0 0.0
    %1292 = vmatpush1.msra.mxu0 0.0
    %1293 = vmatprep.subr.mxu0 0.0
    %1294 = vmatpush1.msra.mxu0 0.0
    %1295 = vmatprep.subr.mxu0 0.0
    %1296 = vmatpush1.msra.mxu0 0.0
    %1297 = vmatprep.subr.mxu0 0.0
    %1298 = vmatpush1.msra.mxu0 0.0
    %1299 = vmatprep.subr.mxu0 0.0
    %1300 = vmatpush1.msra.mxu0 0.0
    %1301 = vmatprep.subr.mxu0 0.0
    %1302 = vmatpush1.msra.mxu0 0.0
    %1303 = vmatprep.subr.mxu0 0.0
    %1304 = vmatpush1.msra.mxu0 0.0
    %1305 = vmatprep.subr.mxu0 0.0
    %1306 = vmatpush1.msra.mxu0 0.0
    %1307 = vmatprep.subr.mxu0 0.0
    %1308 = vmatpush1.msra.mxu0 0.0
    %1309 = vmatprep.subr.mxu0 0.0
    %1310 = vmatpush1.msra.mxu0 0.0
    %1311 = vmatprep.subr.mxu0 0.0
    %1312 = vmatpush1.msra.mxu0 0.0
    %1313 = vmatprep.subr.mxu0 0.0
    %v1314 = vand.u32 %v52, 4294901760
    %v1315 = vsub.f32 %v52, %v1314
    %1316 = vmatpush1.msra.mxu0 %v1315
    %1317 = vmatprep.subr.mxu0 0.0
    %1318 = vmatpush2.msra.mxu0 0.0
    %1319 = vmatprep.subr.mxu0 0.0
    %1320 = vmatpush2.msra.mxu0 0.0
    %1321 = vmatprep.subr.mxu0 0.0
    %1322 = vmatpush2.msra.mxu0 0.0
    %1323 = vmatprep.subr.mxu0 0.0
    %1324 = vmatpush2.msra.mxu0 0.0
    %1325 = vmatprep.subr.mxu0 0.0
    %1326 = vmatpush2.msra.mxu0 0.0
    %1327 = vmatprep.subr.mxu0 0.0
    %1328 = vmatpush2.msra.mxu0 0.0
    %1329 = vmatprep.subr.mxu0 0.0
    %1330 = vmatpush2.msra.mxu0 0.0
    %1331 = vmatprep.subr.mxu0 0.0
    %1332 = vmatpush2.msra.mxu0 0.0
    %1333 = vmatprep.subr.mxu0 0.0
    %1334 = vmatpush2.msra.mxu0 0.0
    %1335 = vmatprep.subr.mxu0 0.0
    %1336 = vmatpush2.msra.mxu0 0.0
    %1337 = vmatprep.subr.mxu0 0.0
    %1338 = vmatpush2.msra.mxu0 0.0
    %1339 = vmatprep.subr.mxu0 0.0
    %1340 = vmatpush2.msra.mxu0 0.0
    %1341 = vmatprep.subr.mxu0 0.0
    %1342 = vmatpush2.msra.mxu0 0.0
    %1343 = vmatprep.subr.mxu0 0.0
    %1344 = vmatpush2.msra.mxu0 0.0
    %1345 = vmatprep.subr.mxu0 0.0
    %1346 = vmatpush2.msra.mxu0 0.0
    %1347 = vmatprep.subr.mxu0 0.0
    %1348 = vmatpush2.msra.mxu0 0.0
    %1349 = vmatprep.mubr.f32.mxu0 0.0
    %v1350 = vand.u32 %v1129, 4294901760
    %v1351 = vsub.f32 %v1129, %v1350
    %1352 = vmatmul.mubr.f32.gmra.mxu0 %v1351
    %v1353 = vpop.f32.mrf.mxu0
    %v1354 = vadd.f32 %v1280, %v1353
    %v1355 = vpop.f32.mrf.mxu0
    %1356 = vdwg.mxu0
    %1357 = vmatprep.subr.mxu0 0.0
    %1358 = vmatpush1.msra.mxu0 0.0
    %1359 = vmatprep.subr.mxu0 0.0
    %1360 = vmatpush1.msra.mxu0 0.0
    %1361 = vmatprep.subr.mxu0 0.0
    %1362 = vmatpush1.msra.mxu0 0.0
    %1363 = vmatprep.subr.mxu0 0.0
    %1364 = vmatpush1.msra.mxu0 0.0
    %1365 = vmatprep.subr.mxu0 0.0
    %1366 = vmatpush1.msra.mxu0 0.0
    %1367 = vmatprep.subr.mxu0 0.0
    %1368 = vmatpush1.msra.mxu0 0.0
    %1369 = vmatprep.subr.mxu0 0.0
    %1370 = vmatpush1.msra.mxu0 0.0
    %1371 = vmatprep.subr.mxu0 0.0
    %1372 = vmatpush1.msra.mxu0 0.0
    %1373 = vmatprep.subr.mxu0 0.0
    %1374 = vmatpush1.msra.mxu0 0.0
    %1375 = vmatprep.subr.mxu0 0.0
    %1376 = vmatpush1.msra.mxu0 0.0
    %1377 = vmatprep.subr.mxu0 0.0
    %1378 = vmatpush1.msra.mxu0 0.0
    %1379 = vmatprep.subr.mxu0 0.0
    %1380 = vmatpush1.msra.mxu0 0.0
    %1381 = vmatprep.subr.mxu0 0.0
    %1382 = vmatpush1.msra.mxu0 0.0
    %1383 = vmatprep.subr.mxu0 0.0
    %1384 = vmatpush1.msra.mxu0 0.0
    %1385 = vmatprep.subr.mxu0 0.0
    %1386 = vmatpush1.msra.mxu0 0.0
    %1387 = vmatprep.subr.mxu0 0.0
    %v1388 = vand.u32 %v52, 4294901760
    %1389 = vmatpush1.msra.mxu0 %v1388
    %1390 = vmatprep.subr.mxu0 0.0
    %1391 = vmatpush2.msra.mxu0 0.0
    %1392 = vmatprep.subr.mxu0 0.0
    %1393 = vmatpush2.msra.mxu0 0.0
    %1394 = vmatprep.subr.mxu0 0.0
    %1395 = vmatpush2.msra.mxu0 0.0
    %1396 = vmatprep.subr.mxu0 0.0
    %1397 = vmatpush2.msra.mxu0 0.0
    %1398 = vmatprep.subr.mxu0 0.0
    %1399 = vmatpush2.msra.mxu0 0.0
    %1400 = vmatprep.subr.mxu0 0.0
    %1401 = vmatpush2.msra.mxu0 0.0
    %1402 = vmatprep.subr.mxu0 0.0
    %1403 = vmatpush2.msra.mxu0 0.0
    %1404 = vmatprep.subr.mxu0 0.0
    %1405 = vmatpush2.msra.mxu0 0.0
    %1406 = vmatprep.subr.mxu0 0.0
    %1407 = vmatpush2.msra.mxu0 0.0
    %1408 = vmatprep.subr.mxu0 0.0
    %1409 = vmatpush2.msra.mxu0 0.0
    %1410 = vmatprep.subr.mxu0 0.0
    %1411 = vmatpush2.msra.mxu0 0.0
    %1412 = vmatprep.subr.mxu0 0.0
    %1413 = vmatpush2.msra.mxu0 0.0
    %1414 = vmatprep.subr.mxu0 0.0
    %1415 = vmatpush2.msra.mxu0 0.0
    %1416 = vmatprep.subr.mxu0 0.0
    %1417 = vmatpush2.msra.mxu0 0.0
    %1418 = vmatprep.subr.mxu0 0.0
    %1419 = vmatpush2.msra.mxu0 0.0
    %1420 = vmatprep.subr.mxu0 0.0
    %1421 = vmatpush2.msra.mxu0 0.0
    %1422 = vmatprep.mubr.f32.mxu0 0.0
    %v1423 = vand.u32 %v1129, 4294901760
    %v1424 = vsub.f32 %v1129, %v1423
    %v1425 = vand.u32 %v1424, 4294901760
    %1426 = vmatmul.mubr.f32.gmra.mxu0 %v1425
    %v1427 = vpop.f32.mrf.mxu0
    %v1428 = vadd.f32 %v1354, %v1427
    %v1429 = vpop.f32.mrf.mxu0
    %1430 = vdwg.mxu0
    %1431 = vmatprep.subr.mxu0 0.0
    %1432 = vmatpush1.msra.mxu0 0.0
    %1433 = vmatprep.subr.mxu0 0.0
    %1434 = vmatpush1.msra.mxu0 0.0
    %1435 = vmatprep.subr.mxu0 0.0
    %1436 = vmatpush1.msra.mxu0 0.0
    %1437 = vmatprep.subr.mxu0 0.0
    %1438 = vmatpush1.msra.mxu0 0.0
    %1439 = vmatprep.subr.mxu0 0.0
    %1440 = vmatpush1.msra.mxu0 0.0
    %1441 = vmatprep.subr.mxu0 0.0
    %1442 = vmatpush1.msra.mxu0 0.0
    %1443 = vmatprep.subr.mxu0 0.0
    %1444 = vmatpush1.msra.mxu0 0.0
    %1445 = vmatprep.subr.mxu0 0.0
    %1446 = vmatpush1.msra.mxu0 0.0
    %1447 = vmatprep.subr.mxu0 0.0
    %1448 = vmatpush1.msra.mxu0 0.0
    %1449 = vmatprep.subr.mxu0 0.0
    %1450 = vmatpush1.msra.mxu0 0.0
    %1451 = vmatprep.subr.mxu0 0.0
    %1452 = vmatpush1.msra.mxu0 0.0
    %1453 = vmatprep.subr.mxu0 0.0
    %1454 = vmatpush1.msra.mxu0 0.0
    %1455 = vmatprep.subr.mxu0 0.0
    %1456 = vmatpush1.msra.mxu0 0.0
    %1457 = vmatprep.subr.mxu0 0.0
    %1458 = vmatpush1.msra.mxu0 0.0
    %1459 = vmatprep.subr.mxu0 0.0
    %1460 = vmatpush1.msra.mxu0 0.0
    %1461 = vmatprep.subr.mxu0 0.0
    %v1462 = vand.u32 %v52, 4294901760
    %v1463 = vsub.f32 %v52, %v1462
    %v1464 = vand.u32 %v1463, 4294901760
    %1465 = vmatpush1.msra.mxu0 %v1464
    %1466 = vmatprep.subr.mxu0 0.0
    %1467 = vmatpush2.msra.mxu0 0.0
    %1468 = vmatprep.subr.mxu0 0.0
    %1469 = vmatpush2.msra.mxu0 0.0
    %1470 = vmatprep.subr.mxu0 0.0
    %1471 = vmatpush2.msra.mxu0 0.0
    %1472 = vmatprep.subr.mxu0 0.0
    %1473 = vmatpush2.msra.mxu0 0.0
    %1474 = vmatprep.subr.mxu0 0.0
    %1475 = vmatpush2.msra.mxu0 0.0
    %1476 = vmatprep.subr.mxu0 0.0
    %1477 = vmatpush2.msra.mxu0 0.0
    %1478 = vmatprep.subr.mxu0 0.0
    %1479 = vmatpush2.msra.mxu0 0.0
    %1480 = vmatprep.subr.mxu0 0.0
    %1481 = vmatpush2.msra.mxu0 0.0
    %1482 = vmatprep.subr.mxu0 0.0
    %1483 = vmatpush2.msra.mxu0 0.0
    %1484 = vmatprep.subr.mxu0 0.0
    %1485 = vmatpush2.msra.mxu0 0.0
    %1486 = vmatprep.subr.mxu0 0.0
    %1487 = vmatpush2.msra.mxu0 0.0
    %1488 = vmatprep.subr.mxu0 0.0
    %1489 = vmatpush2.msra.mxu0 0.0
    %1490 = vmatprep.subr.mxu0 0.0
    %1491 = vmatpush2.msra.mxu0 0.0
    %1492 = vmatprep.subr.mxu0 0.0
    %1493 = vmatpush2.msra.mxu0 0.0
    %1494 = vmatprep.subr.mxu0 0.0
    %1495 = vmatpush2.msra.mxu0 0.0
    %1496 = vmatprep.subr.mxu0 0.0
    %1497 = vmatpush2.msra.mxu0 0.0
    %1498 = vmatprep.mubr.f32.mxu0 0.0
    %v1499 = vand.u32 %v1129, 4294901760
    %1500 = vmatmul.mubr.f32.gmra.mxu0 %v1499
    %v1501 = vpop.f32.mrf.mxu0
    %v1502 = vadd.f32 %v1428, %v1501
    %v1503 = vpop.f32.mrf.mxu0
    %1504 = vdwg.mxu0
    %1505 = vmatprep.subr.mxu0 0.0
    %1506 = vmatpush1.msra.mxu0 0.0
    %1507 = vmatprep.subr.mxu0 0.0
    %1508 = vmatpush1.msra.mxu0 0.0
    %1509 = vmatprep.subr.mxu0 0.0
    %1510 = vmatpush1.msra.mxu0 0.0
    %1511 = vmatprep.subr.mxu0 0.0
    %1512 = vmatpush1.msra.mxu0 0.0
    %1513 = vmatprep.subr.mxu0 0.0
    %1514 = vmatpush1.msra.mxu0 0.0
    %1515 = vmatprep.subr.mxu0 0.0
    %1516 = vmatpush1.msra.mxu0 0.0
    %1517 = vmatprep.subr.mxu0 0.0
    %1518 = vmatpush1.msra.mxu0 0.0
    %1519 = vmatprep.subr.mxu0 0.0
    %1520 = vmatpush1.msra.mxu0 0.0
    %1521 = vmatprep.subr.mxu0 0.0
    %1522 = vmatpush1.msra.mxu0 0.0
    %1523 = vmatprep.subr.mxu0 0.0
    %1524 = vmatpush1.msra.mxu0 0.0
    %1525 = vmatprep.subr.mxu0 0.0
    %1526 = vmatpush1.msra.mxu0 0.0
    %1527 = vmatprep.subr.mxu0 0.0
    %1528 = vmatpush1.msra.mxu0 0.0
    %1529 = vmatprep.subr.mxu0 0.0
    %1530 = vmatpush1.msra.mxu0 0.0
    %1531 = vmatprep.subr.mxu0 0.0
    %1532 = vmatpush1.msra.mxu0 0.0
    %1533 = vmatprep.subr.mxu0 0.0
    %1534 = vmatpush1.msra.mxu0 0.0
    %1535 = vmatprep.subr.mxu0 0.0
    %v1536 = vand.u32 %v52, 4294901760
    %1537 = vmatpush1.msra.mxu0 %v1536
    %1538 = vmatprep.subr.mxu0 0.0
    %1539 = vmatpush2.msra.mxu0 0.0
    %1540 = vmatprep.subr.mxu0 0.0
    %1541 = vmatpush2.msra.mxu0 0.0
    %1542 = vmatprep.subr.mxu0 0.0
    %1543 = vmatpush2.msra.mxu0 0.0
    %1544 = vmatprep.subr.mxu0 0.0
    %1545 = vmatpush2.msra.mxu0 0.0
    %1546 = vmatprep.subr.mxu0 0.0
    %1547 = vmatpush2.msra.mxu0 0.0
    %1548 = vmatprep.subr.mxu0 0.0
    %1549 = vmatpush2.msra.mxu0 0.0
    %1550 = vmatprep.subr.mxu0 0.0
    %1551 = vmatpush2.msra.mxu0 0.0
    %1552 = vmatprep.subr.mxu0 0.0
    %1553 = vmatpush2.msra.mxu0 0.0
    %1554 = vmatprep.subr.mxu0 0.0
    %1555 = vmatpush2.msra.mxu0 0.0
    %1556 = vmatprep.subr.mxu0 0.0
    %1557 = vmatpush2.msra.mxu0 0.0
    %1558 = vmatprep.subr.mxu0 0.0
    %1559 = vmatpush2.msra.mxu0 0.0
    %1560 = vmatprep.subr.mxu0 0.0
    %1561 = vmatpush2.msra.mxu0 0.0
    %1562 = vmatprep.subr.mxu0 0.0
    %1563 = vmatpush2.msra.mxu0 0.0
    %1564 = vmatprep.subr.mxu0 0.0
    %1565 = vmatpush2.msra.mxu0 0.0
    %1566 = vmatprep.subr.mxu0 0.0
    %1567 = vmatpush2.msra.mxu0 0.0
    %1568 = vmatprep.subr.mxu0 0.0
    %1569 = vmatpush2.msra.mxu0 0.0
    %1570 = vmatprep.mubr.f32.mxu0 0.0
    %v1571 = vand.u32 %v1129, 4294901760
    %1572 = vmatmul.mubr.f32.gmra.mxu0 %v1571
    %v1573 = vpop.f32.mrf.mxu0
    %v1574 = vadd.f32 %v1502, %v1573
    %v1575 = vpop.f32.mrf.mxu0
    %1576 = vdwg.mxu0
    %v1577 = vsel %vm159, %v231, 0
    %1579 = vmatprep.subr.mxu0 0.0
    %1580 = vmatpush1.msra.mxu0 0.0
    %1581 = vmatprep.subr.mxu0 0.0
    %1582 = vmatpush1.msra.mxu0 0.0
    %1583 = vmatprep.subr.mxu0 0.0
    %1584 = vmatpush1.msra.mxu0 0.0
    %1585 = vmatprep.subr.mxu0 0.0
    %1586 = vmatpush1.msra.mxu0 0.0
    %1587 = vmatprep.subr.mxu0 0.0
    %1588 = vmatpush1.msra.mxu0 0.0
    %1589 = vmatprep.subr.mxu0 0.0
    %1590 = vmatpush1.msra.mxu0 0.0
    %1591 = vmatprep.subr.mxu0 0.0
    %1592 = vmatpush1.msra.mxu0 0.0
    %1593 = vmatprep.subr.mxu0 0.0
    %1594 = vmatpush1.msra.mxu0 0.0
    %1595 = vmatprep.subr.mxu0 0.0
    %1596 = vmatpush1.msra.mxu0 0.0
    %1597 = vmatprep.subr.mxu0 0.0
    %1598 = vmatpush1.msra.mxu0 0.0
    %1599 = vmatprep.subr.mxu0 0.0
    %1600 = vmatpush1.msra.mxu0 0.0
    %1601 = vmatprep.subr.mxu0 0.0
    %1602 = vmatpush1.msra.mxu0 0.0
    %1603 = vmatprep.subr.mxu0 0.0
    %1604 = vmatpush1.msra.mxu0 0.0
    %1605 = vmatprep.subr.mxu0 0.0
    %1606 = vmatpush1.msra.mxu0 0.0
    %1607 = vmatprep.subr.mxu0 0.0
    %1608 = vmatpush1.msra.mxu0 0.0
    %1609 = vmatprep.subr.mxu0 0.0
    %v1610 = vand.u32 %v53, 4294901760
    %1611 = vmatpush1.msra.mxu0 %v1610
    %1612 = vmatprep.subr.mxu0 0.0
    %1613 = vmatpush2.msra.mxu0 0.0
    %1614 = vmatprep.subr.mxu0 0.0
    %1615 = vmatpush2.msra.mxu0 0.0
    %1616 = vmatprep.subr.mxu0 0.0
    %1617 = vmatpush2.msra.mxu0 0.0
    %1618 = vmatprep.subr.mxu0 0.0
    %1619 = vmatpush2.msra.mxu0 0.0
    %1620 = vmatprep.subr.mxu0 0.0
    %1621 = vmatpush2.msra.mxu0 0.0
    %1622 = vmatprep.subr.mxu0 0.0
    %1623 = vmatpush2.msra.mxu0 0.0
    %1624 = vmatprep.subr.mxu0 0.0
    %1625 = vmatpush2.msra.mxu0 0.0
    %1626 = vmatprep.subr.mxu0 0.0
    %1627 = vmatpush2.msra.mxu0 0.0
    %1628 = vmatprep.subr.mxu0 0.0
    %1629 = vmatpush2.msra.mxu0 0.0
    %1630 = vmatprep.subr.mxu0 0.0
    %1631 = vmatpush2.msra.mxu0 0.0
    %1632 = vmatprep.subr.mxu0 0.0
    %1633 = vmatpush2.msra.mxu0 0.0
    %1634 = vmatprep.subr.mxu0 0.0
    %1635 = vmatpush2.msra.mxu0 0.0
    %1636 = vmatprep.subr.mxu0 0.0
    %1637 = vmatpush2.msra.mxu0 0.0
    %1638 = vmatprep.subr.mxu0 0.0
    %1639 = vmatpush2.msra.mxu0 0.0
    %1640 = vmatprep.subr.mxu0 0.0
    %1641 = vmatpush2.msra.mxu0 0.0
    %1642 = vmatprep.subr.mxu0 0.0
    %1643 = vmatpush2.msra.mxu0 0.0
    %1644 = vmatprep.mubr.f32.mxu0 0.0
    %v1645 = vand.u32 %v1577, 4294901760
    %v1646 = vsub.f32 %v1577, %v1645
    %v1647 = vand.u32 %v1646, 4294901760
    %v1648 = vsub.f32 %v1646, %v1647
    %v1649 = vand.u32 %v1648, 4294901760
    %1650 = vmatmul.mubr.f32.gmra.mxu0 %v1649
    %v1651 = vpop.f32.mrf.mxu0
    %v1652 = vadd.f32 0.0, %v1651
    %v1653 = vpop.f32.mrf.mxu0
    %1654 = vdwg.mxu0
    %1655 = vmatprep.subr.mxu0 0.0
    %1656 = vmatpush1.msra.mxu0 0.0
    %1657 = vmatprep.subr.mxu0 0.0
    %1658 = vmatpush1.msra.mxu0 0.0
    %1659 = vmatprep.subr.mxu0 0.0
    %1660 = vmatpush1.msra.mxu0 0.0
    %1661 = vmatprep.subr.mxu0 0.0
    %1662 = vmatpush1.msra.mxu0 0.0
    %1663 = vmatprep.subr.mxu0 0.0
    %1664 = vmatpush1.msra.mxu0 0.0
    %1665 = vmatprep.subr.mxu0 0.0
    %1666 = vmatpush1.msra.mxu0 0.0
    %1667 = vmatprep.subr.mxu0 0.0
    %1668 = vmatpush1.msra.mxu0 0.0
    %1669 = vmatprep.subr.mxu0 0.0
    %1670 = vmatpush1.msra.mxu0 0.0
    %1671 = vmatprep.subr.mxu0 0.0
    %1672 = vmatpush1.msra.mxu0 0.0
    %1673 = vmatprep.subr.mxu0 0.0
    %1674 = vmatpush1.msra.mxu0 0.0
    %1675 = vmatprep.subr.mxu0 0.0
    %1676 = vmatpush1.msra.mxu0 0.0
    %1677 = vmatprep.subr.mxu0 0.0
    %1678 = vmatpush1.msra.mxu0 0.0
    %1679 = vmatprep.subr.mxu0 0.0
    %1680 = vmatpush1.msra.mxu0 0.0
    %1681 = vmatprep.subr.mxu0 0.0
    %1682 = vmatpush1.msra.mxu0 0.0
    %1683 = vmatprep.subr.mxu0 0.0
    %1684 = vmatpush1.msra.mxu0 0.0
    %1685 = vmatprep.subr.mxu0 0.0
    %v1686 = vand.u32 %v53, 4294901760
    %v1687 = vsub.f32 %v53, %v1686
    %v1688 = vand.u32 %v1687, 4294901760
    %v1689 = vsub.f32 %v1687, %v1688
    %v1690 = vand.u32 %v1689, 4294901760
    %1691 = vmatpush1.msra.mxu0 %v1690
    %1692 = vmatprep.subr.mxu0 0.0
    %1693 = vmatpush2.msra.mxu0 0.0
    %1694 = vmatprep.subr.mxu0 0.0
    %1695 = vmatpush2.msra.mxu0 0.0
    %1696 = vmatprep.subr.mxu0 0.0
    %1697 = vmatpush2.msra.mxu0 0.0
    %1698 = vmatprep.subr.mxu0 0.0
    %1699 = vmatpush2.msra.mxu0 0.0
    %1700 = vmatprep.subr.mxu0 0.0
    %1701 = vmatpush2.msra.mxu0 0.0
    %1702 = vmatprep.subr.mxu0 0.0
    %1703 = vmatpush2.msra.mxu0 0.0
    %1704 = vmatprep.subr.mxu0 0.0
    %1705 = vmatpush2.msra.mxu0 0.0
    %1706 = vmatprep.subr.mxu0 0.0
    %1707 = vmatpush2.msra.mxu0 0.0
    %1708 = vmatprep.subr.mxu0 0.0
    %1709 = vmatpush2.msra.mxu0 0.0
    %1710 = vmatprep.subr.mxu0 0.0
    %1711 = vmatpush2.msra.mxu0 0.0
    %1712 = vmatprep.subr.mxu0 0.0
    %1713 = vmatpush2.msra.mxu0 0.0
    %1714 = vmatprep.subr.mxu0 0.0
    %1715 = vmatpush2.msra.mxu0 0.0
    %1716 = vmatprep.subr.mxu0 0.0
    %1717 = vmatpush2.msra.mxu0 0.0
    %1718 = vmatprep.subr.mxu0 0.0
    %1719 = vmatpush2.msra.mxu0 0.0
    %1720 = vmatprep.subr.mxu0 0.0
    %1721 = vmatpush2.msra.mxu0 0.0
    %1722 = vmatprep.subr.mxu0 0.0
    %1723 = vmatpush2.msra.mxu0 0.0
    %1724 = vmatprep.mubr.f32.mxu0 0.0
    %v1725 = vand.u32 %v1577, 4294901760
    %1726 = vmatmul.mubr.f32.gmra.mxu0 %v1725
    %v1727 = vpop.f32.mrf.mxu0
    %v1728 = vadd.f32 %v1652, %v1727
    %v1729 = vpop.f32.mrf.mxu0
    %1730 = vdwg.mxu0
    %1731 = vmatprep.subr.mxu0 0.0
    %1732 = vmatpush1.msra.mxu0 0.0
    %1733 = vmatprep.subr.mxu0 0.0
    %1734 = vmatpush1.msra.mxu0 0.0
    %1735 = vmatprep.subr.mxu0 0.0
    %1736 = vmatpush1.msra.mxu0 0.0
    %1737 = vmatprep.subr.mxu0 0.0
    %1738 = vmatpush1.msra.mxu0 0.0
    %1739 = vmatprep.subr.mxu0 0.0
    %1740 = vmatpush1.msra.mxu0 0.0
    %1741 = vmatprep.subr.mxu0 0.0
    %1742 = vmatpush1.msra.mxu0 0.0
    %1743 = vmatprep.subr.mxu0 0.0
    %1744 = vmatpush1.msra.mxu0 0.0
    %1745 = vmatprep.subr.mxu0 0.0
    %1746 = vmatpush1.msra.mxu0 0.0
    %1747 = vmatprep.subr.mxu0 0.0
    %1748 = vmatpush1.msra.mxu0 0.0
    %1749 = vmatprep.subr.mxu0 0.0
    %1750 = vmatpush1.msra.mxu0 0.0
    %1751 = vmatprep.subr.mxu0 0.0
    %1752 = vmatpush1.msra.mxu0 0.0
    %1753 = vmatprep.subr.mxu0 0.0
    %1754 = vmatpush1.msra.mxu0 0.0
    %1755 = vmatprep.subr.mxu0 0.0
    %1756 = vmatpush1.msra.mxu0 0.0
    %1757 = vmatprep.subr.mxu0 0.0
    %1758 = vmatpush1.msra.mxu0 0.0
    %1759 = vmatprep.subr.mxu0 0.0
    %1760 = vmatpush1.msra.mxu0 0.0
    %1761 = vmatprep.subr.mxu0 0.0
    %v1762 = vand.u32 %v53, 4294901760
    %v1763 = vsub.f32 %v53, %v1762
    %1764 = vmatpush1.msra.mxu0 %v1763
    %1765 = vmatprep.subr.mxu0 0.0
    %1766 = vmatpush2.msra.mxu0 0.0
    %1767 = vmatprep.subr.mxu0 0.0
    %1768 = vmatpush2.msra.mxu0 0.0
    %1769 = vmatprep.subr.mxu0 0.0
    %1770 = vmatpush2.msra.mxu0 0.0
    %1771 = vmatprep.subr.mxu0 0.0
    %1772 = vmatpush2.msra.mxu0 0.0
    %1773 = vmatprep.subr.mxu0 0.0
    %1774 = vmatpush2.msra.mxu0 0.0
    %1775 = vmatprep.subr.mxu0 0.0
    %1776 = vmatpush2.msra.mxu0 0.0
    %1777 = vmatprep.subr.mxu0 0.0
    %1778 = vmatpush2.msra.mxu0 0.0
    %1779 = vmatprep.subr.mxu0 0.0
    %1780 = vmatpush2.msra.mxu0 0.0
    %1781 = vmatprep.subr.mxu0 0.0
    %1782 = vmatpush2.msra.mxu0 0.0
    %1783 = vmatprep.subr.mxu0 0.0
    %1784 = vmatpush2.msra.mxu0 0.0
    %1785 = vmatprep.subr.mxu0 0.0
    %1786 = vmatpush2.msra.mxu0 0.0
    %1787 = vmatprep.subr.mxu0 0.0
    %1788 = vmatpush2.msra.mxu0 0.0
    %1789 = vmatprep.subr.mxu0 0.0
    %1790 = vmatpush2.msra.mxu0 0.0
    %1791 = vmatprep.subr.mxu0 0.0
    %1792 = vmatpush2.msra.mxu0 0.0
    %1793 = vmatprep.subr.mxu0 0.0
    %1794 = vmatpush2.msra.mxu0 0.0
    %1795 = vmatprep.subr.mxu0 0.0
    %1796 = vmatpush2.msra.mxu0 0.0
    %1797 = vmatprep.mubr.f32.mxu0 0.0
    %v1798 = vand.u32 %v1577, 4294901760
    %v1799 = vsub.f32 %v1577, %v1798
    %1800 = vmatmul.mubr.f32.gmra.mxu0 %v1799
    %v1801 = vpop.f32.mrf.mxu0
    %v1802 = vadd.f32 %v1728, %v1801
    %v1803 = vpop.f32.mrf.mxu0
    %1804 = vdwg.mxu0
    %1805 = vmatprep.subr.mxu0 0.0
    %1806 = vmatpush1.msra.mxu0 0.0
    %1807 = vmatprep.subr.mxu0 0.0
    %1808 = vmatpush1.msra.mxu0 0.0
    %1809 = vmatprep.subr.mxu0 0.0
    %1810 = vmatpush1.msra.mxu0 0.0
    %1811 = vmatprep.subr.mxu0 0.0
    %1812 = vmatpush1.msra.mxu0 0.0
    %1813 = vmatprep.subr.mxu0 0.0
    %1814 = vmatpush1.msra.mxu0 0.0
    %1815 = vmatprep.subr.mxu0 0.0
    %1816 = vmatpush1.msra.mxu0 0.0
    %1817 = vmatprep.subr.mxu0 0.0
    %1818 = vmatpush1.msra.mxu0 0.0
    %1819 = vmatprep.subr.mxu0 0.0
    %1820 = vmatpush1.msra.mxu0 0.0
    %1821 = vmatprep.subr.mxu0 0.0
    %1822 = vmatpush1.msra.mxu0 0.0
    %1823 = vmatprep.subr.mxu0 0.0
    %1824 = vmatpush1.msra.mxu0 0.0
    %1825 = vmatprep.subr.mxu0 0.0
    %1826 = vmatpush1.msra.mxu0 0.0
    %1827 = vmatprep.subr.mxu0 0.0
    %1828 = vmatpush1.msra.mxu0 0.0
    %1829 = vmatprep.subr.mxu0 0.0
    %1830 = vmatpush1.msra.mxu0 0.0
    %1831 = vmatprep.subr.mxu0 0.0
    %1832 = vmatpush1.msra.mxu0 0.0
    %1833 = vmatprep.subr.mxu0 0.0
    %1834 = vmatpush1.msra.mxu0 0.0
    %1835 = vmatprep.subr.mxu0 0.0
    %v1836 = vand.u32 %v53, 4294901760
    %1837 = vmatpush1.msra.mxu0 %v1836
    %1838 = vmatprep.subr.mxu0 0.0
    %1839 = vmatpush2.msra.mxu0 0.0
    %1840 = vmatprep.subr.mxu0 0.0
    %1841 = vmatpush2.msra.mxu0 0.0
    %1842 = vmatprep.subr.mxu0 0.0
    %1843 = vmatpush2.msra.mxu0 0.0
    %1844 = vmatprep.subr.mxu0 0.0
    %1845 = vmatpush2.msra.mxu0 0.0
    %1846 = vmatprep.subr.mxu0 0.0
    %1847 = vmatpush2.msra.mxu0 0.0
    %1848 = vmatprep.subr.mxu0 0.0
    %1849 = vmatpush2.msra.mxu0 0.0
    %1850 = vmatprep.subr.mxu0 0.0
    %1851 = vmatpush2.msra.mxu0 0.0
    %1852 = vmatprep.subr.mxu0 0.0
    %1853 = vmatpush2.msra.mxu0 0.0
    %1854 = vmatprep.subr.mxu0 0.0
    %1855 = vmatpush2.msra.mxu0 0.0
    %1856 = vmatprep.subr.mxu0 0.0
    %1857 = vmatpush2.msra.mxu0 0.0
    %1858 = vmatprep.subr.mxu0 0.0
    %1859 = vmatpush2.msra.mxu0 0.0
    %1860 = vmatprep.subr.mxu0 0.0
    %1861 = vmatpush2.msra.mxu0 0.0
    %1862 = vmatprep.subr.mxu0 0.0
    %1863 = vmatpush2.msra.mxu0 0.0
    %1864 = vmatprep.subr.mxu0 0.0
    %1865 = vmatpush2.msra.mxu0 0.0
    %1866 = vmatprep.subr.mxu0 0.0
    %1867 = vmatpush2.msra.mxu0 0.0
    %1868 = vmatprep.subr.mxu0 0.0
    %1869 = vmatpush2.msra.mxu0 0.0
    %1870 = vmatprep.mubr.f32.mxu0 0.0
    %v1871 = vand.u32 %v1577, 4294901760
    %v1872 = vsub.f32 %v1577, %v1871
    %v1873 = vand.u32 %v1872, 4294901760
    %1874 = vmatmul.mubr.f32.gmra.mxu0 %v1873
    %v1875 = vpop.f32.mrf.mxu0
    %v1876 = vadd.f32 %v1802, %v1875
    %v1877 = vpop.f32.mrf.mxu0
    %1878 = vdwg.mxu0
    %1879 = vmatprep.subr.mxu0 0.0
    %1880 = vmatpush1.msra.mxu0 0.0
    %1881 = vmatprep.subr.mxu0 0.0
    %1882 = vmatpush1.msra.mxu0 0.0
    %1883 = vmatprep.subr.mxu0 0.0
    %1884 = vmatpush1.msra.mxu0 0.0
    %1885 = vmatprep.subr.mxu0 0.0
    %1886 = vmatpush1.msra.mxu0 0.0
    %1887 = vmatprep.subr.mxu0 0.0
    %1888 = vmatpush1.msra.mxu0 0.0
    %1889 = vmatprep.subr.mxu0 0.0
    %1890 = vmatpush1.msra.mxu0 0.0
    %1891 = vmatprep.subr.mxu0 0.0
    %1892 = vmatpush1.msra.mxu0 0.0
    %1893 = vmatprep.subr.mxu0 0.0
    %1894 = vmatpush1.msra.mxu0 0.0
    %1895 = vmatprep.subr.mxu0 0.0
    %1896 = vmatpush1.msra.mxu0 0.0
    %1897 = vmatprep.subr.mxu0 0.0
    %1898 = vmatpush1.msra.mxu0 0.0
    %1899 = vmatprep.subr.mxu0 0.0
    %1900 = vmatpush1.msra.mxu0 0.0
    %1901 = vmatprep.subr.mxu0 0.0
    %1902 = vmatpush1.msra.mxu0 0.0
    %1903 = vmatprep.subr.mxu0 0.0
    %1904 = vmatpush1.msra.mxu0 0.0
    %1905 = vmatprep.subr.mxu0 0.0
    %1906 = vmatpush1.msra.mxu0 0.0
    %1907 = vmatprep.subr.mxu0 0.0
    %1908 = vmatpush1.msra.mxu0 0.0
    %1909 = vmatprep.subr.mxu0 0.0
    %v1910 = vand.u32 %v53, 4294901760
    %v1911 = vsub.f32 %v53, %v1910
    %v1912 = vand.u32 %v1911, 4294901760
    %1913 = vmatpush1.msra.mxu0 %v1912
    %1914 = vmatprep.subr.mxu0 0.0
    %1915 = vmatpush2.msra.mxu0 0.0
    %1916 = vmatprep.subr.mxu0 0.0
    %1917 = vmatpush2.msra.mxu0 0.0
    %1918 = vmatprep.subr.mxu0 0.0
    %1919 = vmatpush2.msra.mxu0 0.0
    %1920 = vmatprep.subr.mxu0 0.0
    %1921 = vmatpush2.msra.mxu0 0.0
    %1922 = vmatprep.subr.mxu0 0.0
    %1923 = vmatpush2.msra.mxu0 0.0
    %1924 = vmatprep.subr.mxu0 0.0
    %1925 = vmatpush2.msra.mxu0 0.0
    %1926 = vmatprep.subr.mxu0 0.0
    %1927 = vmatpush2.msra.mxu0 0.0
    %1928 = vmatprep.subr.mxu0 0.0
    %1929 = vmatpush2.msra.mxu0 0.0
    %1930 = vmatprep.subr.mxu0 0.0
    %1931 = vmatpush2.msra.mxu0 0.0
    %1932 = vmatprep.subr.mxu0 0.0
    %1933 = vmatpush2.msra.mxu0 0.0
    %1934 = vmatprep.subr.mxu0 0.0
    %1935 = vmatpush2.msra.mxu0 0.0
    %1936 = vmatprep.subr.mxu0 0.0
    %1937 = vmatpush2.msra.mxu0 0.0
    %1938 = vmatprep.subr.mxu0 0.0
    %1939 = vmatpush2.msra.mxu0 0.0
    %1940 = vmatprep.subr.mxu0 0.0
    %1941 = vmatpush2.msra.mxu0 0.0
    %1942 = vmatprep.subr.mxu0 0.0
    %1943 = vmatpush2.msra.mxu0 0.0
    %1944 = vmatprep.subr.mxu0 0.0
    %1945 = vmatpush2.msra.mxu0 0.0
    %1946 = vmatprep.mubr.f32.mxu0 0.0
    %v1947 = vand.u32 %v1577, 4294901760
    %1948 = vmatmul.mubr.f32.gmra.mxu0 %v1947
    %v1949 = vpop.f32.mrf.mxu0
    %v1950 = vadd.f32 %v1876, %v1949
    %v1951 = vpop.f32.mrf.mxu0
    %1952 = vdwg.mxu0
    %1953 = vmatprep.subr.mxu0 0.0
    %1954 = vmatpush1.msra.mxu0 0.0
    %1955 = vmatprep.subr.mxu0 0.0
    %1956 = vmatpush1.msra.mxu0 0.0
    %1957 = vmatprep.subr.mxu0 0.0
    %1958 = vmatpush1.msra.mxu0 0.0
    %1959 = vmatprep.subr.mxu0 0.0
    %1960 = vmatpush1.msra.mxu0 0.0
    %1961 = vmatprep.subr.mxu0 0.0
    %1962 = vmatpush1.msra.mxu0 0.0
    %1963 = vmatprep.subr.mxu0 0.0
    %1964 = vmatpush1.msra.mxu0 0.0
    %1965 = vmatprep.subr.mxu0 0.0
    %1966 = vmatpush1.msra.mxu0 0.0
    %1967 = vmatprep.subr.mxu0 0.0
    %1968 = vmatpush1.msra.mxu0 0.0
    %1969 = vmatprep.subr.mxu0 0.0
    %1970 = vmatpush1.msra.mxu0 0.0
    %1971 = vmatprep.subr.mxu0 0.0
    %1972 = vmatpush1.msra.mxu0 0.0
    %1973 = vmatprep.subr.mxu0 0.0
    %1974 = vmatpush1.msra.mxu0 0.0
    %1975 = vmatprep.subr.mxu0 0.0
    %1976 = vmatpush1.msra.mxu0 0.0
    %1977 = vmatprep.subr.mxu0 0.0
    %1978 = vmatpush1.msra.mxu0 0.0
    %1979 = vmatprep.subr.mxu0 0.0
    %1980 = vmatpush1.msra.mxu0 0.0
    %1981 = vmatprep.subr.mxu0 0.0
    %1982 = vmatpush1.msra.mxu0 0.0
    %1983 = vmatprep.subr.mxu0 0.0
    %v1984 = vand.u32 %v53, 4294901760
    %1985 = vmatpush1.msra.mxu0 %v1984
    %1986 = vmatprep.subr.mxu0 0.0
    %1987 = vmatpush2.msra.mxu0 0.0
    %1988 = vmatprep.subr.mxu0 0.0
    %1989 = vmatpush2.msra.mxu0 0.0
    %1990 = vmatprep.subr.mxu0 0.0
    %1991 = vmatpush2.msra.mxu0 0.0
    %1992 = vmatprep.subr.mxu0 0.0
    %1993 = vmatpush2.msra.mxu0 0.0
    %1994 = vmatprep.subr.mxu0 0.0
    %1995 = vmatpush2.msra.mxu0 0.0
    %1996 = vmatprep.subr.mxu0 0.0
    %1997 = vmatpush2.msra.mxu0 0.0
    %1998 = vmatprep.subr.mxu0 0.0
    %1999 = vmatpush2.msra.mxu0 0.0
    %2000 = vmatprep.subr.mxu0 0.0
    %2001 = vmatpush2.msra.mxu0 0.0
    %2002 = vmatprep.subr.mxu0 0.0
    %2003 = vmatpush2.msra.mxu0 0.0
    %2004 = vmatprep.subr.mxu0 0.0
    %2005 = vmatpush2.msra.mxu0 0.0
    %2006 = vmatprep.subr.mxu0 0.0
    %2007 = vmatpush2.msra.mxu0 0.0
    %2008 = vmatprep.subr.mxu0 0.0
    %2009 = vmatpush2.msra.mxu0 0.0
    %2010 = vmatprep.subr.mxu0 0.0
    %2011 = vmatpush2.msra.mxu0 0.0
    %2012 = vmatprep.subr.mxu0 0.0
    %2013 = vmatpush2.msra.mxu0 0.0
    %2014 = vmatprep.subr.mxu0 0.0
    %2015 = vmatpush2.msra.mxu0 0.0
    %2016 = vmatprep.subr.mxu0 0.0
    %2017 = vmatpush2.msra.mxu0 0.0
    %2018 = vmatprep.mubr.f32.mxu0 0.0
    %v2019 = vand.u32 %v1577, 4294901760
    %2020 = vmatmul.mubr.f32.gmra.mxu0 %v2019
    %v2021 = vpop.f32.mrf.mxu0
    %v2022 = vadd.f32 %v1950, %v2021
    %v2023 = vpop.f32.mrf.mxu0
    %2024 = vdwg.mxu0
    %v2025 = vsel %vm159, %v214, 0
    %2027 = vmatprep.subr.mxu0 0.0
    %2028 = vmatpush1.msra.mxu0 0.0
    %2029 = vmatprep.subr.mxu0 0.0
    %2030 = vmatpush1.msra.mxu0 0.0
    %2031 = vmatprep.subr.mxu0 0.0
    %2032 = vmatpush1.msra.mxu0 0.0
    %2033 = vmatprep.subr.mxu0 0.0
    %2034 = vmatpush1.msra.mxu0 0.0
    %2035 = vmatprep.subr.mxu0 0.0
    %2036 = vmatpush1.msra.mxu0 0.0
    %2037 = vmatprep.subr.mxu0 0.0
    %2038 = vmatpush1.msra.mxu0 0.0
    %2039 = vmatprep.subr.mxu0 0.0
    %2040 = vmatpush1.msra.mxu0 0.0
    %2041 = vmatprep.subr.mxu0 0.0
    %2042 = vmatpush1.msra.mxu0 0.0
    %2043 = vmatprep.subr.mxu0 0.0
    %2044 = vmatpush1.msra.mxu0 0.0
    %2045 = vmatprep.subr.mxu0 0.0
    %2046 = vmatpush1.msra.mxu0 0.0
    %2047 = vmatprep.subr.mxu0 0.0
    %2048 = vmatpush1.msra.mxu0 0.0
    %2049 = vmatprep.subr.mxu0 0.0
    %2050 = vmatpush1.msra.mxu0 0.0
    %2051 = vmatprep.subr.mxu0 0.0
    %2052 = vmatpush1.msra.mxu0 0.0
    %2053 = vmatprep.subr.mxu0 0.0
    %2054 = vmatpush1.msra.mxu0 0.0
    %2055 = vmatprep.subr.mxu0 0.0
    %2056 = vmatpush1.msra.mxu0 0.0
    %2057 = vmatprep.subr.mxu0 0.0
    %v2058 = vand.u32 %v54, 4294901760
    %2059 = vmatpush1.msra.mxu0 %v2058
    %2060 = vmatprep.subr.mxu0 0.0
    %2061 = vmatpush2.msra.mxu0 0.0
    %2062 = vmatprep.subr.mxu0 0.0
    %2063 = vmatpush2.msra.mxu0 0.0
    %2064 = vmatprep.subr.mxu0 0.0
    %2065 = vmatpush2.msra.mxu0 0.0
    %2066 = vmatprep.subr.mxu0 0.0
    %2067 = vmatpush2.msra.mxu0 0.0
    %2068 = vmatprep.subr.mxu0 0.0
    %2069 = vmatpush2.msra.mxu0 0.0
    %2070 = vmatprep.subr.mxu0 0.0
    %2071 = vmatpush2.msra.mxu0 0.0
    %2072 = vmatprep.subr.mxu0 0.0
    %2073 = vmatpush2.msra.mxu0 0.0
    %2074 = vmatprep.subr.mxu0 0.0
    %2075 = vmatpush2.msra.mxu0 0.0
    %2076 = vmatprep.subr.mxu0 0.0
    %2077 = vmatpush2.msra.mxu0 0.0
    %2078 = vmatprep.subr.mxu0 0.0
    %2079 = vmatpush2.msra.mxu0 0.0
    %2080 = vmatprep.subr.mxu0 0.0
    %2081 = vmatpush2.msra.mxu0 0.0
    %2082 = vmatprep.subr.mxu0 0.0
    %2083 = vmatpush2.msra.mxu0 0.0
    %2084 = vmatprep.subr.mxu0 0.0
    %2085 = vmatpush2.msra.mxu0 0.0
    %2086 = vmatprep.subr.mxu0 0.0
    %2087 = vmatpush2.msra.mxu0 0.0
    %2088 = vmatprep.subr.mxu0 0.0
    %2089 = vmatpush2.msra.mxu0 0.0
    %2090 = vmatprep.subr.mxu0 0.0
    %2091 = vmatpush2.msra.mxu0 0.0
    %2092 = vmatprep.mubr.f32.mxu0 0.0
    %v2093 = vand.u32 %v2025, 4294901760
    %v2094 = vsub.f32 %v2025, %v2093
    %v2095 = vand.u32 %v2094, 4294901760
    %v2096 = vsub.f32 %v2094, %v2095
    %v2097 = vand.u32 %v2096, 4294901760
    %2098 = vmatmul.mubr.f32.gmra.mxu0 %v2097
    %v2099 = vpop.f32.mrf.mxu0
    %v2100 = vadd.f32 0.0, %v2099
    %v2101 = vpop.f32.mrf.mxu0
    %2102 = vdwg.mxu0
    %2103 = vmatprep.subr.mxu0 0.0
    %2104 = vmatpush1.msra.mxu0 0.0
    %2105 = vmatprep.subr.mxu0 0.0
    %2106 = vmatpush1.msra.mxu0 0.0
    %2107 = vmatprep.subr.mxu0 0.0
    %2108 = vmatpush1.msra.mxu0 0.0
    %2109 = vmatprep.subr.mxu0 0.0
    %2110 = vmatpush1.msra.mxu0 0.0
    %2111 = vmatprep.subr.mxu0 0.0
    %2112 = vmatpush1.msra.mxu0 0.0
    %2113 = vmatprep.subr.mxu0 0.0
    %2114 = vmatpush1.msra.mxu0 0.0
    %2115 = vmatprep.subr.mxu0 0.0
    %2116 = vmatpush1.msra.mxu0 0.0
    %2117 = vmatprep.subr.mxu0 0.0
    %2118 = vmatpush1.msra.mxu0 0.0
    %2119 = vmatprep.subr.mxu0 0.0
    %2120 = vmatpush1.msra.mxu0 0.0
    %2121 = vmatprep.subr.mxu0 0.0
    %2122 = vmatpush1.msra.mxu0 0.0
    %2123 = vmatprep.subr.mxu0 0.0
    %2124 = vmatpush1.msra.mxu0 0.0
    %2125 = vmatprep.subr.mxu0 0.0
    %2126 = vmatpush1.msra.mxu0 0.0
    %2127 = vmatprep.subr.mxu0 0.0
    %2128 = vmatpush1.msra.mxu0 0.0
    %2129 = vmatprep.subr.mxu0 0.0
    %2130 = vmatpush1.msra.mxu0 0.0
    %2131 = vmatprep.subr.mxu0 0.0
    %2132 = vmatpush1.msra.mxu0 0.0
    %2133 = vmatprep.subr.mxu0 0.0
    %v2134 = vand.u32 %v54, 4294901760
    %v2135 = vsub.f32 %v54, %v2134
    %v2136 = vand.u32 %v2135, 4294901760
    %v2137 = vsub.f32 %v2135, %v2136
    %v2138 = vand.u32 %v2137, 4294901760
    %2139 = vmatpush1.msra.mxu0 %v2138
    %2140 = vmatprep.subr.mxu0 0.0
    %2141 = vmatpush2.msra.mxu0 0.0
    %2142 = vmatprep.subr.mxu0 0.0
    %2143 = vmatpush2.msra.mxu0 0.0
    %2144 = vmatprep.subr.mxu0 0.0
    %2145 = vmatpush2.msra.mxu0 0.0
    %2146 = vmatprep.subr.mxu0 0.0
    %2147 = vmatpush2.msra.mxu0 0.0
    %2148 = vmatprep.subr.mxu0 0.0
    %2149 = vmatpush2.msra.mxu0 0.0
    %2150 = vmatprep.subr.mxu0 0.0
    %2151 = vmatpush2.msra.mxu0 0.0
    %2152 = vmatprep.subr.mxu0 0.0
    %2153 = vmatpush2.msra.mxu0 0.0
    %2154 = vmatprep.subr.mxu0 0.0
    %2155 = vmatpush2.msra.mxu0 0.0
    %2156 = vmatprep.subr.mxu0 0.0
    %2157 = vmatpush2.msra.mxu0 0.0
    %2158 = vmatprep.subr.mxu0 0.0
    %2159 = vmatpush2.msra.mxu0 0.0
    %2160 = vmatprep.subr.mxu0 0.0
    %2161 = vmatpush2.msra.mxu0 0.0
    %2162 = vmatprep.subr.mxu0 0.0
    %2163 = vmatpush2.msra.mxu0 0.0
    %2164 = vmatprep.subr.mxu0 0.0
    %2165 = vmatpush2.msra.mxu0 0.0
    %2166 = vmatprep.subr.mxu0 0.0
    %2167 = vmatpush2.msra.mxu0 0.0
    %2168 = vmatprep.subr.mxu0 0.0
    %2169 = vmatpush2.msra.mxu0 0.0
    %2170 = vmatprep.subr.mxu0 0.0
    %2171 = vmatpush2.msra.mxu0 0.0
    %2172 = vmatprep.mubr.f32.mxu0 0.0
    %v2173 = vand.u32 %v2025, 4294901760
    %2174 = vmatmul.mubr.f32.gmra.mxu0 %v2173
    %v2175 = vpop.f32.mrf.mxu0
    %v2176 = vadd.f32 %v2100, %v2175
    %v2177 = vpop.f32.mrf.mxu0
    %2178 = vdwg.mxu0
    %2179 = vmatprep.subr.mxu0 0.0
    %2180 = vmatpush1.msra.mxu0 0.0
    %2181 = vmatprep.subr.mxu0 0.0
    %2182 = vmatpush1.msra.mxu0 0.0
    %2183 = vmatprep.subr.mxu0 0.0
    %2184 = vmatpush1.msra.mxu0 0.0
    %2185 = vmatprep.subr.mxu0 0.0
    %2186 = vmatpush1.msra.mxu0 0.0
    %2187 = vmatprep.subr.mxu0 0.0
    %2188 = vmatpush1.msra.mxu0 0.0
    %2189 = vmatprep.subr.mxu0 0.0
    %2190 = vmatpush1.msra.mxu0 0.0
    %2191 = vmatprep.subr.mxu0 0.0
    %2192 = vmatpush1.msra.mxu0 0.0
    %2193 = vmatprep.subr.mxu0 0.0
    %2194 = vmatpush1.msra.mxu0 0.0
    %2195 = vmatprep.subr.mxu0 0.0
    %2196 = vmatpush1.msra.mxu0 0.0
    %2197 = vmatprep.subr.mxu0 0.0
    %2198 = vmatpush1.msra.mxu0 0.0
    %2199 = vmatprep.subr.mxu0 0.0
    %2200 = vmatpush1.msra.mxu0 0.0
    %2201 = vmatprep.subr.mxu0 0.0
    %2202 = vmatpush1.msra.mxu0 0.0
    %2203 = vmatprep.subr.mxu0 0.0
    %2204 = vmatpush1.msra.mxu0 0.0
    %2205 = vmatprep.subr.mxu0 0.0
    %2206 = vmatpush1.msra.mxu0 0.0
    %2207 = vmatprep.subr.mxu0 0.0
    %2208 = vmatpush1.msra.mxu0 0.0
    %2209 = vmatprep.subr.mxu0 0.0
    %v2210 = vand.u32 %v54, 4294901760
    %v2211 = vsub.f32 %v54, %v2210
    %2212 = vmatpush1.msra.mxu0 %v2211
    %2213 = vmatprep.subr.mxu0 0.0
    %2214 = vmatpush2.msra.mxu0 0.0
    %2215 = vmatprep.subr.mxu0 0.0
    %2216 = vmatpush2.msra.mxu0 0.0
    %2217 = vmatprep.subr.mxu0 0.0
    %2218 = vmatpush2.msra.mxu0 0.0
    %2219 = vmatprep.subr.mxu0 0.0
    %2220 = vmatpush2.msra.mxu0 0.0
    %2221 = vmatprep.subr.mxu0 0.0
    %2222 = vmatpush2.msra.mxu0 0.0
    %2223 = vmatprep.subr.mxu0 0.0
    %2224 = vmatpush2.msra.mxu0 0.0
    %2225 = vmatprep.subr.mxu0 0.0
    %2226 = vmatpush2.msra.mxu0 0.0
    %2227 = vmatprep.subr.mxu0 0.0
    %2228 = vmatpush2.msra.mxu0 0.0
    %2229 = vmatprep.subr.mxu0 0.0
    %2230 = vmatpush2.msra.mxu0 0.0
    %2231 = vmatprep.subr.mxu0 0.0
    %2232 = vmatpush2.msra.mxu0 0.0
    %2233 = vmatprep.subr.mxu0 0.0
    %2234 = vmatpush2.msra.mxu0 0.0
    %2235 = vmatprep.subr.mxu0 0.0
    %2236 = vmatpush2.msra.mxu0 0.0
    %2237 = vmatprep.subr.mxu0 0.0
    %2238 = vmatpush2.msra.mxu0 0.0
    %2239 = vmatprep.subr.mxu0 0.0
    %2240 = vmatpush2.msra.mxu0 0.0
    %2241 = vmatprep.subr.mxu0 0.0
    %2242 = vmatpush2.msra.mxu0 0.0
    %2243 = vmatprep.subr.mxu0 0.0
    %2244 = vmatpush2.msra.mxu0 0.0
    %2245 = vmatprep.mubr.f32.mxu0 0.0
    %v2246 = vand.u32 %v2025, 4294901760
    %v2247 = vsub.f32 %v2025, %v2246
    %2248 = vmatmul.mubr.f32.gmra.mxu0 %v2247
    %v2249 = vpop.f32.mrf.mxu0
    %v2250 = vadd.f32 %v2176, %v2249
    %v2251 = vpop.f32.mrf.mxu0
    %2252 = vdwg.mxu0
    %2253 = vmatprep.subr.mxu0 0.0
    %2254 = vmatpush1.msra.mxu0 0.0
    %2255 = vmatprep.subr.mxu0 0.0
    %2256 = vmatpush1.msra.mxu0 0.0
    %2257 = vmatprep.subr.mxu0 0.0
    %2258 = vmatpush1.msra.mxu0 0.0
    %2259 = vmatprep.subr.mxu0 0.0
    %2260 = vmatpush1.msra.mxu0 0.0
    %2261 = vmatprep.subr.mxu0 0.0
    %2262 = vmatpush1.msra.mxu0 0.0
    %2263 = vmatprep.subr.mxu0 0.0
    %2264 = vmatpush1.msra.mxu0 0.0
    %2265 = vmatprep.subr.mxu0 0.0
    %2266 = vmatpush1.msra.mxu0 0.0
    %2267 = vmatprep.subr.mxu0 0.0
    %2268 = vmatpush1.msra.mxu0 0.0
    %2269 = vmatprep.subr.mxu0 0.0
    %2270 = vmatpush1.msra.mxu0 0.0
    %2271 = vmatprep.subr.mxu0 0.0
    %2272 = vmatpush1.msra.mxu0 0.0
    %2273 = vmatprep.subr.mxu0 0.0
    %2274 = vmatpush1.msra.mxu0 0.0
    %2275 = vmatprep.subr.mxu0 0.0
    %2276 = vmatpush1.msra.mxu0 0.0
    %2277 = vmatprep.subr.mxu0 0.0
    %2278 = vmatpush1.msra.mxu0 0.0
    %2279 = vmatprep.subr.mxu0 0.0
    %2280 = vmatpush1.msra.mxu0 0.0
    %2281 = vmatprep.subr.mxu0 0.0
    %2282 = vmatpush1.msra.mxu0 0.0
    %2283 = vmatprep.subr.mxu0 0.0
    %v2284 = vand.u32 %v54, 4294901760
    %2285 = vmatpush1.msra.mxu0 %v2284
    %2286 = vmatprep.subr.mxu0 0.0
    %2287 = vmatpush2.msra.mxu0 0.0
    %2288 = vmatprep.subr.mxu0 0.0
    %2289 = vmatpush2.msra.mxu0 0.0
    %2290 = vmatprep.subr.mxu0 0.0
    %2291 = vmatpush2.msra.mxu0 0.0
    %2292 = vmatprep.subr.mxu0 0.0
    %2293 = vmatpush2.msra.mxu0 0.0
    %2294 = vmatprep.subr.mxu0 0.0
    %2295 = vmatpush2.msra.mxu0 0.0
    %2296 = vmatprep.subr.mxu0 0.0
    %2297 = vmatpush2.msra.mxu0 0.0
    %2298 = vmatprep.subr.mxu0 0.0
    %2299 = vmatpush2.msra.mxu0 0.0
    %2300 = vmatprep.subr.mxu0 0.0
    %2301 = vmatpush2.msra.mxu0 0.0
    %2302 = vmatprep.subr.mxu0 0.0
    %2303 = vmatpush2.msra.mxu0 0.0
    %2304 = vmatprep.subr.mxu0 0.0
    %2305 = vmatpush2.msra.mxu0 0.0
    %2306 = vmatprep.subr.mxu0 0.0
    %2307 = vmatpush2.msra.mxu0 0.0
    %2308 = vmatprep.subr.mxu0 0.0
    %2309 = vmatpush2.msra.mxu0 0.0
    %2310 = vmatprep.subr.mxu0 0.0
    %2311 = vmatpush2.msra.mxu0 0.0
    %2312 = vmatprep.subr.mxu0 0.0
    %2313 = vmatpush2.msra.mxu0 0.0
    %2314 = vmatprep.subr.mxu0 0.0
    %2315 = vmatpush2.msra.mxu0 0.0
    %2316 = vmatprep.subr.mxu0 0.0
    %2317 = vmatpush2.msra.mxu0 0.0
    %2318 = vmatprep.mubr.f32.mxu0 0.0
    %v2319 = vand.u32 %v2025, 4294901760
    %v2320 = vsub.f32 %v2025, %v2319
    %v2321 = vand.u32 %v2320, 4294901760
    %2322 = vmatmul.mubr.f32.gmra.mxu0 %v2321
    %v2323 = vpop.f32.mrf.mxu0
    %v2324 = vadd.f32 %v2250, %v2323
    %v2325 = vpop.f32.mrf.mxu0
    %2326 = vdwg.mxu0
    %2327 = vmatprep.subr.mxu0 0.0
    %2328 = vmatpush1.msra.mxu0 0.0
    %2329 = vmatprep.subr.mxu0 0.0
    %2330 = vmatpush1.msra.mxu0 0.0
    %2331 = vmatprep.subr.mxu0 0.0
    %2332 = vmatpush1.msra.mxu0 0.0
    %2333 = vmatprep.subr.mxu0 0.0
    %2334 = vmatpush1.msra.mxu0 0.0
    %2335 = vmatprep.subr.mxu0 0.0
    %2336 = vmatpush1.msra.mxu0 0.0
    %2337 = vmatprep.subr.mxu0 0.0
    %2338 = vmatpush1.msra.mxu0 0.0
    %2339 = vmatprep.subr.mxu0 0.0
    %2340 = vmatpush1.msra.mxu0 0.0
    %2341 = vmatprep.subr.mxu0 0.0
    %2342 = vmatpush1.msra.mxu0 0.0
    %2343 = vmatprep.subr.mxu0 0.0
    %2344 = vmatpush1.msra.mxu0 0.0
    %2345 = vmatprep.subr.mxu0 0.0
    %2346 = vmatpush1.msra.mxu0 0.0
    %2347 = vmatprep.subr.mxu0 0.0
    %2348 = vmatpush1.msra.mxu0 0.0
    %2349 = vmatprep.subr.mxu0 0.0
    %2350 = vmatpush1.msra.mxu0 0.0
    %2351 = vmatprep.subr.mxu0 0.0
    %2352 = vmatpush1.msra.mxu0 0.0
    %2353 = vmatprep.subr.mxu0 0.0
    %2354 = vmatpush1.msra.mxu0 0.0
    %2355 = vmatprep.subr.mxu0 0.0
    %2356 = vmatpush1.msra.mxu0 0.0
    %2357 = vmatprep.subr.mxu0 0.0
    %v2358 = vand.u32 %v54, 4294901760
    %v2359 = vsub.f32 %v54, %v2358
    %v2360 = vand.u32 %v2359, 4294901760
    %2361 = vmatpush1.msra.mxu0 %v2360
    %2362 = vmatprep.subr.mxu0 0.0
    %2363 = vmatpush2.msra.mxu0 0.0
    %2364 = vmatprep.subr.mxu0 0.0
    %2365 = vmatpush2.msra.mxu0 0.0
    %2366 = vmatprep.subr.mxu0 0.0
    %2367 = vmatpush2.msra.mxu0 0.0
    %2368 = vmatprep.subr.mxu0 0.0
    %2369 = vmatpush2.msra.mxu0 0.0
    %2370 = vmatprep.subr.mxu0 0.0
    %2371 = vmatpush2.msra.mxu0 0.0
    %2372 = vmatprep.subr.mxu0 0.0
    %2373 = vmatpush2.msra.mxu0 0.0
    %2374 = vmatprep.subr.mxu0 0.0
    %2375 = vmatpush2.msra.mxu0 0.0
    %2376 = vmatprep.subr.mxu0 0.0
    %2377 = vmatpush2.msra.mxu0 0.0
    %2378 = vmatprep.subr.mxu0 0.0
    %2379 = vmatpush2.msra.mxu0 0.0
    %2380 = vmatprep.subr.mxu0 0.0
    %2381 = vmatpush2.msra.mxu0 0.0
    %2382 = vmatprep.subr.mxu0 0.0
    %2383 = vmatpush2.msra.mxu0 0.0
    %2384 = vmatprep.subr.mxu0 0.0
    %2385 = vmatpush2.msra.mxu0 0.0
    %2386 = vmatprep.subr.mxu0 0.0
    %2387 = vmatpush2.msra.mxu0 0.0
    %2388 = vmatprep.subr.mxu0 0.0
    %2389 = vmatpush2.msra.mxu0 0.0
    %2390 = vmatprep.subr.mxu0 0.0
    %2391 = vmatpush2.msra.mxu0 0.0
    %2392 = vmatprep.subr.mxu0 0.0
    %2393 = vmatpush2.msra.mxu0 0.0
    %2394 = vmatprep.mubr.f32.mxu0 0.0
    %v2395 = vand.u32 %v2025, 4294901760
    %2396 = vmatmul.mubr.f32.gmra.mxu0 %v2395
    %v2397 = vpop.f32.mrf.mxu0
    %v2398 = vadd.f32 %v2324, %v2397
    %v2399 = vpop.f32.mrf.mxu0
    %2400 = vdwg.mxu0
    %2401 = vmatprep.subr.mxu0 0.0
    %2402 = vmatpush1.msra.mxu0 0.0
    %2403 = vmatprep.subr.mxu0 0.0
    %2404 = vmatpush1.msra.mxu0 0.0
    %2405 = vmatprep.subr.mxu0 0.0
    %2406 = vmatpush1.msra.mxu0 0.0
    %2407 = vmatprep.subr.mxu0 0.0
    %2408 = vmatpush1.msra.mxu0 0.0
    %2409 = vmatprep.subr.mxu0 0.0
    %2410 = vmatpush1.msra.mxu0 0.0
    %2411 = vmatprep.subr.mxu0 0.0
    %2412 = vmatpush1.msra.mxu0 0.0
    %2413 = vmatprep.subr.mxu0 0.0
    %2414 = vmatpush1.msra.mxu0 0.0
    %2415 = vmatprep.subr.mxu0 0.0
    %2416 = vmatpush1.msra.mxu0 0.0
    %2417 = vmatprep.subr.mxu0 0.0
    %2418 = vmatpush1.msra.mxu0 0.0
    %2419 = vmatprep.subr.mxu0 0.0
    %2420 = vmatpush1.msra.mxu0 0.0
    %2421 = vmatprep.subr.mxu0 0.0
    %2422 = vmatpush1.msra.mxu0 0.0
    %2423 = vmatprep.subr.mxu0 0.0
    %2424 = vmatpush1.msra.mxu0 0.0
    %2425 = vmatprep.subr.mxu0 0.0
    %2426 = vmatpush1.msra.mxu0 0.0
    %2427 = vmatprep.subr.mxu0 0.0
    %2428 = vmatpush1.msra.mxu0 0.0
    %2429 = vmatprep.subr.mxu0 0.0
    %2430 = vmatpush1.msra.mxu0 0.0
    %2431 = vmatprep.subr.mxu0 0.0
    %v2432 = vand.u32 %v54, 4294901760
    %2433 = vmatpush1.msra.mxu0 %v2432
    %2434 = vmatprep.subr.mxu0 0.0
    %2435 = vmatpush2.msra.mxu0 0.0
    %2436 = vmatprep.subr.mxu0 0.0
    %2437 = vmatpush2.msra.mxu0 0.0
    %2438 = vmatprep.subr.mxu0 0.0
    %2439 = vmatpush2.msra.mxu0 0.0
    %2440 = vmatprep.subr.mxu0 0.0
    %2441 = vmatpush2.msra.mxu0 0.0
    %2442 = vmatprep.subr.mxu0 0.0
    %2443 = vmatpush2.msra.mxu0 0.0
    %2444 = vmatprep.subr.mxu0 0.0
    %2445 = vmatpush2.msra.mxu0 0.0
    %2446 = vmatprep.subr.mxu0 0.0
    %2447 = vmatpush2.msra.mxu0 0.0
    %2448 = vmatprep.subr.mxu0 0.0
    %2449 = vmatpush2.msra.mxu0 0.0
    %2450 = vmatprep.subr.mxu0 0.0
    %2451 = vmatpush2.msra.mxu0 0.0
    %2452 = vmatprep.subr.mxu0 0.0
    %2453 = vmatpush2.msra.mxu0 0.0
    %2454 = vmatprep.subr.mxu0 0.0
    %2455 = vmatpush2.msra.mxu0 0.0
    %2456 = vmatprep.subr.mxu0 0.0
    %2457 = vmatpush2.msra.mxu0 0.0
    %2458 = vmatprep.subr.mxu0 0.0
    %2459 = vmatpush2.msra.mxu0 0.0
    %2460 = vmatprep.subr.mxu0 0.0
    %2461 = vmatpush2.msra.mxu0 0.0
    %2462 = vmatprep.subr.mxu0 0.0
    %2463 = vmatpush2.msra.mxu0 0.0
    %2464 = vmatprep.subr.mxu0 0.0
    %2465 = vmatpush2.msra.mxu0 0.0
    %2466 = vmatprep.mubr.f32.mxu0 0.0
    %v2467 = vand.u32 %v2025, 4294901760
    %2468 = vmatmul.mubr.f32.gmra.mxu0 %v2467
    %v2469 = vpop.f32.mrf.mxu0
    %v2470 = vadd.f32 %v2398, %v2469
    %v2471 = vpop.f32.mrf.mxu0
    %2472 = vdwg.mxu0
    %v2473 = vsel %vm159, %v228, 0
    %2475 = vmatprep.subr.mxu0 0.0
    %2476 = vmatpush1.msra.mxu0 0.0
    %2477 = vmatprep.subr.mxu0 0.0
    %2478 = vmatpush1.msra.mxu0 0.0
    %2479 = vmatprep.subr.mxu0 0.0
    %2480 = vmatpush1.msra.mxu0 0.0
    %2481 = vmatprep.subr.mxu0 0.0
    %2482 = vmatpush1.msra.mxu0 0.0
    %2483 = vmatprep.subr.mxu0 0.0
    %2484 = vmatpush1.msra.mxu0 0.0
    %2485 = vmatprep.subr.mxu0 0.0
    %2486 = vmatpush1.msra.mxu0 0.0
    %2487 = vmatprep.subr.mxu0 0.0
    %2488 = vmatpush1.msra.mxu0 0.0
    %2489 = vmatprep.subr.mxu0 0.0
    %2490 = vmatpush1.msra.mxu0 0.0
    %2491 = vmatprep.subr.mxu0 0.0
    %2492 = vmatpush1.msra.mxu0 0.0
    %2493 = vmatprep.subr.mxu0 0.0
    %2494 = vmatpush1.msra.mxu0 0.0
    %2495 = vmatprep.subr.mxu0 0.0
    %2496 = vmatpush1.msra.mxu0 0.0
    %2497 = vmatprep.subr.mxu0 0.0
    %2498 = vmatpush1.msra.mxu0 0.0
    %2499 = vmatprep.subr.mxu0 0.0
    %2500 = vmatpush1.msra.mxu0 0.0
    %2501 = vmatprep.subr.mxu0 0.0
    %2502 = vmatpush1.msra.mxu0 0.0
    %2503 = vmatprep.subr.mxu0 0.0
    %2504 = vmatpush1.msra.mxu0 0.0
    %2505 = vmatprep.subr.mxu0 0.0
    %v2506 = vand.u32 %v55, 4294901760
    %2507 = vmatpush1.msra.mxu0 %v2506
    %2508 = vmatprep.subr.mxu0 0.0
    %2509 = vmatpush2.msra.mxu0 0.0
    %2510 = vmatprep.subr.mxu0 0.0
    %2511 = vmatpush2.msra.mxu0 0.0
    %2512 = vmatprep.subr.mxu0 0.0
    %2513 = vmatpush2.msra.mxu0 0.0
    %2514 = vmatprep.subr.mxu0 0.0
    %2515 = vmatpush2.msra.mxu0 0.0
    %2516 = vmatprep.subr.mxu0 0.0
    %2517 = vmatpush2.msra.mxu0 0.0
    %2518 = vmatprep.subr.mxu0 0.0
    %2519 = vmatpush2.msra.mxu0 0.0
    %2520 = vmatprep.subr.mxu0 0.0
    %2521 = vmatpush2.msra.mxu0 0.0
    %2522 = vmatprep.subr.mxu0 0.0
    %2523 = vmatpush2.msra.mxu0 0.0
    %2524 = vmatprep.subr.mxu0 0.0
    %2525 = vmatpush2.msra.mxu0 0.0
    %2526 = vmatprep.subr.mxu0 0.0
    %2527 = vmatpush2.msra.mxu0 0.0
    %2528 = vmatprep.subr.mxu0 0.0
    %2529 = vmatpush2.msra.mxu0 0.0
    %2530 = vmatprep.subr.mxu0 0.0
    %2531 = vmatpush2.msra.mxu0 0.0
    %2532 = vmatprep.subr.mxu0 0.0
    %2533 = vmatpush2.msra.mxu0 0.0
    %2534 = vmatprep.subr.mxu0 0.0
    %2535 = vmatpush2.msra.mxu0 0.0
    %2536 = vmatprep.subr.mxu0 0.0
    %2537 = vmatpush2.msra.mxu0 0.0
    %2538 = vmatprep.subr.mxu0 0.0
    %2539 = vmatpush2.msra.mxu0 0.0
    %2540 = vmatprep.mubr.f32.mxu0 0.0
    %v2541 = vand.u32 %v2473, 4294901760
    %v2542 = vsub.f32 %v2473, %v2541
    %v2543 = vand.u32 %v2542, 4294901760
    %v2544 = vsub.f32 %v2542, %v2543
    %v2545 = vand.u32 %v2544, 4294901760
    %2546 = vmatmul.mubr.f32.gmra.mxu0 %v2545
    %v2547 = vpop.f32.mrf.mxu0
    %v2548 = vadd.f32 0.0, %v2547
    %v2549 = vpop.f32.mrf.mxu0
    %2550 = vdwg.mxu0
    %2551 = vmatprep.subr.mxu0 0.0
    %2552 = vmatpush1.msra.mxu0 0.0
    %2553 = vmatprep.subr.mxu0 0.0
    %2554 = vmatpush1.msra.mxu0 0.0
    %2555 = vmatprep.subr.mxu0 0.0
    %2556 = vmatpush1.msra.mxu0 0.0
    %2557 = vmatprep.subr.mxu0 0.0
    %2558 = vmatpush1.msra.mxu0 0.0
    %2559 = vmatprep.subr.mxu0 0.0
    %2560 = vmatpush1.msra.mxu0 0.0
    %2561 = vmatprep.subr.mxu0 0.0
    %2562 = vmatpush1.msra.mxu0 0.0
    %2563 = vmatprep.subr.mxu0 0.0
    %2564 = vmatpush1.msra.mxu0 0.0
    %2565 = vmatprep.subr.mxu0 0.0
    %2566 = vmatpush1.msra.mxu0 0.0
    %2567 = vmatprep.subr.mxu0 0.0
    %2568 = vmatpush1.msra.mxu0 0.0
    %2569 = vmatprep.subr.mxu0 0.0
    %2570 = vmatpush1.msra.mxu0 0.0
    %2571 = vmatprep.subr.mxu0 0.0
    %2572 = vmatpush1.msra.mxu0 0.0
    %2573 = vmatprep.subr.mxu0 0.0
    %2574 = vmatpush1.msra.mxu0 0.0
    %2575 = vmatprep.subr.mxu0 0.0
    %2576 = vmatpush1.msra.mxu0 0.0
    %2577 = vmatprep.subr.mxu0 0.0
    %2578 = vmatpush1.msra.mxu0 0.0
    %2579 = vmatprep.subr.mxu0 0.0
    %2580 = vmatpush1.msra.mxu0 0.0
    %2581 = vmatprep.subr.mxu0 0.0
    %v2582 = vand.u32 %v55, 4294901760
    %v2583 = vsub.f32 %v55, %v2582
    %v2584 = vand.u32 %v2583, 4294901760
    %v2585 = vsub.f32 %v2583, %v2584
    %v2586 = vand.u32 %v2585, 4294901760
    %2587 = vmatpush1.msra.mxu0 %v2586
    %2588 = vmatprep.subr.mxu0 0.0
    %2589 = vmatpush2.msra.mxu0 0.0
    %2590 = vmatprep.subr.mxu0 0.0
    %2591 = vmatpush2.msra.mxu0 0.0
    %2592 = vmatprep.subr.mxu0 0.0
    %2593 = vmatpush2.msra.mxu0 0.0
    %2594 = vmatprep.subr.mxu0 0.0
    %2595 = vmatpush2.msra.mxu0 0.0
    %2596 = vmatprep.subr.mxu0 0.0
    %2597 = vmatpush2.msra.mxu0 0.0
    %2598 = vmatprep.subr.mxu0 0.0
    %2599 = vmatpush2.msra.mxu0 0.0
    %2600 = vmatprep.subr.mxu0 0.0
    %2601 = vmatpush2.msra.mxu0 0.0
    %2602 = vmatprep.subr.mxu0 0.0
    %2603 = vmatpush2.msra.mxu0 0.0
    %2604 = vmatprep.subr.mxu0 0.0
    %2605 = vmatpush2.msra.mxu0 0.0
    %2606 = vmatprep.subr.mxu0 0.0
    %2607 = vmatpush2.msra.mxu0 0.0
    %2608 = vmatprep.subr.mxu0 0.0
    %2609 = vmatpush2.msra.mxu0 0.0
    %2610 = vmatprep.subr.mxu0 0.0
    %2611 = vmatpush2.msra.mxu0 0.0
    %2612 = vmatprep.subr.mxu0 0.0
    %2613 = vmatpush2.msra.mxu0 0.0
    %2614 = vmatprep.subr.mxu0 0.0
    %2615 = vmatpush2.msra.mxu0 0.0
    %2616 = vmatprep.subr.mxu0 0.0
    %2617 = vmatpush2.msra.mxu0 0.0
    %2618 = vmatprep.subr.mxu0 0.0
    %2619 = vmatpush2.msra.mxu0 0.0
    %2620 = vmatprep.mubr.f32.mxu0 0.0
    %v2621 = vand.u32 %v2473, 4294901760
    %2622 = vmatmul.mubr.f32.gmra.mxu0 %v2621
    %v2623 = vpop.f32.mrf.mxu0
    %v2624 = vadd.f32 %v2548, %v2623
    %v2625 = vpop.f32.mrf.mxu0
    %2626 = vdwg.mxu0
    %2627 = vmatprep.subr.mxu0 0.0
    %2628 = vmatpush1.msra.mxu0 0.0
    %2629 = vmatprep.subr.mxu0 0.0
    %2630 = vmatpush1.msra.mxu0 0.0
    %2631 = vmatprep.subr.mxu0 0.0
    %2632 = vmatpush1.msra.mxu0 0.0
    %2633 = vmatprep.subr.mxu0 0.0
    %2634 = vmatpush1.msra.mxu0 0.0
    %2635 = vmatprep.subr.mxu0 0.0
    %2636 = vmatpush1.msra.mxu0 0.0
    %2637 = vmatprep.subr.mxu0 0.0
    %2638 = vmatpush1.msra.mxu0 0.0
    %2639 = vmatprep.subr.mxu0 0.0
    %2640 = vmatpush1.msra.mxu0 0.0
    %2641 = vmatprep.subr.mxu0 0.0
    %2642 = vmatpush1.msra.mxu0 0.0
    %2643 = vmatprep.subr.mxu0 0.0
    %2644 = vmatpush1.msra.mxu0 0.0
    %2645 = vmatprep.subr.mxu0 0.0
    %2646 = vmatpush1.msra.mxu0 0.0
    %2647 = vmatprep.subr.mxu0 0.0
    %2648 = vmatpush1.msra.mxu0 0.0
    %2649 = vmatprep.subr.mxu0 0.0
    %2650 = vmatpush1.msra.mxu0 0.0
    %2651 = vmatprep.subr.mxu0 0.0
    %2652 = vmatpush1.msra.mxu0 0.0
    %2653 = vmatprep.subr.mxu0 0.0
    %2654 = vmatpush1.msra.mxu0 0.0
    %2655 = vmatprep.subr.mxu0 0.0
    %2656 = vmatpush1.msra.mxu0 0.0
    %2657 = vmatprep.subr.mxu0 0.0
    %v2658 = vand.u32 %v55, 4294901760
    %v2659 = vsub.f32 %v55, %v2658
    %2660 = vmatpush1.msra.mxu0 %v2659
    %2661 = vmatprep.subr.mxu0 0.0
    %2662 = vmatpush2.msra.mxu0 0.0
    %2663 = vmatprep.subr.mxu0 0.0
    %2664 = vmatpush2.msra.mxu0 0.0
    %2665 = vmatprep.subr.mxu0 0.0
    %2666 = vmatpush2.msra.mxu0 0.0
    %2667 = vmatprep.subr.mxu0 0.0
    %2668 = vmatpush2.msra.mxu0 0.0
    %2669 = vmatprep.subr.mxu0 0.0
    %2670 = vmatpush2.msra.mxu0 0.0
    %2671 = vmatprep.subr.mxu0 0.0
    %2672 = vmatpush2.msra.mxu0 0.0
    %2673 = vmatprep.subr.mxu0 0.0
    %2674 = vmatpush2.msra.mxu0 0.0
    %2675 = vmatprep.subr.mxu0 0.0
    %2676 = vmatpush2.msra.mxu0 0.0
    %2677 = vmatprep.subr.mxu0 0.0
    %2678 = vmatpush2.msra.mxu0 0.0
    %2679 = vmatprep.subr.mxu0 0.0
    %2680 = vmatpush2.msra.mxu0 0.0
    %2681 = vmatprep.subr.mxu0 0.0
    %2682 = vmatpush2.msra.mxu0 0.0
    %2683 = vmatprep.subr.mxu0 0.0
    %2684 = vmatpush2.msra.mxu0 0.0
    %2685 = vmatprep.subr.mxu0 0.0
    %2686 = vmatpush2.msra.mxu0 0.0
    %2687 = vmatprep.subr.mxu0 0.0
    %2688 = vmatpush2.msra.mxu0 0.0
    %2689 = vmatprep.subr.mxu0 0.0
    %2690 = vmatpush2.msra.mxu0 0.0
    %2691 = vmatprep.subr.mxu0 0.0
    %2692 = vmatpush2.msra.mxu0 0.0
    %2693 = vmatprep.mubr.f32.mxu0 0.0
    %v2694 = vand.u32 %v2473, 4294901760
    %v2695 = vsub.f32 %v2473, %v2694
    %2696 = vmatmul.mubr.f32.gmra.mxu0 %v2695
    %v2697 = vpop.f32.mrf.mxu0
    %v2698 = vadd.f32 %v2624, %v2697
    %v2699 = vpop.f32.mrf.mxu0
    %2700 = vdwg.mxu0
    %2701 = vmatprep.subr.mxu0 0.0
    %2702 = vmatpush1.msra.mxu0 0.0
    %2703 = vmatprep.subr.mxu0 0.0
    %2704 = vmatpush1.msra.mxu0 0.0
    %2705 = vmatprep.subr.mxu0 0.0
    %2706 = vmatpush1.msra.mxu0 0.0
    %2707 = vmatprep.subr.mxu0 0.0
    %2708 = vmatpush1.msra.mxu0 0.0
    %2709 = vmatprep.subr.mxu0 0.0
    %2710 = vmatpush1.msra.mxu0 0.0
    %2711 = vmatprep.subr.mxu0 0.0
    %2712 = vmatpush1.msra.mxu0 0.0
    %2713 = vmatprep.subr.mxu0 0.0
    %2714 = vmatpush1.msra.mxu0 0.0
    %2715 = vmatprep.subr.mxu0 0.0
    %2716 = vmatpush1.msra.mxu0 0.0
    %2717 = vmatprep.subr.mxu0 0.0
    %2718 = vmatpush1.msra.mxu0 0.0
    %2719 = vmatprep.subr.mxu0 0.0
    %2720 = vmatpush1.msra.mxu0 0.0
    %2721 = vmatprep.subr.mxu0 0.0
    %2722 = vmatpush1.msra.mxu0 0.0
    %2723 = vmatprep.subr.mxu0 0.0
    %2724 = vmatpush1.msra.mxu0 0.0
    %2725 = vmatprep.subr.mxu0 0.0
    %2726 = vmatpush1.msra.mxu0 0.0
    %2727 = vmatprep.subr.mxu0 0.0
    %2728 = vmatpush1.msra.mxu0 0.0
    %2729 = vmatprep.subr.mxu0 0.0
    %2730 = vmatpush1.msra.mxu0 0.0
    %2731 = vmatprep.subr.mxu0 0.0
    %v2732 = vand.u32 %v55, 4294901760
    %2733 = vmatpush1.msra.mxu0 %v2732
    %2734 = vmatprep.subr.mxu0 0.0
    %2735 = vmatpush2.msra.mxu0 0.0
    %2736 = vmatprep.subr.mxu0 0.0
    %2737 = vmatpush2.msra.mxu0 0.0
    %2738 = vmatprep.subr.mxu0 0.0
    %2739 = vmatpush2.msra.mxu0 0.0
    %2740 = vmatprep.subr.mxu0 0.0
    %2741 = vmatpush2.msra.mxu0 0.0
    %2742 = vmatprep.subr.mxu0 0.0
    %2743 = vmatpush2.msra.mxu0 0.0
    %2744 = vmatprep.subr.mxu0 0.0
    %2745 = vmatpush2.msra.mxu0 0.0
    %2746 = vmatprep.subr.mxu0 0.0
    %2747 = vmatpush2.msra.mxu0 0.0
    %2748 = vmatprep.subr.mxu0 0.0
    %2749 = vmatpush2.msra.mxu0 0.0
    %2750 = vmatprep.subr.mxu0 0.0
    %2751 = vmatpush2.msra.mxu0 0.0
    %2752 = vmatprep.subr.mxu0 0.0
    %2753 = vmatpush2.msra.mxu0 0.0
    %2754 = vmatprep.subr.mxu0 0.0
    %2755 = vmatpush2.msra.mxu0 0.0
    %2756 = vmatprep.subr.mxu0 0.0
    %2757 = vmatpush2.msra.mxu0 0.0
    %2758 = vmatprep.subr.mxu0 0.0
    %2759 = vmatpush2.msra.mxu0 0.0
    %2760 = vmatprep.subr.mxu0 0.0
    %2761 = vmatpush2.msra.mxu0 0.0
    %2762 = vmatprep.subr.mxu0 0.0
    %2763 = vmatpush2.msra.mxu0 0.0
    %2764 = vmatprep.subr.mxu0 0.0
    %2765 = vmatpush2.msra.mxu0 0.0
    %2766 = vmatprep.mubr.f32.mxu0 0.0
    %v2767 = vand.u32 %v2473, 4294901760
    %v2768 = vsub.f32 %v2473, %v2767
    %v2769 = vand.u32 %v2768, 4294901760
    %2770 = vmatmul.mubr.f32.gmra.mxu0 %v2769
    %v2771 = vpop.f32.mrf.mxu0
    %v2772 = vadd.f32 %v2698, %v2771
    %v2773 = vpop.f32.mrf.mxu0
    %2774 = vdwg.mxu0
    %2775 = vmatprep.subr.mxu0 0.0
    %2776 = vmatpush1.msra.mxu0 0.0
    %2777 = vmatprep.subr.mxu0 0.0
    %2778 = vmatpush1.msra.mxu0 0.0
    %2779 = vmatprep.subr.mxu0 0.0
    %2780 = vmatpush1.msra.mxu0 0.0
    %2781 = vmatprep.subr.mxu0 0.0
    %2782 = vmatpush1.msra.mxu0 0.0
    %2783 = vmatprep.subr.mxu0 0.0
    %2784 = vmatpush1.msra.mxu0 0.0
    %2785 = vmatprep.subr.mxu0 0.0
    %2786 = vmatpush1.msra.mxu0 0.0
    %2787 = vmatprep.subr.mxu0 0.0
    %2788 = vmatpush1.msra.mxu0 0.0
    %2789 = vmatprep.subr.mxu0 0.0
    %2790 = vmatpush1.msra.mxu0 0.0
    %2791 = vmatprep.subr.mxu0 0.0
    %2792 = vmatpush1.msra.mxu0 0.0
    %2793 = vmatprep.subr.mxu0 0.0
    %2794 = vmatpush1.msra.mxu0 0.0
    %2795 = vmatprep.subr.mxu0 0.0
    %2796 = vmatpush1.msra.mxu0 0.0
    %2797 = vmatprep.subr.mxu0 0.0
    %2798 = vmatpush1.msra.mxu0 0.0
    %2799 = vmatprep.subr.mxu0 0.0
    %2800 = vmatpush1.msra.mxu0 0.0
    %2801 = vmatprep.subr.mxu0 0.0
    %2802 = vmatpush1.msra.mxu0 0.0
    %2803 = vmatprep.subr.mxu0 0.0
    %2804 = vmatpush1.msra.mxu0 0.0
    %2805 = vmatprep.subr.mxu0 0.0
    %v2806 = vand.u32 %v55, 4294901760
    %v2807 = vsub.f32 %v55, %v2806
    %v2808 = vand.u32 %v2807, 4294901760
    %2809 = vmatpush1.msra.mxu0 %v2808
    %2810 = vmatprep.subr.mxu0 0.0
    %2811 = vmatpush2.msra.mxu0 0.0
    %2812 = vmatprep.subr.mxu0 0.0
    %2813 = vmatpush2.msra.mxu0 0.0
    %2814 = vmatprep.subr.mxu0 0.0
    %2815 = vmatpush2.msra.mxu0 0.0
    %2816 = vmatprep.subr.mxu0 0.0
    %2817 = vmatpush2.msra.mxu0 0.0
    %2818 = vmatprep.subr.mxu0 0.0
    %2819 = vmatpush2.msra.mxu0 0.0
    %2820 = vmatprep.subr.mxu0 0.0
    %2821 = vmatpush2.msra.mxu0 0.0
    %2822 = vmatprep.subr.mxu0 0.0
    %2823 = vmatpush2.msra.mxu0 0.0
    %2824 = vmatprep.subr.mxu0 0.0
    %2825 = vmatpush2.msra.mxu0 0.0
    %2826 = vmatprep.subr.mxu0 0.0
    %2827 = vmatpush2.msra.mxu0 0.0
    %2828 = vmatprep.subr.mxu0 0.0
    %2829 = vmatpush2.msra.mxu0 0.0
    %2830 = vmatprep.subr.mxu0 0.0
    %2831 = vmatpush2.msra.mxu0 0.0
    %2832 = vmatprep.subr.mxu0 0.0
    %2833 = vmatpush2.msra.mxu0 0.0
    %2834 = vmatprep.subr.mxu0 0.0
    %2835 = vmatpush2.msra.mxu0 0.0
    %2836 = vmatprep.subr.mxu0 0.0
    %2837 = vmatpush2.msra.mxu0 0.0
    %2838 = vmatprep.subr.mxu0 0.0
    %2839 = vmatpush2.msra.mxu0 0.0
    %2840 = vmatprep.subr.mxu0 0.0
    %2841 = vmatpush2.msra.mxu0 0.0
    %2842 = vmatprep.mubr.f32.mxu0 0.0
    %v2843 = vand.u32 %v2473, 4294901760
    %2844 = vmatmul.mubr.f32.gmra.mxu0 %v2843
    %v2845 = vpop.f32.mrf.mxu0
    %v2846 = vadd.f32 %v2772, %v2845
    %v2847 = vpop.f32.mrf.mxu0
    %2848 = vdwg.mxu0
    %2849 = vmatprep.subr.mxu0 0.0
    %2850 = vmatpush1.msra.mxu0 0.0
    %2851 = vmatprep.subr.mxu0 0.0
    %2852 = vmatpush1.msra.mxu0 0.0
    %2853 = vmatprep.subr.mxu0 0.0
    %2854 = vmatpush1.msra.mxu0 0.0
    %2855 = vmatprep.subr.mxu0 0.0
    %2856 = vmatpush1.msra.mxu0 0.0
    %2857 = vmatprep.subr.mxu0 0.0
    %2858 = vmatpush1.msra.mxu0 0.0
    %2859 = vmatprep.subr.mxu0 0.0
    %2860 = vmatpush1.msra.mxu0 0.0
    %2861 = vmatprep.subr.mxu0 0.0
    %2862 = vmatpush1.msra.mxu0 0.0
    %2863 = vmatprep.subr.mxu0 0.0
    %2864 = vmatpush1.msra.mxu0 0.0
    %2865 = vmatprep.subr.mxu0 0.0
    %2866 = vmatpush1.msra.mxu0 0.0
    %2867 = vmatprep.subr.mxu0 0.0
    %2868 = vmatpush1.msra.mxu0 0.0
    %2869 = vmatprep.subr.mxu0 0.0
    %2870 = vmatpush1.msra.mxu0 0.0
    %2871 = vmatprep.subr.mxu0 0.0
    %2872 = vmatpush1.msra.mxu0 0.0
    %2873 = vmatprep.subr.mxu0 0.0
    %2874 = vmatpush1.msra.mxu0 0.0
    %2875 = vmatprep.subr.mxu0 0.0
    %2876 = vmatpush1.msra.mxu0 0.0
    %2877 = vmatprep.subr.mxu0 0.0
    %2878 = vmatpush1.msra.mxu0 0.0
    %2879 = vmatprep.subr.mxu0 0.0
    %v2880 = vand.u32 %v55, 4294901760
    %2881 = vmatpush1.msra.mxu0 %v2880
    %2882 = vmatprep.subr.mxu0 0.0
    %2883 = vmatpush2.msra.mxu0 0.0
    %2884 = vmatprep.subr.mxu0 0.0
    %2885 = vmatpush2.msra.mxu0 0.0
    %2886 = vmatprep.subr.mxu0 0.0
    %2887 = vmatpush2.msra.mxu0 0.0
    %2888 = vmatprep.subr.mxu0 0.0
    %2889 = vmatpush2.msra.mxu0 0.0
    %2890 = vmatprep.subr.mxu0 0.0
    %2891 = vmatpush2.msra.mxu0 0.0
    %2892 = vmatprep.subr.mxu0 0.0
    %2893 = vmatpush2.msra.mxu0 0.0
    %2894 = vmatprep.subr.mxu0 0.0
    %2895 = vmatpush2.msra.mxu0 0.0
    %2896 = vmatprep.subr.mxu0 0.0
    %2897 = vmatpush2.msra.mxu0 0.0
    %2898 = vmatprep.subr.mxu0 0.0
    %2899 = vmatpush2.msra.mxu0 0.0
    %2900 = vmatprep.subr.mxu0 0.0
    %2901 = vmatpush2.msra.mxu0 0.0
    %2902 = vmatprep.subr.mxu0 0.0
    %2903 = vmatpush2.msra.mxu0 0.0
    %2904 = vmatprep.subr.mxu0 0.0
    %2905 = vmatpush2.msra.mxu0 0.0
    %2906 = vmatprep.subr.mxu0 0.0
    %2907 = vmatpush2.msra.mxu0 0.0
    %2908 = vmatprep.subr.mxu0 0.0
    %2909 = vmatpush2.msra.mxu0 0.0
    %2910 = vmatprep.subr.mxu0 0.0
    %2911 = vmatpush2.msra.mxu0 0.0
    %2912 = vmatprep.subr.mxu0 0.0
    %2913 = vmatpush2.msra.mxu0 0.0
    %2914 = vmatprep.mubr.f32.mxu0 0.0
    %v2915 = vand.u32 %v2473, 4294901760
    %2916 = vmatmul.mubr.f32.gmra.mxu0 %v2915
    %v2917 = vpop.f32.mrf.mxu0
    %v2918 = vadd.f32 %v2846, %v2917
    %v2919 = vpop.f32.mrf.mxu0
    %2920 = vdwg.mxu0
    %v2921 = vsel %vm159, %v230, 0
    %2923 = vmatprep.subr.mxu0 0.0
    %2924 = vmatpush1.msra.mxu0 0.0
    %2925 = vmatprep.subr.mxu0 0.0
    %2926 = vmatpush1.msra.mxu0 0.0
    %2927 = vmatprep.subr.mxu0 0.0
    %2928 = vmatpush1.msra.mxu0 0.0
    %2929 = vmatprep.subr.mxu0 0.0
    %2930 = vmatpush1.msra.mxu0 0.0
    %2931 = vmatprep.subr.mxu0 0.0
    %2932 = vmatpush1.msra.mxu0 0.0
    %2933 = vmatprep.subr.mxu0 0.0
    %2934 = vmatpush1.msra.mxu0 0.0
    %2935 = vmatprep.subr.mxu0 0.0
    %2936 = vmatpush1.msra.mxu0 0.0
    %2937 = vmatprep.subr.mxu0 0.0
    %2938 = vmatpush1.msra.mxu0 0.0
    %2939 = vmatprep.subr.mxu0 0.0
    %2940 = vmatpush1.msra.mxu0 0.0
    %2941 = vmatprep.subr.mxu0 0.0
    %2942 = vmatpush1.msra.mxu0 0.0
    %2943 = vmatprep.subr.mxu0 0.0
    %2944 = vmatpush1.msra.mxu0 0.0
    %2945 = vmatprep.subr.mxu0 0.0
    %2946 = vmatpush1.msra.mxu0 0.0
    %2947 = vmatprep.subr.mxu0 0.0
    %2948 = vmatpush1.msra.mxu0 0.0
    %2949 = vmatprep.subr.mxu0 0.0
    %2950 = vmatpush1.msra.mxu0 0.0
    %2951 = vmatprep.subr.mxu0 0.0
    %2952 = vmatpush1.msra.mxu0 0.0
    %2953 = vmatprep.subr.mxu0 0.0
    %v2954 = vand.u32 %v56, 4294901760
    %2955 = vmatpush1.msra.mxu0 %v2954
    %2956 = vmatprep.subr.mxu0 0.0
    %2957 = vmatpush2.msra.mxu0 0.0
    %2958 = vmatprep.subr.mxu0 0.0
    %2959 = vmatpush2.msra.mxu0 0.0
    %2960 = vmatprep.subr.mxu0 0.0
    %2961 = vmatpush2.msra.mxu0 0.0
    %2962 = vmatprep.subr.mxu0 0.0
    %2963 = vmatpush2.msra.mxu0 0.0
    %2964 = vmatprep.subr.mxu0 0.0
    %2965 = vmatpush2.msra.mxu0 0.0
    %2966 = vmatprep.subr.mxu0 0.0
    %2967 = vmatpush2.msra.mxu0 0.0
    %2968 = vmatprep.subr.mxu0 0.0
    %2969 = vmatpush2.msra.mxu0 0.0
    %2970 = vmatprep.subr.mxu0 0.0
    %2971 = vmatpush2.msra.mxu0 0.0
    %2972 = vmatprep.subr.mxu0 0.0
    %2973 = vmatpush2.msra.mxu0 0.0
    %2974 = vmatprep.subr.mxu0 0.0
    %2975 = vmatpush2.msra.mxu0 0.0
    %2976 = vmatprep.subr.mxu0 0.0
    %2977 = vmatpush2.msra.mxu0 0.0
    %2978 = vmatprep.subr.mxu0 0.0
    %2979 = vmatpush2.msra.mxu0 0.0
    %2980 = vmatprep.subr.mxu0 0.0
    %2981 = vmatpush2.msra.mxu0 0.0
    %2982 = vmatprep.subr.mxu0 0.0
    %2983 = vmatpush2.msra.mxu0 0.0
    %2984 = vmatprep.subr.mxu0 0.0
    %2985 = vmatpush2.msra.mxu0 0.0
    %2986 = vmatprep.subr.mxu0 0.0
    %2987 = vmatpush2.msra.mxu0 0.0
    %2988 = vmatprep.mubr.f32.mxu0 0.0
    %v2989 = vand.u32 %v2921, 4294901760
    %v2990 = vsub.f32 %v2921, %v2989
    %v2991 = vand.u32 %v2990, 4294901760
    %v2992 = vsub.f32 %v2990, %v2991
    %v2993 = vand.u32 %v2992, 4294901760
    %2994 = vmatmul.mubr.f32.gmra.mxu0 %v2993
    %v2995 = vpop.f32.mrf.mxu0
    %v2996 = vadd.f32 0.0, %v2995
    %v2997 = vpop.f32.mrf.mxu0
    %2998 = vdwg.mxu0
    %2999 = vmatprep.subr.mxu0 0.0
    %3000 = vmatpush1.msra.mxu0 0.0
    %3001 = vmatprep.subr.mxu0 0.0
    %3002 = vmatpush1.msra.mxu0 0.0
    %3003 = vmatprep.subr.mxu0 0.0
    %3004 = vmatpush1.msra.mxu0 0.0
    %3005 = vmatprep.subr.mxu0 0.0
    %3006 = vmatpush1.msra.mxu0 0.0
    %3007 = vmatprep.subr.mxu0 0.0
    %3008 = vmatpush1.msra.mxu0 0.0
    %3009 = vmatprep.subr.mxu0 0.0
    %3010 = vmatpush1.msra.mxu0 0.0
    %3011 = vmatprep.subr.mxu0 0.0
    %3012 = vmatpush1.msra.mxu0 0.0
    %3013 = vmatprep.subr.mxu0 0.0
    %3014 = vmatpush1.msra.mxu0 0.0
    %3015 = vmatprep.subr.mxu0 0.0
    %3016 = vmatpush1.msra.mxu0 0.0
    %3017 = vmatprep.subr.mxu0 0.0
    %3018 = vmatpush1.msra.mxu0 0.0
    %3019 = vmatprep.subr.mxu0 0.0
    %3020 = vmatpush1.msra.mxu0 0.0
    %3021 = vmatprep.subr.mxu0 0.0
    %3022 = vmatpush1.msra.mxu0 0.0
    %3023 = vmatprep.subr.mxu0 0.0
    %3024 = vmatpush1.msra.mxu0 0.0
    %3025 = vmatprep.subr.mxu0 0.0
    %3026 = vmatpush1.msra.mxu0 0.0
    %3027 = vmatprep.subr.mxu0 0.0
    %3028 = vmatpush1.msra.mxu0 0.0
    %3029 = vmatprep.subr.mxu0 0.0
    %v3030 = vand.u32 %v56, 4294901760
    %v3031 = vsub.f32 %v56, %v3030
    %v3032 = vand.u32 %v3031, 4294901760
    %v3033 = vsub.f32 %v3031, %v3032
    %v3034 = vand.u32 %v3033, 4294901760
    %3035 = vmatpush1.msra.mxu0 %v3034
    %3036 = vmatprep.subr.mxu0 0.0
    %3037 = vmatpush2.msra.mxu0 0.0
    %3038 = vmatprep.subr.mxu0 0.0
    %3039 = vmatpush2.msra.mxu0 0.0
    %3040 = vmatprep.subr.mxu0 0.0
    %3041 = vmatpush2.msra.mxu0 0.0
    %3042 = vmatprep.subr.mxu0 0.0
    %3043 = vmatpush2.msra.mxu0 0.0
    %3044 = vmatprep.subr.mxu0 0.0
    %3045 = vmatpush2.msra.mxu0 0.0
    %3046 = vmatprep.subr.mxu0 0.0
    %3047 = vmatpush2.msra.mxu0 0.0
    %3048 = vmatprep.subr.mxu0 0.0
    %3049 = vmatpush2.msra.mxu0 0.0
    %3050 = vmatprep.subr.mxu0 0.0
    %3051 = vmatpush2.msra.mxu0 0.0
    %3052 = vmatprep.subr.mxu0 0.0
    %3053 = vmatpush2.msra.mxu0 0.0
    %3054 = vmatprep.subr.mxu0 0.0
    %3055 = vmatpush2.msra.mxu0 0.0
    %3056 = vmatprep.subr.mxu0 0.0
    %3057 = vmatpush2.msra.mxu0 0.0
    %3058 = vmatprep.subr.mxu0 0.0
    %3059 = vmatpush2.msra.mxu0 0.0
    %3060 = vmatprep.subr.mxu0 0.0
    %3061 = vmatpush2.msra.mxu0 0.0
    %3062 = vmatprep.subr.mxu0 0.0
    %3063 = vmatpush2.msra.mxu0 0.0
    %3064 = vmatprep.subr.mxu0 0.0
    %3065 = vmatpush2.msra.mxu0 0.0
    %3066 = vmatprep.subr.mxu0 0.0
    %3067 = vmatpush2.msra.mxu0 0.0
    %3068 = vmatprep.mubr.f32.mxu0 0.0
    %v3069 = vand.u32 %v2921, 4294901760
    %3070 = vmatmul.mubr.f32.gmra.mxu0 %v3069
    %v3071 = vpop.f32.mrf.mxu0
    %v3072 = vadd.f32 %v2996, %v3071
    %v3073 = vpop.f32.mrf.mxu0
    %3074 = vdwg.mxu0
    %3075 = vmatprep.subr.mxu0 0.0
    %3076 = vmatpush1.msra.mxu0 0.0
    %3077 = vmatprep.subr.mxu0 0.0
    %3078 = vmatpush1.msra.mxu0 0.0
    %3079 = vmatprep.subr.mxu0 0.0
    %3080 = vmatpush1.msra.mxu0 0.0
    %3081 = vmatprep.subr.mxu0 0.0
    %3082 = vmatpush1.msra.mxu0 0.0
    %3083 = vmatprep.subr.mxu0 0.0
    %3084 = vmatpush1.msra.mxu0 0.0
    %3085 = vmatprep.subr.mxu0 0.0
    %3086 = vmatpush1.msra.mxu0 0.0
    %3087 = vmatprep.subr.mxu0 0.0
    %3088 = vmatpush1.msra.mxu0 0.0
    %3089 = vmatprep.subr.mxu0 0.0
    %3090 = vmatpush1.msra.mxu0 0.0
    %3091 = vmatprep.subr.mxu0 0.0
    %3092 = vmatpush1.msra.mxu0 0.0
    %3093 = vmatprep.subr.mxu0 0.0
    %3094 = vmatpush1.msra.mxu0 0.0
    %3095 = vmatprep.subr.mxu0 0.0
    %3096 = vmatpush1.msra.mxu0 0.0
    %3097 = vmatprep.subr.mxu0 0.0
    %3098 = vmatpush1.msra.mxu0 0.0
    %3099 = vmatprep.subr.mxu0 0.0
    %3100 = vmatpush1.msra.mxu0 0.0
    %3101 = vmatprep.subr.mxu0 0.0
    %3102 = vmatpush1.msra.mxu0 0.0
    %3103 = vmatprep.subr.mxu0 0.0
    %3104 = vmatpush1.msra.mxu0 0.0
    %3105 = vmatprep.subr.mxu0 0.0
    %v3106 = vand.u32 %v56, 4294901760
    %v3107 = vsub.f32 %v56, %v3106
    %3108 = vmatpush1.msra.mxu0 %v3107
    %3109 = vmatprep.subr.mxu0 0.0
    %3110 = vmatpush2.msra.mxu0 0.0
    %3111 = vmatprep.subr.mxu0 0.0
    %3112 = vmatpush2.msra.mxu0 0.0
    %3113 = vmatprep.subr.mxu0 0.0
    %3114 = vmatpush2.msra.mxu0 0.0
    %3115 = vmatprep.subr.mxu0 0.0
    %3116 = vmatpush2.msra.mxu0 0.0
    %3117 = vmatprep.subr.mxu0 0.0
    %3118 = vmatpush2.msra.mxu0 0.0
    %3119 = vmatprep.subr.mxu0 0.0
    %3120 = vmatpush2.msra.mxu0 0.0
    %3121 = vmatprep.subr.mxu0 0.0
    %3122 = vmatpush2.msra.mxu0 0.0
    %3123 = vmatprep.subr.mxu0 0.0
    %3124 = vmatpush2.msra.mxu0 0.0
    %3125 = vmatprep.subr.mxu0 0.0
    %3126 = vmatpush2.msra.mxu0 0.0
    %3127 = vmatprep.subr.mxu0 0.0
    %3128 = vmatpush2.msra.mxu0 0.0
    %3129 = vmatprep.subr.mxu0 0.0
    %3130 = vmatpush2.msra.mxu0 0.0
    %3131 = vmatprep.subr.mxu0 0.0
    %3132 = vmatpush2.msra.mxu0 0.0
    %3133 = vmatprep.subr.mxu0 0.0
    %3134 = vmatpush2.msra.mxu0 0.0
    %3135 = vmatprep.subr.mxu0 0.0
    %3136 = vmatpush2.msra.mxu0 0.0
    %3137 = vmatprep.subr.mxu0 0.0
    %3138 = vmatpush2.msra.mxu0 0.0
    %3139 = vmatprep.subr.mxu0 0.0
    %3140 = vmatpush2.msra.mxu0 0.0
    %3141 = vmatprep.mubr.f32.mxu0 0.0
    %v3142 = vand.u32 %v2921, 4294901760
    %v3143 = vsub.f32 %v2921, %v3142
    %3144 = vmatmul.mubr.f32.gmra.mxu0 %v3143
    %v3145 = vpop.f32.mrf.mxu0
    %v3146 = vadd.f32 %v3072, %v3145
    %v3147 = vpop.f32.mrf.mxu0
    %3148 = vdwg.mxu0
    %3149 = vmatprep.subr.mxu0 0.0
    %3150 = vmatpush1.msra.mxu0 0.0
    %3151 = vmatprep.subr.mxu0 0.0
    %3152 = vmatpush1.msra.mxu0 0.0
    %3153 = vmatprep.subr.mxu0 0.0
    %3154 = vmatpush1.msra.mxu0 0.0
    %3155 = vmatprep.subr.mxu0 0.0
    %3156 = vmatpush1.msra.mxu0 0.0
    %3157 = vmatprep.subr.mxu0 0.0
    %3158 = vmatpush1.msra.mxu0 0.0
    %3159 = vmatprep.subr.mxu0 0.0
    %3160 = vmatpush1.msra.mxu0 0.0
    %3161 = vmatprep.subr.mxu0 0.0
    %3162 = vmatpush1.msra.mxu0 0.0
    %3163 = vmatprep.subr.mxu0 0.0
    %3164 = vmatpush1.msra.mxu0 0.0
    %3165 = vmatprep.subr.mxu0 0.0
    %3166 = vmatpush1.msra.mxu0 0.0
    %3167 = vmatprep.subr.mxu0 0.0
    %3168 = vmatpush1.msra.mxu0 0.0
    %3169 = vmatprep.subr.mxu0 0.0
    %3170 = vmatpush1.msra.mxu0 0.0
    %3171 = vmatprep.subr.mxu0 0.0
    %3172 = vmatpush1.msra.mxu0 0.0
    %3173 = vmatprep.subr.mxu0 0.0
    %3174 = vmatpush1.msra.mxu0 0.0
    %3175 = vmatprep.subr.mxu0 0.0
    %3176 = vmatpush1.msra.mxu0 0.0
    %3177 = vmatprep.subr.mxu0 0.0
    %3178 = vmatpush1.msra.mxu0 0.0
    %3179 = vmatprep.subr.mxu0 0.0
    %v3180 = vand.u32 %v56, 4294901760
    %3181 = vmatpush1.msra.mxu0 %v3180
    %3182 = vmatprep.subr.mxu0 0.0
    %3183 = vmatpush2.msra.mxu0 0.0
    %3184 = vmatprep.subr.mxu0 0.0
    %3185 = vmatpush2.msra.mxu0 0.0
    %3186 = vmatprep.subr.mxu0 0.0
    %3187 = vmatpush2.msra.mxu0 0.0
    %3188 = vmatprep.subr.mxu0 0.0
    %3189 = vmatpush2.msra.mxu0 0.0
    %3190 = vmatprep.subr.mxu0 0.0
    %3191 = vmatpush2.msra.mxu0 0.0
    %3192 = vmatprep.subr.mxu0 0.0
    %3193 = vmatpush2.msra.mxu0 0.0
    %3194 = vmatprep.subr.mxu0 0.0
    %3195 = vmatpush2.msra.mxu0 0.0
    %3196 = vmatprep.subr.mxu0 0.0
    %3197 = vmatpush2.msra.mxu0 0.0
    %3198 = vmatprep.subr.mxu0 0.0
    %3199 = vmatpush2.msra.mxu0 0.0
    %3200 = vmatprep.subr.mxu0 0.0
    %3201 = vmatpush2.msra.mxu0 0.0
    %3202 = vmatprep.subr.mxu0 0.0
    %3203 = vmatpush2.msra.mxu0 0.0
    %3204 = vmatprep.subr.mxu0 0.0
    %3205 = vmatpush2.msra.mxu0 0.0
    %3206 = vmatprep.subr.mxu0 0.0
    %3207 = vmatpush2.msra.mxu0 0.0
    %3208 = vmatprep.subr.mxu0 0.0
    %3209 = vmatpush2.msra.mxu0 0.0
    %3210 = vmatprep.subr.mxu0 0.0
    %3211 = vmatpush2.msra.mxu0 0.0
    %3212 = vmatprep.subr.mxu0 0.0
    %3213 = vmatpush2.msra.mxu0 0.0
    %3214 = vmatprep.mubr.f32.mxu0 0.0
    %v3215 = vand.u32 %v2921, 4294901760
    %v3216 = vsub.f32 %v2921, %v3215
    %v3217 = vand.u32 %v3216, 4294901760
    %3218 = vmatmul.mubr.f32.gmra.mxu0 %v3217
    %v3219 = vpop.f32.mrf.mxu0
    %v3220 = vadd.f32 %v3146, %v3219
    %v3221 = vpop.f32.mrf.mxu0
    %3222 = vdwg.mxu0
    %3223 = vmatprep.subr.mxu0 0.0
    %3224 = vmatpush1.msra.mxu0 0.0
    %3225 = vmatprep.subr.mxu0 0.0
    %3226 = vmatpush1.msra.mxu0 0.0
    %3227 = vmatprep.subr.mxu0 0.0
    %3228 = vmatpush1.msra.mxu0 0.0
    %3229 = vmatprep.subr.mxu0 0.0
    %3230 = vmatpush1.msra.mxu0 0.0
    %3231 = vmatprep.subr.mxu0 0.0
    %3232 = vmatpush1.msra.mxu0 0.0
    %3233 = vmatprep.subr.mxu0 0.0
    %3234 = vmatpush1.msra.mxu0 0.0
    %3235 = vmatprep.subr.mxu0 0.0
    %3236 = vmatpush1.msra.mxu0 0.0
    %3237 = vmatprep.subr.mxu0 0.0
    %3238 = vmatpush1.msra.mxu0 0.0
    %3239 = vmatprep.subr.mxu0 0.0
    %3240 = vmatpush1.msra.mxu0 0.0
    %3241 = vmatprep.subr.mxu0 0.0
    %3242 = vmatpush1.msra.mxu0 0.0
    %3243 = vmatprep.subr.mxu0 0.0
    %3244 = vmatpush1.msra.mxu0 0.0
    %3245 = vmatprep.subr.mxu0 0.0
    %3246 = vmatpush1.msra.mxu0 0.0
    %3247 = vmatprep.subr.mxu0 0.0
    %3248 = vmatpush1.msra.mxu0 0.0
    %3249 = vmatprep.subr.mxu0 0.0
    %3250 = vmatpush1.msra.mxu0 0.0
    %3251 = vmatprep.subr.mxu0 0.0
    %3252 = vmatpush1.msra.mxu0 0.0
    %3253 = vmatprep.subr.mxu0 0.0
    %v3254 = vand.u32 %v56, 4294901760
    %v3255 = vsub.f32 %v56, %v3254
    %v3256 = vand.u32 %v3255, 4294901760
    %3257 = vmatpush1.msra.mxu0 %v3256
    %3258 = vmatprep.subr.mxu0 0.0
    %3259 = vmatpush2.msra.mxu0 0.0
    %3260 = vmatprep.subr.mxu0 0.0
    %3261 = vmatpush2.msra.mxu0 0.0
    %3262 = vmatprep.subr.mxu0 0.0
    %3263 = vmatpush2.msra.mxu0 0.0
    %3264 = vmatprep.subr.mxu0 0.0
    %3265 = vmatpush2.msra.mxu0 0.0
    %3266 = vmatprep.subr.mxu0 0.0
    %3267 = vmatpush2.msra.mxu0 0.0
    %3268 = vmatprep.subr.mxu0 0.0
    %3269 = vmatpush2.msra.mxu0 0.0
    %3270 = vmatprep.subr.mxu0 0.0
    %3271 = vmatpush2.msra.mxu0 0.0
    %3272 = vmatprep.subr.mxu0 0.0
    %3273 = vmatpush2.msra.mxu0 0.0
    %3274 = vmatprep.subr.mxu0 0.0
    %3275 = vmatpush2.msra.mxu0 0.0
    %3276 = vmatprep.subr.mxu0 0.0
    %3277 = vmatpush2.msra.mxu0 0.0
    %3278 = vmatprep.subr.mxu0 0.0
    %3279 = vmatpush2.msra.mxu0 0.0
    %3280 = vmatprep.subr.mxu0 0.0
    %3281 = vmatpush2.msra.mxu0 0.0
    %3282 = vmatprep.subr.mxu0 0.0
    %3283 = vmatpush2.msra.mxu0 0.0
    %3284 = vmatprep.subr.mxu0 0.0
    %3285 = vmatpush2.msra.mxu0 0.0
    %3286 = vmatprep.subr.mxu0 0.0
    %3287 = vmatpush2.msra.mxu0 0.0
    %3288 = vmatprep.subr.mxu0 0.0
    %3289 = vmatpush2.msra.mxu0 0.0
    %3290 = vmatprep.mubr.f32.mxu0 0.0
    %v3291 = vand.u32 %v2921, 4294901760
    %3292 = vmatmul.mubr.f32.gmra.mxu0 %v3291
    %v3293 = vpop.f32.mrf.mxu0
    %v3294 = vadd.f32 %v3220, %v3293
    %v3295 = vpop.f32.mrf.mxu0
    %3296 = vdwg.mxu0
    %3297 = vmatprep.subr.mxu0 0.0
    %3298 = vmatpush1.msra.mxu0 0.0
    %3299 = vmatprep.subr.mxu0 0.0
    %3300 = vmatpush1.msra.mxu0 0.0
    %3301 = vmatprep.subr.mxu0 0.0
    %3302 = vmatpush1.msra.mxu0 0.0
    %3303 = vmatprep.subr.mxu0 0.0
    %3304 = vmatpush1.msra.mxu0 0.0
    %3305 = vmatprep.subr.mxu0 0.0
    %3306 = vmatpush1.msra.mxu0 0.0
    %3307 = vmatprep.subr.mxu0 0.0
    %3308 = vmatpush1.msra.mxu0 0.0
    %3309 = vmatprep.subr.mxu0 0.0
    %3310 = vmatpush1.msra.mxu0 0.0
    %3311 = vmatprep.subr.mxu0 0.0
    %3312 = vmatpush1.msra.mxu0 0.0
    %3313 = vmatprep.subr.mxu0 0.0
    %3314 = vmatpush1.msra.mxu0 0.0
    %3315 = vmatprep.subr.mxu0 0.0
    %3316 = vmatpush1.msra.mxu0 0.0
    %3317 = vmatprep.subr.mxu0 0.0
    %3318 = vmatpush1.msra.mxu0 0.0
    %3319 = vmatprep.subr.mxu0 0.0
    %3320 = vmatpush1.msra.mxu0 0.0
    %3321 = vmatprep.subr.mxu0 0.0
    %3322 = vmatpush1.msra.mxu0 0.0
    %3323 = vmatprep.subr.mxu0 0.0
    %3324 = vmatpush1.msra.mxu0 0.0
    %3325 = vmatprep.subr.mxu0 0.0
    %3326 = vmatpush1.msra.mxu0 0.0
    %3327 = vmatprep.subr.mxu0 0.0
    %v3328 = vand.u32 %v56, 4294901760
    %3329 = vmatpush1.msra.mxu0 %v3328
    %3330 = vmatprep.subr.mxu0 0.0
    %3331 = vmatpush2.msra.mxu0 0.0
    %3332 = vmatprep.subr.mxu0 0.0
    %3333 = vmatpush2.msra.mxu0 0.0
    %3334 = vmatprep.subr.mxu0 0.0
    %3335 = vmatpush2.msra.mxu0 0.0
    %3336 = vmatprep.subr.mxu0 0.0
    %3337 = vmatpush2.msra.mxu0 0.0
    %3338 = vmatprep.subr.mxu0 0.0
    %3339 = vmatpush2.msra.mxu0 0.0
    %3340 = vmatprep.subr.mxu0 0.0
    %3341 = vmatpush2.msra.mxu0 0.0
    %3342 = vmatprep.subr.mxu0 0.0
    %3343 = vmatpush2.msra.mxu0 0.0
    %3344 = vmatprep.subr.mxu0 0.0
    %3345 = vmatpush2.msra.mxu0 0.0
    %3346 = vmatprep.subr.mxu0 0.0
    %3347 = vmatpush2.msra.mxu0 0.0
    %3348 = vmatprep.subr.mxu0 0.0
    %3349 = vmatpush2.msra.mxu0 0.0
    %3350 = vmatprep.subr.mxu0 0.0
    %3351 = vmatpush2.msra.mxu0 0.0
    %3352 = vmatprep.subr.mxu0 0.0
    %3353 = vmatpush2.msra.mxu0 0.0
    %3354 = vmatprep.subr.mxu0 0.0
    %3355 = vmatpush2.msra.mxu0 0.0
    %3356 = vmatprep.subr.mxu0 0.0
    %3357 = vmatpush2.msra.mxu0 0.0
    %3358 = vmatprep.subr.mxu0 0.0
    %3359 = vmatpush2.msra.mxu0 0.0
    %3360 = vmatprep.subr.mxu0 0.0
    %3361 = vmatpush2.msra.mxu0 0.0
    %3362 = vmatprep.mubr.f32.mxu0 0.0
    %v3363 = vand.u32 %v2921, 4294901760
    %3364 = vmatmul.mubr.f32.gmra.mxu0 %v3363
    %v3365 = vpop.f32.mrf.mxu0
    %v3366 = vadd.f32 %v3294, %v3365
    %v3367 = vpop.f32.mrf.mxu0
    %3368 = vdwg.mxu0
    %v3369 = vsel %vm159, %v232, 0
    %3371 = vmatprep.subr.mxu0 0.0
    %3372 = vmatpush1.msra.mxu0 0.0
    %3373 = vmatprep.subr.mxu0 0.0
    %3374 = vmatpush1.msra.mxu0 0.0
    %3375 = vmatprep.subr.mxu0 0.0
    %3376 = vmatpush1.msra.mxu0 0.0
    %3377 = vmatprep.subr.mxu0 0.0
    %3378 = vmatpush1.msra.mxu0 0.0
    %3379 = vmatprep.subr.mxu0 0.0
    %3380 = vmatpush1.msra.mxu0 0.0
    %3381 = vmatprep.subr.mxu0 0.0
    %3382 = vmatpush1.msra.mxu0 0.0
    %3383 = vmatprep.subr.mxu0 0.0
    %3384 = vmatpush1.msra.mxu0 0.0
    %3385 = vmatprep.subr.mxu0 0.0
    %3386 = vmatpush1.msra.mxu0 0.0
    %3387 = vmatprep.subr.mxu0 0.0
    %3388 = vmatpush1.msra.mxu0 0.0
    %3389 = vmatprep.subr.mxu0 0.0
    %3390 = vmatpush1.msra.mxu0 0.0
    %3391 = vmatprep.subr.mxu0 0.0
    %3392 = vmatpush1.msra.mxu0 0.0
    %3393 = vmatprep.subr.mxu0 0.0
    %3394 = vmatpush1.msra.mxu0 0.0
    %3395 = vmatprep.subr.mxu0 0.0
    %3396 = vmatpush1.msra.mxu0 0.0
    %3397 = vmatprep.subr.mxu0 0.0
    %3398 = vmatpush1.msra.mxu0 0.0
    %3399 = vmatprep.subr.mxu0 0.0
    %3400 = vmatpush1.msra.mxu0 0.0
    %3401 = vmatprep.subr.mxu0 0.0
    %v3402 = vand.u32 %v57, 4294901760
    %3403 = vmatpush1.msra.mxu0 %v3402
    %3404 = vmatprep.subr.mxu0 0.0
    %3405 = vmatpush2.msra.mxu0 0.0
    %3406 = vmatprep.subr.mxu0 0.0
    %3407 = vmatpush2.msra.mxu0 0.0
    %3408 = vmatprep.subr.mxu0 0.0
    %3409 = vmatpush2.msra.mxu0 0.0
    %3410 = vmatprep.subr.mxu0 0.0
    %3411 = vmatpush2.msra.mxu0 0.0
    %3412 = vmatprep.subr.mxu0 0.0
    %3413 = vmatpush2.msra.mxu0 0.0
    %3414 = vmatprep.subr.mxu0 0.0
    %3415 = vmatpush2.msra.mxu0 0.0
    %3416 = vmatprep.subr.mxu0 0.0
    %3417 = vmatpush2.msra.mxu0 0.0
    %3418 = vmatprep.subr.mxu0 0.0
    %3419 = vmatpush2.msra.mxu0 0.0
    %3420 = vmatprep.subr.mxu0 0.0
    %3421 = vmatpush2.msra.mxu0 0.0
    %3422 = vmatprep.subr.mxu0 0.0
    %3423 = vmatpush2.msra.mxu0 0.0
    %3424 = vmatprep.subr.mxu0 0.0
    %3425 = vmatpush2.msra.mxu0 0.0
    %3426 = vmatprep.subr.mxu0 0.0
    %3427 = vmatpush2.msra.mxu0 0.0
    %3428 = vmatprep.subr.mxu0 0.0
    %3429 = vmatpush2.msra.mxu0 0.0
    %3430 = vmatprep.subr.mxu0 0.0
    %3431 = vmatpush2.msra.mxu0 0.0
    %3432 = vmatprep.subr.mxu0 0.0
    %3433 = vmatpush2.msra.mxu0 0.0
    %3434 = vmatprep.subr.mxu0 0.0
    %3435 = vmatpush2.msra.mxu0 0.0
    %3436 = vmatprep.mubr.f32.mxu0 0.0
    %v3437 = vand.u32 %v3369, 4294901760
    %v3438 = vsub.f32 %v3369, %v3437
    %v3439 = vand.u32 %v3438, 4294901760
    %v3440 = vsub.f32 %v3438, %v3439
    %v3441 = vand.u32 %v3440, 4294901760
    %3442 = vmatmul.mubr.f32.gmra.mxu0 %v3441
    %v3443 = vpop.f32.mrf.mxu0
    %v3444 = vadd.f32 0.0, %v3443
    %v3445 = vpop.f32.mrf.mxu0
    %3446 = vdwg.mxu0
    %3447 = vmatprep.subr.mxu0 0.0
    %3448 = vmatpush1.msra.mxu0 0.0
    %3449 = vmatprep.subr.mxu0 0.0
    %3450 = vmatpush1.msra.mxu0 0.0
    %3451 = vmatprep.subr.mxu0 0.0
    %3452 = vmatpush1.msra.mxu0 0.0
    %3453 = vmatprep.subr.mxu0 0.0
    %3454 = vmatpush1.msra.mxu0 0.0
    %3455 = vmatprep.subr.mxu0 0.0
    %3456 = vmatpush1.msra.mxu0 0.0
    %3457 = vmatprep.subr.mxu0 0.0
    %3458 = vmatpush1.msra.mxu0 0.0
    %3459 = vmatprep.subr.mxu0 0.0
    %3460 = vmatpush1.msra.mxu0 0.0
    %3461 = vmatprep.subr.mxu0 0.0
    %3462 = vmatpush1.msra.mxu0 0.0
    %3463 = vmatprep.subr.mxu0 0.0
    %3464 = vmatpush1.msra.mxu0 0.0
    %3465 = vmatprep.subr.mxu0 0.0
    %3466 = vmatpush1.msra.mxu0 0.0
    %3467 = vmatprep.subr.mxu0 0.0
    %3468 = vmatpush1.msra.mxu0 0.0
    %3469 = vmatprep.subr.mxu0 0.0
    %3470 = vmatpush1.msra.mxu0 0.0
    %3471 = vmatprep.subr.mxu0 0.0
    %3472 = vmatpush1.msra.mxu0 0.0
    %3473 = vmatprep.subr.mxu0 0.0
    %3474 = vmatpush1.msra.mxu0 0.0
    %3475 = vmatprep.subr.mxu0 0.0
    %3476 = vmatpush1.msra.mxu0 0.0
    %3477 = vmatprep.subr.mxu0 0.0
    %v3478 = vand.u32 %v57, 4294901760
    %v3479 = vsub.f32 %v57, %v3478
    %v3480 = vand.u32 %v3479, 4294901760
    %v3481 = vsub.f32 %v3479, %v3480
    %v3482 = vand.u32 %v3481, 4294901760
    %3483 = vmatpush1.msra.mxu0 %v3482
    %3484 = vmatprep.subr.mxu0 0.0
    %3485 = vmatpush2.msra.mxu0 0.0
    %3486 = vmatprep.subr.mxu0 0.0
    %3487 = vmatpush2.msra.mxu0 0.0
    %3488 = vmatprep.subr.mxu0 0.0
    %3489 = vmatpush2.msra.mxu0 0.0
    %3490 = vmatprep.subr.mxu0 0.0
    %3491 = vmatpush2.msra.mxu0 0.0
    %3492 = vmatprep.subr.mxu0 0.0
    %3493 = vmatpush2.msra.mxu0 0.0
    %3494 = vmatprep.subr.mxu0 0.0
    %3495 = vmatpush2.msra.mxu0 0.0
    %3496 = vmatprep.subr.mxu0 0.0
    %3497 = vmatpush2.msra.mxu0 0.0
    %3498 = vmatprep.subr.mxu0 0.0
    %3499 = vmatpush2.msra.mxu0 0.0
    %3500 = vmatprep.subr.mxu0 0.0
    %3501 = vmatpush2.msra.mxu0 0.0
    %3502 = vmatprep.subr.mxu0 0.0
    %3503 = vmatpush2.msra.mxu0 0.0
    %3504 = vmatprep.subr.mxu0 0.0
    %3505 = vmatpush2.msra.mxu0 0.0
    %3506 = vmatprep.subr.mxu0 0.0
    %3507 = vmatpush2.msra.mxu0 0.0
    %3508 = vmatprep.subr.mxu0 0.0
    %3509 = vmatpush2.msra.mxu0 0.0
    %3510 = vmatprep.subr.mxu0 0.0
    %3511 = vmatpush2.msra.mxu0 0.0
    %3512 = vmatprep.subr.mxu0 0.0
    %3513 = vmatpush2.msra.mxu0 0.0
    %3514 = vmatprep.subr.mxu0 0.0
    %3515 = vmatpush2.msra.mxu0 0.0
    %3516 = vmatprep.mubr.f32.mxu0 0.0
    %v3517 = vand.u32 %v3369, 4294901760
    %3518 = vmatmul.mubr.f32.gmra.mxu0 %v3517
    %v3519 = vpop.f32.mrf.mxu0
    %v3520 = vadd.f32 %v3444, %v3519
    %v3521 = vpop.f32.mrf.mxu0
    %3522 = vdwg.mxu0
    %3523 = vmatprep.subr.mxu0 0.0
    %3524 = vmatpush1.msra.mxu0 0.0
    %3525 = vmatprep.subr.mxu0 0.0
    %3526 = vmatpush1.msra.mxu0 0.0
    %3527 = vmatprep.subr.mxu0 0.0
    %3528 = vmatpush1.msra.mxu0 0.0
    %3529 = vmatprep.subr.mxu0 0.0
    %3530 = vmatpush1.msra.mxu0 0.0
    %3531 = vmatprep.subr.mxu0 0.0
    %3532 = vmatpush1.msra.mxu0 0.0
    %3533 = vmatprep.subr.mxu0 0.0
    %3534 = vmatpush1.msra.mxu0 0.0
    %3535 = vmatprep.subr.mxu0 0.0
    %3536 = vmatpush1.msra.mxu0 0.0
    %3537 = vmatprep.subr.mxu0 0.0
    %3538 = vmatpush1.msra.mxu0 0.0
    %3539 = vmatprep.subr.mxu0 0.0
    %3540 = vmatpush1.msra.mxu0 0.0
    %3541 = vmatprep.subr.mxu0 0.0
    %3542 = vmatpush1.msra.mxu0 0.0
    %3543 = vmatprep.subr.mxu0 0.0
    %3544 = vmatpush1.msra.mxu0 0.0
    %3545 = vmatprep.subr.mxu0 0.0
    %3546 = vmatpush1.msra.mxu0 0.0
    %3547 = vmatprep.subr.mxu0 0.0
    %3548 = vmatpush1.msra.mxu0 0.0
    %3549 = vmatprep.subr.mxu0 0.0
    %3550 = vmatpush1.msra.mxu0 0.0
    %3551 = vmatprep.subr.mxu0 0.0
    %3552 = vmatpush1.msra.mxu0 0.0
    %3553 = vmatprep.subr.mxu0 0.0
    %v3554 = vand.u32 %v57, 4294901760
    %v3555 = vsub.f32 %v57, %v3554
    %3556 = vmatpush1.msra.mxu0 %v3555
    %3557 = vmatprep.subr.mxu0 0.0
    %3558 = vmatpush2.msra.mxu0 0.0
    %3559 = vmatprep.subr.mxu0 0.0
    %3560 = vmatpush2.msra.mxu0 0.0
    %3561 = vmatprep.subr.mxu0 0.0
    %3562 = vmatpush2.msra.mxu0 0.0
    %3563 = vmatprep.subr.mxu0 0.0
    %3564 = vmatpush2.msra.mxu0 0.0
    %3565 = vmatprep.subr.mxu0 0.0
    %3566 = vmatpush2.msra.mxu0 0.0
    %3567 = vmatprep.subr.mxu0 0.0
    %3568 = vmatpush2.msra.mxu0 0.0
    %3569 = vmatprep.subr.mxu0 0.0
    %3570 = vmatpush2.msra.mxu0 0.0
    %3571 = vmatprep.subr.mxu0 0.0
    %3572 = vmatpush2.msra.mxu0 0.0
    %3573 = vmatprep.subr.mxu0 0.0
    %3574 = vmatpush2.msra.mxu0 0.0
    %3575 = vmatprep.subr.mxu0 0.0
    %3576 = vmatpush2.msra.mxu0 0.0
    %3577 = vmatprep.subr.mxu0 0.0
    %3578 = vmatpush2.msra.mxu0 0.0
    %3579 = vmatprep.subr.mxu0 0.0
    %3580 = vmatpush2.msra.mxu0 0.0
    %3581 = vmatprep.subr.mxu0 0.0
    %3582 = vmatpush2.msra.mxu0 0.0
    %3583 = vmatprep.subr.mxu0 0.0
    %3584 = vmatpush2.msra.mxu0 0.0
    %3585 = vmatprep.subr.mxu0 0.0
    %3586 = vmatpush2.msra.mxu0 0.0
    %3587 = vmatprep.subr.mxu0 0.0
    %3588 = vmatpush2.msra.mxu0 0.0
    %3589 = vmatprep.mubr.f32.mxu0 0.0
    %v3590 = vand.u32 %v3369, 4294901760
    %v3591 = vsub.f32 %v3369, %v3590
    %3592 = vmatmul.mubr.f32.gmra.mxu0 %v3591
    %v3593 = vpop.f32.mrf.mxu0
    %v3594 = vadd.f32 %v3520, %v3593
    %v3595 = vpop.f32.mrf.mxu0
    %3596 = vdwg.mxu0
    %3597 = vmatprep.subr.mxu0 0.0
    %3598 = vmatpush1.msra.mxu0 0.0
    %3599 = vmatprep.subr.mxu0 0.0
    %3600 = vmatpush1.msra.mxu0 0.0
    %3601 = vmatprep.subr.mxu0 0.0
    %3602 = vmatpush1.msra.mxu0 0.0
    %3603 = vmatprep.subr.mxu0 0.0
    %3604 = vmatpush1.msra.mxu0 0.0
    %3605 = vmatprep.subr.mxu0 0.0
    %3606 = vmatpush1.msra.mxu0 0.0
    %3607 = vmatprep.subr.mxu0 0.0
    %3608 = vmatpush1.msra.mxu0 0.0
    %3609 = vmatprep.subr.mxu0 0.0
    %3610 = vmatpush1.msra.mxu0 0.0
    %3611 = vmatprep.subr.mxu0 0.0
    %3612 = vmatpush1.msra.mxu0 0.0
    %3613 = vmatprep.subr.mxu0 0.0
    %3614 = vmatpush1.msra.mxu0 0.0
    %3615 = vmatprep.subr.mxu0 0.0
    %3616 = vmatpush1.msra.mxu0 0.0
    %3617 = vmatprep.subr.mxu0 0.0
    %3618 = vmatpush1.msra.mxu0 0.0
    %3619 = vmatprep.subr.mxu0 0.0
    %3620 = vmatpush1.msra.mxu0 0.0
    %3621 = vmatprep.subr.mxu0 0.0
    %3622 = vmatpush1.msra.mxu0 0.0
    %3623 = vmatprep.subr.mxu0 0.0
    %3624 = vmatpush1.msra.mxu0 0.0
    %3625 = vmatprep.subr.mxu0 0.0
    %3626 = vmatpush1.msra.mxu0 0.0
    %3627 = vmatprep.subr.mxu0 0.0
    %v3628 = vand.u32 %v57, 4294901760
    %3629 = vmatpush1.msra.mxu0 %v3628
    %3630 = vmatprep.subr.mxu0 0.0
    %3631 = vmatpush2.msra.mxu0 0.0
    %3632 = vmatprep.subr.mxu0 0.0
    %3633 = vmatpush2.msra.mxu0 0.0
    %3634 = vmatprep.subr.mxu0 0.0
    %3635 = vmatpush2.msra.mxu0 0.0
    %3636 = vmatprep.subr.mxu0 0.0
    %3637 = vmatpush2.msra.mxu0 0.0
    %3638 = vmatprep.subr.mxu0 0.0
    %3639 = vmatpush2.msra.mxu0 0.0
    %3640 = vmatprep.subr.mxu0 0.0
    %3641 = vmatpush2.msra.mxu0 0.0
    %3642 = vmatprep.subr.mxu0 0.0
    %3643 = vmatpush2.msra.mxu0 0.0
    %3644 = vmatprep.subr.mxu0 0.0
    %3645 = vmatpush2.msra.mxu0 0.0
    %3646 = vmatprep.subr.mxu0 0.0
    %3647 = vmatpush2.msra.mxu0 0.0
    %3648 = vmatprep.subr.mxu0 0.0
    %3649 = vmatpush2.msra.mxu0 0.0
    %3650 = vmatprep.subr.mxu0 0.0
    %3651 = vmatpush2.msra.mxu0 0.0
    %3652 = vmatprep.subr.mxu0 0.0
    %3653 = vmatpush2.msra.mxu0 0.0
    %3654 = vmatprep.subr.mxu0 0.0
    %3655 = vmatpush2.msra.mxu0 0.0
    %3656 = vmatprep.subr.mxu0 0.0
    %3657 = vmatpush2.msra.mxu0 0.0
    %3658 = vmatprep.subr.mxu0 0.0
    %3659 = vmatpush2.msra.mxu0 0.0
    %3660 = vmatprep.subr.mxu0 0.0
    %3661 = vmatpush2.msra.mxu0 0.0
    %3662 = vmatprep.mubr.f32.mxu0 0.0
    %v3663 = vand.u32 %v3369, 4294901760
    %v3664 = vsub.f32 %v3369, %v3663
    %v3665 = vand.u32 %v3664, 4294901760
    %3666 = vmatmul.mubr.f32.gmra.mxu0 %v3665
    %v3667 = vpop.f32.mrf.mxu0
    %v3668 = vadd.f32 %v3594, %v3667
    %v3669 = vpop.f32.mrf.mxu0
    %3670 = vdwg.mxu0
    %3671 = vmatprep.subr.mxu0 0.0
    %3672 = vmatpush1.msra.mxu0 0.0
    %3673 = vmatprep.subr.mxu0 0.0
    %3674 = vmatpush1.msra.mxu0 0.0
    %3675 = vmatprep.subr.mxu0 0.0
    %3676 = vmatpush1.msra.mxu0 0.0
    %3677 = vmatprep.subr.mxu0 0.0
    %3678 = vmatpush1.msra.mxu0 0.0
    %3679 = vmatprep.subr.mxu0 0.0
    %3680 = vmatpush1.msra.mxu0 0.0
    %3681 = vmatprep.subr.mxu0 0.0
    %3682 = vmatpush1.msra.mxu0 0.0
    %3683 = vmatprep.subr.mxu0 0.0
    %3684 = vmatpush1.msra.mxu0 0.0
    %3685 = vmatprep.subr.mxu0 0.0
    %3686 = vmatpush1.msra.mxu0 0.0
    %3687 = vmatprep.subr.mxu0 0.0
    %3688 = vmatpush1.msra.mxu0 0.0
    %3689 = vmatprep.subr.mxu0 0.0
    %3690 = vmatpush1.msra.mxu0 0.0
    %3691 = vmatprep.subr.mxu0 0.0
    %3692 = vmatpush1.msra.mxu0 0.0
    %3693 = vmatprep.subr.mxu0 0.0
    %3694 = vmatpush1.msra.mxu0 0.0
    %3695 = vmatprep.subr.mxu0 0.0
    %3696 = vmatpush1.msra.mxu0 0.0
    %3697 = vmatprep.subr.mxu0 0.0
    %3698 = vmatpush1.msra.mxu0 0.0
    %3699 = vmatprep.subr.mxu0 0.0
    %3700 = vmatpush1.msra.mxu0 0.0
    %3701 = vmatprep.subr.mxu0 0.0
    %v3702 = vand.u32 %v57, 4294901760
    %v3703 = vsub.f32 %v57, %v3702
    %v3704 = vand.u32 %v3703, 4294901760
    %3705 = vmatpush1.msra.mxu0 %v3704
    %3706 = vmatprep.subr.mxu0 0.0
    %3707 = vmatpush2.msra.mxu0 0.0
    %3708 = vmatprep.subr.mxu0 0.0
    %3709 = vmatpush2.msra.mxu0 0.0
    %3710 = vmatprep.subr.mxu0 0.0
    %3711 = vmatpush2.msra.mxu0 0.0
    %3712 = vmatprep.subr.mxu0 0.0
    %3713 = vmatpush2.msra.mxu0 0.0
    %3714 = vmatprep.subr.mxu0 0.0
    %3715 = vmatpush2.msra.mxu0 0.0
    %3716 = vmatprep.subr.mxu0 0.0
    %3717 = vmatpush2.msra.mxu0 0.0
    %3718 = vmatprep.subr.mxu0 0.0
    %3719 = vmatpush2.msra.mxu0 0.0
    %3720 = vmatprep.subr.mxu0 0.0
    %3721 = vmatpush2.msra.mxu0 0.0
    %3722 = vmatprep.subr.mxu0 0.0
    %3723 = vmatpush2.msra.mxu0 0.0
    %3724 = vmatprep.subr.mxu0 0.0
    %3725 = vmatpush2.msra.mxu0 0.0
    %3726 = vmatprep.subr.mxu0 0.0
    %3727 = vmatpush2.msra.mxu0 0.0
    %3728 = vmatprep.subr.mxu0 0.0
    %3729 = vmatpush2.msra.mxu0 0.0
    %3730 = vmatprep.subr.mxu0 0.0
    %3731 = vmatpush2.msra.mxu0 0.0
    %3732 = vmatprep.subr.mxu0 0.0
    %3733 = vmatpush2.msra.mxu0 0.0
    %3734 = vmatprep.subr.mxu0 0.0
    %3735 = vmatpush2.msra.mxu0 0.0
    %3736 = vmatprep.subr.mxu0 0.0
    %3737 = vmatpush2.msra.mxu0 0.0
    %3738 = vmatprep.mubr.f32.mxu0 0.0
    %v3739 = vand.u32 %v3369, 4294901760
    %3740 = vmatmul.mubr.f32.gmra.mxu0 %v3739
    %v3741 = vpop.f32.mrf.mxu0
    %v3742 = vadd.f32 %v3668, %v3741
    %v3743 = vpop.f32.mrf.mxu0
    %3744 = vdwg.mxu0
    %3745 = vmatprep.subr.mxu0 0.0
    %3746 = vmatpush1.msra.mxu0 0.0
    %3747 = vmatprep.subr.mxu0 0.0
    %3748 = vmatpush1.msra.mxu0 0.0
    %3749 = vmatprep.subr.mxu0 0.0
    %3750 = vmatpush1.msra.mxu0 0.0
    %3751 = vmatprep.subr.mxu0 0.0
    %3752 = vmatpush1.msra.mxu0 0.0
    %3753 = vmatprep.subr.mxu0 0.0
    %3754 = vmatpush1.msra.mxu0 0.0
    %3755 = vmatprep.subr.mxu0 0.0
    %3756 = vmatpush1.msra.mxu0 0.0
    %3757 = vmatprep.subr.mxu0 0.0
    %3758 = vmatpush1.msra.mxu0 0.0
    %3759 = vmatprep.subr.mxu0 0.0
    %3760 = vmatpush1.msra.mxu0 0.0
    %3761 = vmatprep.subr.mxu0 0.0
    %3762 = vmatpush1.msra.mxu0 0.0
    %3763 = vmatprep.subr.mxu0 0.0
    %3764 = vmatpush1.msra.mxu0 0.0
    %3765 = vmatprep.subr.mxu0 0.0
    %3766 = vmatpush1.msra.mxu0 0.0
    %3767 = vmatprep.subr.mxu0 0.0
    %3768 = vmatpush1.msra.mxu0 0.0
    %3769 = vmatprep.subr.mxu0 0.0
    %3770 = vmatpush1.msra.mxu0 0.0
    %3771 = vmatprep.subr.mxu0 0.0
    %3772 = vmatpush1.msra.mxu0 0.0
    %3773 = vmatprep.subr.mxu0 0.0
    %3774 = vmatpush1.msra.mxu0 0.0
    %3775 = vmatprep.subr.mxu0 0.0
    %v3776 = vand.u32 %v57, 4294901760
    %3777 = vmatpush1.msra.mxu0 %v3776
    %3778 = vmatprep.subr.mxu0 0.0
    %3779 = vmatpush2.msra.mxu0 0.0
    %3780 = vmatprep.subr.mxu0 0.0
    %3781 = vmatpush2.msra.mxu0 0.0
    %3782 = vmatprep.subr.mxu0 0.0
    %3783 = vmatpush2.msra.mxu0 0.0
    %3784 = vmatprep.subr.mxu0 0.0
    %3785 = vmatpush2.msra.mxu0 0.0
    %3786 = vmatprep.subr.mxu0 0.0
    %3787 = vmatpush2.msra.mxu0 0.0
    %3788 = vmatprep.subr.mxu0 0.0
    %3789 = vmatpush2.msra.mxu0 0.0
    %3790 = vmatprep.subr.mxu0 0.0
    %3791 = vmatpush2.msra.mxu0 0.0
    %3792 = vmatprep.subr.mxu0 0.0
    %3793 = vmatpush2.msra.mxu0 0.0
    %3794 = vmatprep.subr.mxu0 0.0
    %3795 = vmatpush2.msra.mxu0 0.0
    %3796 = vmatprep.subr.mxu0 0.0
    %3797 = vmatpush2.msra.mxu0 0.0
    %3798 = vmatprep.subr.mxu0 0.0
    %3799 = vmatpush2.msra.mxu0 0.0
    %3800 = vmatprep.subr.mxu0 0.0
    %3801 = vmatpush2.msra.mxu0 0.0
    %3802 = vmatprep.subr.mxu0 0.0
    %3803 = vmatpush2.msra.mxu0 0.0
    %3804 = vmatprep.subr.mxu0 0.0
    %3805 = vmatpush2.msra.mxu0 0.0
    %3806 = vmatprep.subr.mxu0 0.0
    %3807 = vmatpush2.msra.mxu0 0.0
    %3808 = vmatprep.subr.mxu0 0.0
    %3809 = vmatpush2.msra.mxu0 0.0
    %3810 = vmatprep.mubr.f32.mxu0 0.0
    %v3811 = vand.u32 %v3369, 4294901760
    %3812 = vmatmul.mubr.f32.gmra.mxu0 %v3811
    %v3813 = vpop.f32.mrf.mxu0
    %v3814 = vadd.f32 %v3742, %v3813
    %v3815 = vpop.f32.mrf.mxu0
    %3816 = vdwg.mxu0
    %v3817 = vld [vmem:[#allocation4] sm:$0xff]
    %3819 = vset.pattern.permute.xlu0 0
    %3820 = vperm.xlu0 %3819, %v166
    %v3821 = vpop.permute.xlu0 %3820
    %v3823 = vmul.f32 %v3821, %v3817
    %v3832 = vrot.slane %v1126, 7
    %v3833 = vsel %vm142, %v3832, %v678
    %v3834 = vrot.slane %v1574, 6
    %v3835 = vsel %vm144, %v3834, %v3833
    %v3836 = vrot.slane %v2022, 5
    %v3837 = vsel %vm146, %v3836, %v3835
    %v3838 = vrot.slane %v2470, 4
    %v3839 = vsel %vm148, %v3838, %v3837
    %v3840 = vrot.slane %v2918, 3
    %v3841 = vsel %vm150, %v3840, %v3839
    %v3842 = vrot.slane %v3366, 2
    %v3843 = vsel %vm152, %v3842, %v3841
    %v3844 = vrot.slane %v3814, 1
    %v3845 = vsel %vm154, %v3844, %v3843
    %v3847 = vadd.f32 %v3823, %v3845
    %3848 = vst.msk [vmem:[#allocation4] sm:$0xff] %vm73, %v3847
    %3849 = vst.msk [vmem:[#allocation2] sm:$0xff] %vm181, %v163
    // Predicated region
    $region26: #{tpu_custom_call.1} parent=1 // pred_check
      %p3850 = pneg %p41
    $region27: #{tpu_custom_call.1} parent=1 // pred_check_branch
      %3852 = sbr.rel (%p3850) target = $region29
    $region28: #{tpu_custom_call.1} parent=1 // pred_region
      %v3853 = vld [vmem:[#allocation4] sm:$0xff]
      %v3854 = vld [vmem:[#allocation3] sm:$0xff]
      %3856 = vset.pattern.permute.xlu0 0
      %3857 = vperm.xlu0 %3856, %v3854
      %v3858 = vpop.permute.xlu0 %3857
      %v3860 = vrcp.pop %v3858
      %v3861 = vmul.f32 %v3853, %v3860
      %3862 = vst.msk [vmem:[#allocation10] sm:$0xff] %vm73, %v3861
    $region29: #{tpu_custom_call.1} parent=1 // pred_fallthru
      _
    // Predicated region
    $region30: #{tpu_custom_call.1} parent=1 // pred_check
      _
    $region31: #{tpu_custom_call.1} parent=1 // pred_check_branch
      %3864 = sbr.rel (0) target = $region33
    $region32: #{tpu_custom_call.1} parent=1 // pred_region
      %s3866 = ssub.s32 128, 128
      %3867 = vsyncadd [#allocation7], %s3866
      %s3869 = sshll.u32 [#allocation10], 4
      %s3870 = int_to_ptr.vmem [resolvable:$true] %s3869
      %3872 = dma.vmem_to_hbm [thread:$0]  %s3870, 128, %s3, [#allocation7]
    $region33: #{tpu_custom_call.1} parent=1 // pred_fallthru
      _
    // Predicated region
    $region34: #{tpu_custom_call.1} parent=1 // pred_check
      _
    $region35: #{tpu_custom_call.1} parent=1 // pred_check_branch
      %3874 = sbr.rel (0) target = $region37
    $region36: #{tpu_custom_call.1} parent=1 // pred_region
      %3875 = dma.done [#allocation7], 128
    $region37: #{tpu_custom_call.1} parent=1 // pred_fallthru
      _
    %3876 = vsyncpa [#allocation6], 1
    %3877 = vsyncpa [#allocation9], 1
    %3878 = vsyncpa [#allocation7], 1

</llo_original>
